<compile_context>
chip_gen: v5e
topology: v5e:2x2
jax: 0.10.0
libtpu: 0.0.40
codegen_flags: <defaults>
</compile_context>

<pallas_src>
import jax
import jax.numpy as jnp
from jax.experimental import pallas as pl
from jax.experimental.pallas import tpu as pltpu


LANE = 128


def _round_up(n, m):
    return ((n + m - 1) // m) * m


# ----------------------------- Pallas kernel ------------------------------ #
def _make_kernel(hidden_dim, h2_dim, c_pad):
    """Builds the fused VAE forward kernel.

    hidden_dim / h2_dim are the TRUE (unpadded) LayerNorm widths; c_pad is the
    lane-padded compressed dim (used to split the fused mu|logvar head).
    """

    def kernel(x_ref, eps_ref,
               w1_ref, b1_ref, g1_ref, be1_ref,
               w2_ref, b2_ref, g2_ref, be2_ref,
               wh_ref, bh_ref,
               w3_ref, b3_ref, g3_ref, be3_ref,
               w4_ref, b4_ref, g4_ref, be4_ref,
               w5_ref, b5_ref,
               rec_ref, mu_ref, logvar_ref):

        def linear(h, w_ref, b_ref):
            # (TB, in_p) @ (in_p, out_p) + (1, out_p); padded rows/cols are 0.
            return jnp.dot(h, w_ref[...],
                           preferred_element_type=jnp.float32) + b_ref[...]

        def layer_norm(h, g_ref, b_ref, n_true):
            # nn.LayerNorm over the TRUE width (biased variance, eps=1e-5).
            # Padded lanes of `h` are exactly zero, so the sum is the true sum;
            # the centered values in padded lanes are masked before the
            # variance so statistics are not contaminated.
            n_pad = h.shape[-1]
            inv_n = 1.0 / float(n_true)
            mean = jnp.sum(h, axis=-1, keepdims=True) * inv_n
            c = h - mean
            if n_pad != n_true:
                col = jax.lax.broadcasted_iota(jnp.int32, h.shape, 1)
                c = jnp.where(col < n_true, c, 0.0)
            var = jnp.sum(c * c, axis=-1, keepdims=True) * inv_n
            # gamma/beta are zero in padded lanes -> padded output stays zero.
            return c * jax.lax.rsqrt(var + 1e-5) * g_ref[...] + b_ref[...]

        def leaky_relu(h):
            return jnp.where(h > 0, h, 0.2 * h)

        x = x_ref[...]

        # ----- encoder -----
        h = leaky_relu(layer_norm(linear(x, w1_ref, b1_ref),
                                  g1_ref, be1_ref, hidden_dim))
        h = leaky_relu(layer_norm(linear(h, w2_ref, b2_ref),
                                  g2_ref, be2_ref, h2_dim))

        # ----- fused mu | logvar head (one MXU pass, split on lane boundary) -
        head = linear(h, wh_ref, bh_ref)          # (TB, 2*c_pad)
        mu = head[:, :c_pad]
        logvar = head[:, c_pad:]

        # ----- reparameterize: z = mu + eps * exp(0.5 * logvar) -----
        # (padded lanes: mu=0, logvar=0, eps=0 -> z padded lanes are exactly 0)
        z = mu + eps_ref[...] * jnp.exp(0.5 * logvar)

        # ----- decoder -----
        d = leaky_relu(layer_norm(linear(z, w3_ref, b3_ref),
                                  g3_ref, be3_ref, h2_dim))
        d = leaky_relu(layer_norm(linear(d, w4_ref, b4_ref),
                                  g4_ref, be4_ref, hidden_dim))
        rec = linear(d, w5_ref, b5_ref)

        rec_ref[...] = rec.astype(rec_ref.dtype)
        mu_ref[...] = mu.astype(mu_ref.dtype)
        logvar_ref[...] = logvar.astype(logvar_ref.dtype)

    return kernel


# --------------------------- parameter packing ----------------------------- #
def pack_params(params, input_dim, compressed_dim, hidden_dim):
    """Zero-pads all feature dims to the 128-lane width and fuses the
    mu/logvar head weights. Done once, outside the hot path."""
    (w1, b1, g1, be1, w2, b2, g2, be2,
     wmu, bmu, wlv, blv,
     w3, b3, g3, be3, w4, b4, g4, be4, w5, b5) = params

    h2 = hidden_dim // 2
    Dp = _round_up(input_dim, LANE)
    Hp = _round_up(hidden_dim, LANE)
    H2p = _round_up(h2, LANE)
    Cp = _round_up(compressed_dim, LANE)

    def pad2(w, r, c):
        return jnp.pad(w, ((0, r - w.shape[0]), (0, c - w.shape[1])))

    def pad_row(v, c):
        return jnp.pad(v, ((0, 0), (0, c - v.shape[1])))

    # Fused head: (H2p, 2*Cp) weight, (1, 2*Cp) bias.
    w_head = jnp.concatenate([pad2(wmu, H2p, Cp), pad2(wlv, H2p, Cp)], axis=1)
    b_head = jnp.concatenate([pad_row(bmu, Cp), pad_row(blv, Cp)], axis=1)

    packed = (
        pad2(w1, Dp, Hp), pad_row(b1, Hp), pad_row(g1, Hp), pad_row(be1, Hp),
        pad2(w2, Hp, H2p), pad_row(b2, H2p), pad_row(g2, H2p), pad_row(be2, H2p),
        w_head, b_head,
        pad2(w3, Cp, H2p), pad_row(b3, H2p), pad_row(g3, H2p), pad_row(be3, H2p),
        pad2(w4, H2p, Hp), pad_row(b4, Hp), pad_row(g4, Hp), pad_row(be4, Hp),
        pad2(w5, Hp, Dp), pad_row(b5, Dp),
    )
    dims = dict(input_dim=input_dim, compressed_dim=compressed_dim,
                hidden_dim=hidden_dim, Dp=Dp, Hp=Hp, H2p=H2p, Cp=Cp)
    return packed, dims


# ------------------------------ wrapper ----------------------------------- #
def vae_forward(x, eps, packed_params, dims, *, tb=256):
    """Runs the full VAE forward pass in one batch-gridded Pallas kernel.

    x:   (B, input_dim) float32
    eps: (B, compressed_dim) float32 standard-normal noise (torch.randn_like)
    Returns (reconstructed, mu, logvar) at the true (unpadded) shapes.
    """
    B, input_dim = x.shape
    compressed_dim = eps.shape[1]
    hidden_dim = dims["hidden_dim"]
    h2 = hidden_dim // 2
    Dp, Hp, H2p, Cp = dims["Dp"], dims["Hp"], dims["H2p"], dims["Cp"]

    # Batch tile: at most `tb` rows, at least an 8-sublane tile, never larger
    # than the (8-padded) batch so small batches run in a single grid step.
    tb = max(8, min(tb, _round_up(B, 8)))
    Bp = _round_up(B, tb)
    nb = Bp // tb

    x_p = jnp.pad(x, ((0, Bp - B), (0, Dp - input_dim)))
    eps_p = jnp.pad(eps, ((0, Bp - B), (0, Cp - compressed_dim)))

    # Activation tiles march over the batch; params are resident (const index).
    act_in_specs = [
        pl.BlockSpec((tb, Dp), lambda i: (i, 0)),
        pl.BlockSpec((tb, Cp), lambda i: (i, 0)),
    ]
    w_specs = [pl.BlockSpec(p.shape, lambda i: (0, 0)) for p in packed_params]

    out_shapes = (
        jax.ShapeDtypeStruct((Bp, Dp), jnp.float32),   # reconstructed
        jax.ShapeDtypeStruct((Bp, Cp), jnp.float32),   # mu
        jax.ShapeDtypeStruct((Bp, Cp), jnp.float32),   # logvar
    )
    out_specs = (
        pl.BlockSpec((tb, Dp), lambda i: (i, 0)),
        pl.BlockSpec((tb, Cp), lambda i: (i, 0)),
        pl.BlockSpec((tb, Cp), lambda i: (i, 0)),
    )

    # Advisory cost estimate so XLA can schedule/overlap this call.
    flops = 2 * Bp * (Dp * Hp + Hp * H2p + H2p * 2 * Cp
                      + Cp * H2p + H2p * Hp + Hp * Dp)
    param_bytes = sum(int(p.size) * p.dtype.itemsize for p in packed_params)
    bytes_accessed = ((int(x_p.size) + int(eps_p.size)) * 4 + param_bytes
                      + (Bp * Dp + 2 * Bp * Cp) * 4)
    transcendentals = Bp * (Cp + 4)   # exp for reparam + 4 rsqrt per row

    kernel = _make_kernel(hidden_dim, h2, Cp)

    rec, mu, logvar = pl.pallas_call(
        kernel,
        out_shape=out_shapes,
        grid=(nb,),
        in_specs=act_in_specs + w_specs,
        out_specs=out_specs,
        compiler_params=pltpu.CompilerParams(
            dimension_semantics=("parallel",),       # v7x: 2 TCs share the batch
            vmem_limit_bytes=32 * 1024 * 1024,       # safe on v5e/v6e/v7x
        ),
        cost_estimate=pl.CostEstimate(
            flops=flops,
            transcendentals=transcendentals,
            bytes_accessed=bytes_accessed,
        ),
    )(x_p, eps_p, *packed_params)

    return (rec[:B, :input_dim],
            mu[:B, :compressed_dim],
            logvar[:B, :compressed_dim])


# --------------------------- parameter init -------------------------------- #
def _xavier_normal(key, fan_in, fan_out, gain=0.7):
    std = gain * jnp.sqrt(2.0 / (fan_in + fan_out))
    # Stored as (in, out); forward computes h @ W (== PyTorch x @ W.T).
    return std * jax.random.normal(key, (fan_in, fan_out), dtype=jnp.float32)


def init_params(key, input_dim, compressed_dim, hidden_dim):
    h2 = hidden_dim // 2
    keys = jax.random.split(key, 7)

    def zeros_row(n):
        return jnp.zeros((1, n), dtype=jnp.float32)

    def ones_row(n):
        return jnp.ones((1, n), dtype=jnp.float32)

    params = (
        # encoder: Linear(input_dim, hidden) + LN(hidden)
        _xavier_normal(keys[0], input_dim, hidden_dim), zeros_row(hidden_dim),
        ones_row(hidden_dim), zeros_row(hidden_dim),
        # encoder: Linear(hidden, hidden//2) + LN(hidden//2)
        _xavier_normal(keys[1], hidden_dim, h2), zeros_row(h2),
        ones_row(h2), zeros_row(h2),
        # fc_mu, fc_logvar
        _xavier_normal(keys[2], h2, compressed_dim), zeros_row(compressed_dim),
        _xavier_normal(keys[3], h2, compressed_dim), zeros_row(compressed_dim),
        # decoder: Linear(compressed, hidden//2) + LN(hidden//2)
        _xavier_normal(keys[4], compressed_dim, h2), zeros_row(h2),
        ones_row(h2), zeros_row(h2),
        # decoder: Linear(hidden//2, hidden) + LN(hidden)
        _xavier_normal(keys[5], h2, hidden_dim), zeros_row(hidden_dim),
        ones_row(hidden_dim), zeros_row(hidden_dim),
        # decoder: Linear(hidden, input_dim)
        _xavier_normal(keys[6], hidden_dim, input_dim), zeros_row(input_dim),
    )
    return params


# ---------------------------- reference (JAX) ------------------------------ #
def vae_forward_ref(x, eps, params):
    (w1, b1, g1, be1, w2, b2, g2, be2,
     wmu, bmu, wlv, blv,
     w3, b3, g3, be3, w4, b4, g4, be4, w5, b5) = params

    def ln(h, g, b):
        m = jnp.mean(h, axis=-1, keepdims=True)
        v = jnp.mean((h - m) ** 2, axis=-1, keepdims=True)
        return (h - m) / jnp.sqrt(v + 1e-5) * g + b

    def lrelu(h):
        return jnp.where(h > 0, h, 0.2 * h)

    h = lrelu(ln(x @ w1 + b1, g1, be1))
    h = lrelu(ln(h @ w2 + b2, g2, be2))
    mu = h @ wmu + bmu
    logvar = h @ wlv + blv
    z = mu + eps * jnp.exp(0.5 * logvar)
    d = lrelu(ln(z @ w3 + b3, g3, be3))
    d = lrelu(ln(d @ w4 + b4, g4, be4))
    rec = d @ w5 + b5
    return rec, mu, logvar


# --------------------------------- main ------------------------------------ #
if __name__ == "__main__":
    # Shapes consistent with the module's semantics (hidden = min(1024, 2*in)).
    batch = 200            # padded to 256 internally -> 2 grid steps of 128
    input_dim = 32
    compressed_dim = 16
    hidden_dim = min(1024, input_dim * 2)   # = 64

    key = jax.random.PRNGKey(0)
    k_params, k_x, k_eps = jax.random.split(key, 3)

    params = init_params(k_params, input_dim, compressed_dim, hidden_dim)
    x = jax.random.normal(k_x, (batch, input_dim), dtype=jnp.float32)
    # Reparameterization noise (torch.randn_like equivalent), drawn outside
    # the kernel for determinism.
    eps = jax.random.normal(k_eps, (batch, compressed_dim), dtype=jnp.float32)

    packed, dims = pack_params(params, input_dim, compressed_dim, hidden_dim)

    # tb=128 here so the small example still exercises >1 pipelined grid step.
    rec, mu, logvar = vae_forward(x, eps, packed, dims, tb=128)
    jax.block_until_ready((rec, mu, logvar))

    # Correctness check vs pure-JAX reference on the original (unpadded) params.
    rec_r, mu_r, lv_r = vae_forward_ref(x, eps, params)
    assert jnp.allclose(rec, rec_r, atol=1e-4, rtol=1e-4)
    assert jnp.allclose(mu, mu_r, atol=1e-4, rtol=1e-4)
    assert jnp.allclose(logvar, lv_r, atol=1e-4, rtol=1e-4)

    print("KERNEL_OK")
</pallas_src>

<mosaic_0001>
module attributes {stable_mosaic.version = 11 : i64} {
  func.func @kernel(%arg0: i32, %arg1: memref<128x128xf32, #tpu.memory_space<vmem>>, %arg2: memref<128x128xf32, #tpu.memory_space<vmem>>, %arg3: memref<128x128xf32, #tpu.memory_space<vmem>>, %arg4: memref<1x128xf32, #tpu.memory_space<vmem>>, %arg5: memref<1x128xf32, #tpu.memory_space<vmem>>, %arg6: memref<1x128xf32, #tpu.memory_space<vmem>>, %arg7: memref<128x128xf32, #tpu.memory_space<vmem>>, %arg8: memref<1x128xf32, #tpu.memory_space<vmem>>, %arg9: memref<1x128xf32, #tpu.memory_space<vmem>>, %arg10: memref<1x128xf32, #tpu.memory_space<vmem>>, %arg11: memref<128x256xf32, #tpu.memory_space<vmem>>, %arg12: memref<1x256xf32, #tpu.memory_space<vmem>>, %arg13: memref<128x128xf32, #tpu.memory_space<vmem>>, %arg14: memref<1x128xf32, #tpu.memory_space<vmem>>, %arg15: memref<1x128xf32, #tpu.memory_space<vmem>>, %arg16: memref<1x128xf32, #tpu.memory_space<vmem>>, %arg17: memref<128x128xf32, #tpu.memory_space<vmem>>, %arg18: memref<1x128xf32, #tpu.memory_space<vmem>>, %arg19: memref<1x128xf32, #tpu.memory_space<vmem>>, %arg20: memref<1x128xf32, #tpu.memory_space<vmem>>, %arg21: memref<128x128xf32, #tpu.memory_space<vmem>>, %arg22: memref<1x128xf32, #tpu.memory_space<vmem>>, %arg23: memref<128x128xf32, #tpu.memory_space<vmem>>, %arg24: memref<128x128xf32, #tpu.memory_space<vmem>>, %arg25: memref<128x128xf32, #tpu.memory_space<vmem>>) attributes {dimension_semantics = [#tpu.dimension_semantics<parallel>], iteration_bounds = array<i64: 2>, scalar_prefetch = 0 : i64, scratch_operands = 0 : i64, tpu.core_type = #tpu.core_type<tc>, window_params = [{transform_indices = @transform_0, window_bounds = array<i64: 128, 128>}, {transform_indices = @transform_1, window_bounds = array<i64: 128, 128>}, {pipeline_mode = #tpu.pipeline_mode<synchronous>, transform_indices = @transform_2, window_bounds = array<i64: 128, 128>}, {pipeline_mode = #tpu.pipeline_mode<synchronous>, transform_indices = @transform_3, window_bounds = array<i64: 1, 128>}, {pipeline_mode = #tpu.pipeline_mode<synchronous>, transform_indices = @transform_4, window_bounds = array<i64: 1, 128>}, {pipeline_mode = #tpu.pipeline_mode<synchronous>, transform_indices = @transform_5, window_bounds = array<i64: 1, 128>}, {pipeline_mode = #tpu.pipeline_mode<synchronous>, transform_indices = @transform_6, window_bounds = array<i64: 128, 128>}, {pipeline_mode = #tpu.pipeline_mode<synchronous>, transform_indices = @transform_7, window_bounds = array<i64: 1, 128>}, {pipeline_mode = #tpu.pipeline_mode<synchronous>, transform_indices = @transform_8, window_bounds = array<i64: 1, 128>}, {pipeline_mode = #tpu.pipeline_mode<synchronous>, transform_indices = @transform_9, window_bounds = array<i64: 1, 128>}, {pipeline_mode = #tpu.pipeline_mode<synchronous>, transform_indices = @transform_10, window_bounds = array<i64: 128, 256>}, {pipeline_mode = #tpu.pipeline_mode<synchronous>, transform_indices = @transform_11, window_bounds = array<i64: 1, 256>}, {pipeline_mode = #tpu.pipeline_mode<synchronous>, transform_indices = @transform_12, window_bounds = array<i64: 128, 128>}, {pipeline_mode = #tpu.pipeline_mode<synchronous>, transform_indices = @transform_13, window_bounds = array<i64: 1, 128>}, {pipeline_mode = #tpu.pipeline_mode<synchronous>, transform_indices = @transform_14, window_bounds = array<i64: 1, 128>}, {pipeline_mode = #tpu.pipeline_mode<synchronous>, transform_indices = @transform_15, window_bounds = array<i64: 1, 128>}, {pipeline_mode = #tpu.pipeline_mode<synchronous>, transform_indices = @transform_16, window_bounds = array<i64: 128, 128>}, {pipeline_mode = #tpu.pipeline_mode<synchronous>, transform_indices = @transform_17, window_bounds = array<i64: 1, 128>}, {pipeline_mode = #tpu.pipeline_mode<synchronous>, transform_indices = @transform_18, window_bounds = array<i64: 1, 128>}, {pipeline_mode = #tpu.pipeline_mode<synchronous>, transform_indices = @transform_19, window_bounds = array<i64: 1, 128>}, {pipeline_mode = #tpu.pipeline_mode<synchronous>, transform_indices = @transform_20, window_bounds = array<i64: 128, 128>}, {pipeline_mode = #tpu.pipeline_mode<synchronous>, transform_indices = @transform_21, window_bounds = array<i64: 1, 128>}, {transform_indices = @transform_22, window_bounds = array<i64: 128, 128>}, {transform_indices = @transform_23, window_bounds = array<i64: 128, 128>}, {transform_indices = @transform_24, window_bounds = array<i64: 128, 128>}]} {
    %c0 = arith.constant 0 : index
    %c0_0 = arith.constant 0 : index
    %0 = vector.load %arg1[%c0, %c0_0] : memref<128x128xf32, #tpu.memory_space<vmem>>, vector<128x128xf32>
    %c0_1 = arith.constant 0 : index
    %c0_2 = arith.constant 0 : index
    %1 = vector.load %arg3[%c0_1, %c0_2] : memref<128x128xf32, #tpu.memory_space<vmem>>, vector<128x128xf32>
    %cst = arith.constant dense<0.000000e+00> : vector<128x128xf32>
    %2 = tpu.matmul %0, %1, %cst {dimension_numbers = #tpu.dot_dimension_numbers<[1], [0], [0], [1], [0, 0, 1, 1], [], []>} : vector<128x128xf32>, vector<128x128xf32>, vector<128x128xf32> -> vector<128x128xf32>
    %c0_3 = arith.constant 0 : index
    %c0_4 = arith.constant 0 : index
    %3 = vector.load %arg4[%c0_3, %c0_4] : memref<1x128xf32, #tpu.memory_space<vmem>>, vector<1x128xf32>
    %4 = vector.broadcast %3 : vector<1x128xf32> to vector<128x128xf32>
    %5 = arith.addf %2, %4 : vector<128x128xf32>
    %cst_5 = arith.constant dense<0.000000e+00> : vector<128xf32>
    %6 = vector.multi_reduction <add>, %5, %cst_5 [1] : vector<128x128xf32> to vector<128xf32>
    %7 = vector.shape_cast %6 : vector<128xf32> to vector<128x1xf32>
    %cst_6 = arith.constant 1.562500e-02 : f32
    %8 = vector.broadcast %cst_6 : f32 to vector<128x1xf32>
    %9 = arith.mulf %7, %8 : vector<128x1xf32>
    %10 = vector.broadcast %9 : vector<128x1xf32> to vector<128x128xf32>
    %11 = arith.subf %5, %10 : vector<128x128xf32>
    %12 = tpu.iota {dimensions = array<i32: 1>} : vector<128x128xi32>
    %c64_i32 = arith.constant 64 : i32
    %13 = vector.broadcast %c64_i32 : i32 to vector<128x128xi32>
    %14 = arith.cmpi slt, %12, %13 : vector<128x128xi32>
    %cst_7 = arith.constant 0.000000e+00 : f32
    %15 = vector.broadcast %cst_7 : f32 to vector<128x128xf32>
    %16 = arith.select %14, %11, %15 : vector<128x128xi1>, vector<128x128xf32>
    %17 = arith.mulf %16, %16 : vector<128x128xf32>
    %cst_8 = arith.constant dense<0.000000e+00> : vector<128xf32>
    %18 = vector.multi_reduction <add>, %17, %cst_8 [1] : vector<128x128xf32> to vector<128xf32>
    %19 = vector.shape_cast %18 : vector<128xf32> to vector<128x1xf32>
    %cst_9 = arith.constant 1.562500e-02 : f32
    %20 = vector.broadcast %cst_9 : f32 to vector<128x1xf32>
    %21 = arith.mulf %19, %20 : vector<128x1xf32>
    %cst_10 = arith.constant 9.99999974E-6 : f32
    %22 = vector.broadcast %cst_10 : f32 to vector<128x1xf32>
    %23 = arith.addf %21, %22 : vector<128x1xf32>
    %24 = math.rsqrt %23 : vector<128x1xf32>
    %25 = vector.broadcast %24 : vector<128x1xf32> to vector<128x128xf32>
    %26 = arith.mulf %16, %25 : vector<128x128xf32>
    %c0_11 = arith.constant 0 : index
    %c0_12 = arith.constant 0 : index
    %27 = vector.load %arg5[%c0_11, %c0_12] : memref<1x128xf32, #tpu.memory_space<vmem>>, vector<1x128xf32>
    %28 = vector.broadcast %27 : vector<1x128xf32> to vector<128x128xf32>
    %29 = arith.mulf %26, %28 : vector<128x128xf32>
    %c0_13 = arith.constant 0 : index
    %c0_14 = arith.constant 0 : index
    %30 = vector.load %arg6[%c0_13, %c0_14] : memref<1x128xf32, #tpu.memory_space<vmem>>, vector<1x128xf32>
    %31 = vector.broadcast %30 : vector<1x128xf32> to vector<128x128xf32>
    %32 = arith.addf %29, %31 : vector<128x128xf32>
    %cst_15 = arith.constant 0.000000e+00 : f32
    %33 = vector.broadcast %cst_15 : f32 to vector<128x128xf32>
    %34 = arith.cmpf ogt, %32, %33 : vector<128x128xf32>
    %cst_16 = arith.constant 2.000000e-01 : f32
    %35 = vector.broadcast %cst_16 : f32 to vector<128x128xf32>
    %36 = arith.mulf %35, %32 : vector<128x128xf32>
    %37 = arith.select %34, %32, %36 : vector<128x128xi1>, vector<128x128xf32>
    %c0_17 = arith.constant 0 : index
    %c0_18 = arith.constant 0 : index
    %38 = vector.load %arg7[%c0_17, %c0_18] : memref<128x128xf32, #tpu.memory_space<vmem>>, vector<128x128xf32>
    %cst_19 = arith.constant dense<0.000000e+00> : vector<128x128xf32>
    %39 = tpu.matmul %37, %38, %cst_19 {dimension_numbers = #tpu.dot_dimension_numbers<[1], [0], [0], [1], [0, 0, 1, 1], [], []>} : vector<128x128xf32>, vector<128x128xf32>, vector<128x128xf32> -> vector<128x128xf32>
    %c0_20 = arith.constant 0 : index
    %c0_21 = arith.constant 0 : index
    %40 = vector.load %arg8[%c0_20, %c0_21] : memref<1x128xf32, #tpu.memory_space<vmem>>, vector<1x128xf32>
    %41 = vector.broadcast %40 : vector<1x128xf32> to vector<128x128xf32>
    %42 = arith.addf %39, %41 : vector<128x128xf32>
    %cst_22 = arith.constant dense<0.000000e+00> : vector<128xf32>
    %43 = vector.multi_reduction <add>, %42, %cst_22 [1] : vector<128x128xf32> to vector<128xf32>
    %44 = vector.shape_cast %43 : vector<128xf32> to vector<128x1xf32>
    %cst_23 = arith.constant 3.125000e-02 : f32
    %45 = vector.broadcast %cst_23 : f32 to vector<128x1xf32>
    %46 = arith.mulf %44, %45 : vector<128x1xf32>
    %47 = vector.broadcast %46 : vector<128x1xf32> to vector<128x128xf32>
    %48 = arith.subf %42, %47 : vector<128x128xf32>
    %49 = tpu.iota {dimensions = array<i32: 1>} : vector<128x128xi32>
    %c32_i32 = arith.constant 32 : i32
    %50 = vector.broadcast %c32_i32 : i32 to vector<128x128xi32>
    %51 = arith.cmpi slt, %49, %50 : vector<128x128xi32>
    %cst_24 = arith.constant 0.000000e+00 : f32
    %52 = vector.broadcast %cst_24 : f32 to vector<128x128xf32>
    %53 = arith.select %51, %48, %52 : vector<128x128xi1>, vector<128x128xf32>
    %54 = arith.mulf %53, %53 : vector<128x128xf32>
    %cst_25 = arith.constant dense<0.000000e+00> : vector<128xf32>
    %55 = vector.multi_reduction <add>, %54, %cst_25 [1] : vector<128x128xf32> to vector<128xf32>
    %56 = vector.shape_cast %55 : vector<128xf32> to vector<128x1xf32>
    %cst_26 = arith.constant 3.125000e-02 : f32
    %57 = vector.broadcast %cst_26 : f32 to vector<128x1xf32>
    %58 = arith.mulf %56, %57 : vector<128x1xf32>
    %cst_27 = arith.constant 9.99999974E-6 : f32
    %59 = vector.broadcast %cst_27 : f32 to vector<128x1xf32>
    %60 = arith.addf %58, %59 : vector<128x1xf32>
    %61 = math.rsqrt %60 : vector<128x1xf32>
    %62 = vector.broadcast %61 : vector<128x1xf32> to vector<128x128xf32>
    %63 = arith.mulf %53, %62 : vector<128x128xf32>
    %c0_28 = arith.constant 0 : index
    %c0_29 = arith.constant 0 : index
    %64 = vector.load %arg9[%c0_28, %c0_29] : memref<1x128xf32, #tpu.memory_space<vmem>>, vector<1x128xf32>
    %65 = vector.broadcast %64 : vector<1x128xf32> to vector<128x128xf32>
    %66 = arith.mulf %63, %65 : vector<128x128xf32>
    %c0_30 = arith.constant 0 : index
    %c0_31 = arith.constant 0 : index
    %67 = vector.load %arg10[%c0_30, %c0_31] : memref<1x128xf32, #tpu.memory_space<vmem>>, vector<1x128xf32>
    %68 = vector.broadcast %67 : vector<1x128xf32> to vector<128x128xf32>
    %69 = arith.addf %66, %68 : vector<128x128xf32>
    %cst_32 = arith.constant 0.000000e+00 : f32
    %70 = vector.broadcast %cst_32 : f32 to vector<128x128xf32>
    %71 = arith.cmpf ogt, %69, %70 : vector<128x128xf32>
    %cst_33 = arith.constant 2.000000e-01 : f32
    %72 = vector.broadcast %cst_33 : f32 to vector<128x128xf32>
    %73 = arith.mulf %72, %69 : vector<128x128xf32>
    %74 = arith.select %71, %69, %73 : vector<128x128xi1>, vector<128x128xf32>
    %c0_34 = arith.constant 0 : index
    %c0_35 = arith.constant 0 : index
    %75 = vector.load %arg11[%c0_34, %c0_35] : memref<128x256xf32, #tpu.memory_space<vmem>>, vector<128x256xf32>
    %cst_36 = arith.constant dense<0.000000e+00> : vector<128x256xf32>
    %76 = tpu.matmul %74, %75, %cst_36 {dimension_numbers = #tpu.dot_dimension_numbers<[1], [0], [0], [1], [0, 0, 1, 1], [], []>} : vector<128x128xf32>, vector<128x256xf32>, vector<128x256xf32> -> vector<128x256xf32>
    %c0_37 = arith.constant 0 : index
    %c0_38 = arith.constant 0 : index
    %77 = vector.load %arg12[%c0_37, %c0_38] : memref<1x256xf32, #tpu.memory_space<vmem>>, vector<1x256xf32>
    %78 = vector.broadcast %77 : vector<1x256xf32> to vector<128x256xf32>
    %79 = arith.addf %76, %78 : vector<128x256xf32>
    %80 = vector.extract_strided_slice %79 {offsets = [0, 0], sizes = [128, 128], strides = [1, 1]} : vector<128x256xf32> to vector<128x128xf32>
    %81 = vector.extract_strided_slice %79 {offsets = [0, 128], sizes = [128, 128], strides = [1, 1]} : vector<128x256xf32> to vector<128x128xf32>
    %c0_39 = arith.constant 0 : index
    %c0_40 = arith.constant 0 : index
    %82 = vector.load %arg2[%c0_39, %c0_40] : memref<128x128xf32, #tpu.memory_space<vmem>>, vector<128x128xf32>
    %cst_41 = arith.constant 5.000000e-01 : f32
    %83 = vector.broadcast %cst_41 : f32 to vector<128x128xf32>
    %84 = arith.mulf %83, %81 : vector<128x128xf32>
    %85 = math.exp %84 : vector<128x128xf32>
    %86 = arith.mulf %82, %85 : vector<128x128xf32>
    %87 = arith.addf %80, %86 : vector<128x128xf32>
    %c0_42 = arith.constant 0 : index
    %c0_43 = arith.constant 0 : index
    %88 = vector.load %arg13[%c0_42, %c0_43] : memref<128x128xf32, #tpu.memory_space<vmem>>, vector<128x128xf32>
    %cst_44 = arith.constant dense<0.000000e+00> : vector<128x128xf32>
    %89 = tpu.matmul %87, %88, %cst_44 {dimension_numbers = #tpu.dot_dimension_numbers<[1], [0], [0], [1], [0, 0, 1, 1], [], []>} : vector<128x128xf32>, vector<128x128xf32>, vector<128x128xf32> -> vector<128x128xf32>
    %c0_45 = arith.constant 0 : index
    %c0_46 = arith.constant 0 : index
    %90 = vector.load %arg14[%c0_45, %c0_46] : memref<1x128xf32, #tpu.memory_space<vmem>>, vector<1x128xf32>
    %91 = vector.broadcast %90 : vector<1x128xf32> to vector<128x128xf32>
    %92 = arith.addf %89, %91 : vector<128x128xf32>
    %cst_47 = arith.constant dense<0.000000e+00> : vector<128xf32>
    %93 = vector.multi_reduction <add>, %92, %cst_47 [1] : vector<128x128xf32> to vector<128xf32>
    %94 = vector.shape_cast %93 : vector<128xf32> to vector<128x1xf32>
    %cst_48 = arith.constant 3.125000e-02 : f32
    %95 = vector.broadcast %cst_48 : f32 to vector<128x1xf32>
    %96 = arith.mulf %94, %95 : vector<128x1xf32>
    %97 = vector.broadcast %96 : vector<128x1xf32> to vector<128x128xf32>
    %98 = arith.subf %92, %97 : vector<128x128xf32>
    %99 = tpu.iota {dimensions = array<i32: 1>} : vector<128x128xi32>
    %c32_i32_49 = arith.constant 32 : i32
    %100 = vector.broadcast %c32_i32_49 : i32 to vector<128x128xi32>
    %101 = arith.cmpi slt, %99, %100 : vector<128x128xi32>
    %cst_50 = arith.constant 0.000000e+00 : f32
    %102 = vector.broadcast %cst_50 : f32 to vector<128x128xf32>
    %103 = arith.select %101, %98, %102 : vector<128x128xi1>, vector<128x128xf32>
    %104 = arith.mulf %103, %103 : vector<128x128xf32>
    %cst_51 = arith.constant dense<0.000000e+00> : vector<128xf32>
    %105 = vector.multi_reduction <add>, %104, %cst_51 [1] : vector<128x128xf32> to vector<128xf32>
    %106 = vector.shape_cast %105 : vector<128xf32> to vector<128x1xf32>
    %cst_52 = arith.constant 3.125000e-02 : f32
    %107 = vector.broadcast %cst_52 : f32 to vector<128x1xf32>
    %108 = arith.mulf %106, %107 : vector<128x1xf32>
    %cst_53 = arith.constant 9.99999974E-6 : f32
    %109 = vector.broadcast %cst_53 : f32 to vector<128x1xf32>
    %110 = arith.addf %108, %109 : vector<128x1xf32>
    %111 = math.rsqrt %110 : vector<128x1xf32>
    %112 = vector.broadcast %111 : vector<128x1xf32> to vector<128x128xf32>
    %113 = arith.mulf %103, %112 : vector<128x128xf32>
    %c0_54 = arith.constant 0 : index
    %c0_55 = arith.constant 0 : index
    %114 = vector.load %arg15[%c0_54, %c0_55] : memref<1x128xf32, #tpu.memory_space<vmem>>, vector<1x128xf32>
    %115 = vector.broadcast %114 : vector<1x128xf32> to vector<128x128xf32>
    %116 = arith.mulf %113, %115 : vector<128x128xf32>
    %c0_56 = arith.constant 0 : index
    %c0_57 = arith.constant 0 : index
    %117 = vector.load %arg16[%c0_56, %c0_57] : memref<1x128xf32, #tpu.memory_space<vmem>>, vector<1x128xf32>
    %118 = vector.broadcast %117 : vector<1x128xf32> to vector<128x128xf32>
    %119 = arith.addf %116, %118 : vector<128x128xf32>
    %cst_58 = arith.constant 0.000000e+00 : f32
    %120 = vector.broadcast %cst_58 : f32 to vector<128x128xf32>
    %121 = arith.cmpf ogt, %119, %120 : vector<128x128xf32>
    %cst_59 = arith.constant 2.000000e-01 : f32
    %122 = vector.broadcast %cst_59 : f32 to vector<128x128xf32>
    %123 = arith.mulf %122, %119 : vector<128x128xf32>
    %124 = arith.select %121, %119, %123 : vector<128x128xi1>, vector<128x128xf32>
    %c0_60 = arith.constant 0 : index
    %c0_61 = arith.constant 0 : index
    %125 = vector.load %arg17[%c0_60, %c0_61] : memref<128x128xf32, #tpu.memory_space<vmem>>, vector<128x128xf32>
    %cst_62 = arith.constant dense<0.000000e+00> : vector<128x128xf32>
    %126 = tpu.matmul %124, %125, %cst_62 {dimension_numbers = #tpu.dot_dimension_numbers<[1], [0], [0], [1], [0, 0, 1, 1], [], []>} : vector<128x128xf32>, vector<128x128xf32>, vector<128x128xf32> -> vector<128x128xf32>
    %c0_63 = arith.constant 0 : index
    %c0_64 = arith.constant 0 : index
    %127 = vector.load %arg18[%c0_63, %c0_64] : memref<1x128xf32, #tpu.memory_space<vmem>>, vector<1x128xf32>
    %128 = vector.broadcast %127 : vector<1x128xf32> to vector<128x128xf32>
    %129 = arith.addf %126, %128 : vector<128x128xf32>
    %cst_65 = arith.constant dense<0.000000e+00> : vector<128xf32>
    %130 = vector.multi_reduction <add>, %129, %cst_65 [1] : vector<128x128xf32> to vector<128xf32>
    %131 = vector.shape_cast %130 : vector<128xf32> to vector<128x1xf32>
    %cst_66 = arith.constant 1.562500e-02 : f32
    %132 = vector.broadcast %cst_66 : f32 to vector<128x1xf32>
    %133 = arith.mulf %131, %132 : vector<128x1xf32>
    %134 = vector.broadcast %133 : vector<128x1xf32> to vector<128x128xf32>
    %135 = arith.subf %129, %134 : vector<128x128xf32>
    %136 = tpu.iota {dimensions = array<i32: 1>} : vector<128x128xi32>
    %c64_i32_67 = arith.constant 64 : i32
    %137 = vector.broadcast %c64_i32_67 : i32 to vector<128x128xi32>
    %138 = arith.cmpi slt, %136, %137 : vector<128x128xi32>
    %cst_68 = arith.constant 0.000000e+00 : f32
    %139 = vector.broadcast %cst_68 : f32 to vector<128x128xf32>
    %140 = arith.select %138, %135, %139 : vector<128x128xi1>, vector<128x128xf32>
    %141 = arith.mulf %140, %140 : vector<128x128xf32>
    %cst_69 = arith.constant dense<0.000000e+00> : vector<128xf32>
    %142 = vector.multi_reduction <add>, %141, %cst_69 [1] : vector<128x128xf32> to vector<128xf32>
    %143 = vector.shape_cast %142 : vector<128xf32> to vector<128x1xf32>
    %cst_70 = arith.constant 1.562500e-02 : f32
    %144 = vector.broadcast %cst_70 : f32 to vector<128x1xf32>
    %145 = arith.mulf %143, %144 : vector<128x1xf32>
    %cst_71 = arith.constant 9.99999974E-6 : f32
    %146 = vector.broadcast %cst_71 : f32 to vector<128x1xf32>
    %147 = arith.addf %145, %146 : vector<128x1xf32>
    %148 = math.rsqrt %147 : vector<128x1xf32>
    %149 = vector.broadcast %148 : vector<128x1xf32> to vector<128x128xf32>
    %150 = arith.mulf %140, %149 : vector<128x128xf32>
    %c0_72 = arith.constant 0 : index
    %c0_73 = arith.constant 0 : index
    %151 = vector.load %arg19[%c0_72, %c0_73] : memref<1x128xf32, #tpu.memory_space<vmem>>, vector<1x128xf32>
    %152 = vector.broadcast %151 : vector<1x128xf32> to vector<128x128xf32>
    %153 = arith.mulf %150, %152 : vector<128x128xf32>
    %c0_74 = arith.constant 0 : index
    %c0_75 = arith.constant 0 : index
    %154 = vector.load %arg20[%c0_74, %c0_75] : memref<1x128xf32, #tpu.memory_space<vmem>>, vector<1x128xf32>
    %155 = vector.broadcast %154 : vector<1x128xf32> to vector<128x128xf32>
    %156 = arith.addf %153, %155 : vector<128x128xf32>
    %cst_76 = arith.constant 0.000000e+00 : f32
    %157 = vector.broadcast %cst_76 : f32 to vector<128x128xf32>
    %158 = arith.cmpf ogt, %156, %157 : vector<128x128xf32>
    %cst_77 = arith.constant 2.000000e-01 : f32
    %159 = vector.broadcast %cst_77 : f32 to vector<128x128xf32>
    %160 = arith.mulf %159, %156 : vector<128x128xf32>
    %161 = arith.select %158, %156, %160 : vector<128x128xi1>, vector<128x128xf32>
    %c0_78 = arith.constant 0 : index
    %c0_79 = arith.constant 0 : index
    %162 = vector.load %arg21[%c0_78, %c0_79] : memref<128x128xf32, #tpu.memory_space<vmem>>, vector<128x128xf32>
    %cst_80 = arith.constant dense<0.000000e+00> : vector<128x128xf32>
    %163 = tpu.matmul %161, %162, %cst_80 {dimension_numbers = #tpu.dot_dimension_numbers<[1], [0], [0], [1], [0, 0, 1, 1], [], []>} : vector<128x128xf32>, vector<128x128xf32>, vector<128x128xf32> -> vector<128x128xf32>
    %c0_81 = arith.constant 0 : index
    %c0_82 = arith.constant 0 : index
    %164 = vector.load %arg22[%c0_81, %c0_82] : memref<1x128xf32, #tpu.memory_space<vmem>>, vector<1x128xf32>
    %165 = vector.broadcast %164 : vector<1x128xf32> to vector<128x128xf32>
    %166 = arith.addf %163, %165 : vector<128x128xf32>
    %c0_83 = arith.constant 0 : index
    %c0_84 = arith.constant 0 : index
    %167 = vector.load %arg23[%c0_83, %c0_84] : memref<128x128xf32, #tpu.memory_space<vmem>>, vector<128x128xf32>
    tpu.vector_store %arg23[%c0_83, %c0_84], %166 {strides = array<i32>} : memref<128x128xf32, #tpu.memory_space<vmem>>, vector<128x128xf32>,
    %c0_85 = arith.constant 0 : index
    %c0_86 = arith.constant 0 : index
    %168 = vector.load %arg24[%c0_85, %c0_86] : memref<128x128xf32, #tpu.memory_space<vmem>>, vector<128x128xf32>
    tpu.vector_store %arg24[%c0_85, %c0_86], %80 {strides = array<i32>} : memref<128x128xf32, #tpu.memory_space<vmem>>, vector<128x128xf32>,
    %c0_87 = arith.constant 0 : index
    %c0_88 = arith.constant 0 : index
    %169 = vector.load %arg25[%c0_87, %c0_88] : memref<128x128xf32, #tpu.memory_space<vmem>>, vector<128x128xf32>
    tpu.vector_store %arg25[%c0_87, %c0_88], %81 {strides = array<i32>} : memref<128x128xf32, #tpu.memory_space<vmem>>, vector<128x128xf32>,
    return
  }
  func.func @transform_0(%arg0: i32) -> (i32, i32) {
    %c0_i32 = arith.constant 0 : i32
    %c0_i32_0 = arith.constant 0 : i32
    return %arg0, %c0_i32 : i32, i32
  }
  func.func @transform_1(%arg0: i32) -> (i32, i32) {
    %c0_i32 = arith.constant 0 : i32
    %c0_i32_0 = arith.constant 0 : i32
    return %arg0, %c0_i32 : i32, i32
  }
  func.func @transform_2(%arg0: i32) -> (i32, i32) {
    %c0_i32 = arith.constant 0 : i32
    %c0_i32_0 = arith.constant 0 : i32
    %c0_i32_1 = arith.constant 0 : i32
    return %c0_i32, %c0_i32_0 : i32, i32
  }
  func.func @transform_3(%arg0: i32) -> (i32, i32) {
    %c0_i32 = arith.constant 0 : i32
    %c0_i32_0 = arith.constant 0 : i32
    %c0_i32_1 = arith.constant 0 : i32
    return %c0_i32, %c0_i32_0 : i32, i32
  }
  func.func @transform_4(%arg0: i32) -> (i32, i32) {
    %c0_i32 = arith.constant 0 : i32
    %c0_i32_0 = arith.constant 0 : i32
    %c0_i32_1 = arith.constant 0 : i32
    return %c0_i32, %c0_i32_0 : i32, i32
  }
  func.func @transform_5(%arg0: i32) -> (i32, i32) {
    %c0_i32 = arith.constant 0 : i32
    %c0_i32_0 = arith.constant 0 : i32
    %c0_i32_1 = arith.constant 0 : i32
    return %c0_i32, %c0_i32_0 : i32, i32
  }
  func.func @transform_6(%arg0: i32) -> (i32, i32) {
    %c0_i32 = arith.constant 0 : i32
    %c0_i32_0 = arith.constant 0 : i32
    %c0_i32_1 = arith.constant 0 : i32
    return %c0_i32, %c0_i32_0 : i32, i32
  }
  func.func @transform_7(%arg0: i32) -> (i32, i32) {
    %c0_i32 = arith.constant 0 : i32
    %c0_i32_0 = arith.constant 0 : i32
    %c0_i32_1 = arith.constant 0 : i32
    return %c0_i32, %c0_i32_0 : i32, i32
  }
  func.func @transform_8(%arg0: i32) -> (i32, i32) {
    %c0_i32 = arith.constant 0 : i32
    %c0_i32_0 = arith.constant 0 : i32
    %c0_i32_1 = arith.constant 0 : i32
    return %c0_i32, %c0_i32_0 : i32, i32
  }
  func.func @transform_9(%arg0: i32) -> (i32, i32) {
    %c0_i32 = arith.constant 0 : i32
    %c0_i32_0 = arith.constant 0 : i32
    %c0_i32_1 = arith.constant 0 : i32
    return %c0_i32, %c0_i32_0 : i32, i32
  }
  func.func @transform_10(%arg0: i32) -> (i32, i32) {
    %c0_i32 = arith.constant 0 : i32
    %c0_i32_0 = arith.constant 0 : i32
    %c0_i32_1 = arith.constant 0 : i32
    return %c0_i32, %c0_i32_0 : i32, i32
  }
  func.func @transform_11(%arg0: i32) -> (i32, i32) {
    %c0_i32 = arith.constant 0 : i32
    %c0_i32_0 = arith.constant 0 : i32
    %c0_i32_1 = arith.constant 0 : i32
    return %c0_i32, %c0_i32_0 : i32, i32
  }
  func.func @transform_12(%arg0: i32) -> (i32, i32) {
    %c0_i32 = arith.constant 0 : i32
    %c0_i32_0 = arith.constant 0 : i32
    %c0_i32_1 = arith.constant 0 : i32
    return %c0_i32, %c0_i32_0 : i32, i32
  }
  func.func @transform_13(%arg0: i32) -> (i32, i32) {
    %c0_i32 = arith.constant 0 : i32
    %c0_i32_0 = arith.constant 0 : i32
    %c0_i32_1 = arith.constant 0 : i32
    return %c0_i32, %c0_i32_0 : i32, i32
  }
  func.func @transform_14(%arg0: i32) -> (i32, i32) {
    %c0_i32 = arith.constant 0 : i32
    %c0_i32_0 = arith.constant 0 : i32
    %c0_i32_1 = arith.constant 0 : i32
    return %c0_i32, %c0_i32_0 : i32, i32
  }
  func.func @transform_15(%arg0: i32) -> (i32, i32) {
    %c0_i32 = arith.constant 0 : i32
    %c0_i32_0 = arith.constant 0 : i32
    %c0_i32_1 = arith.constant 0 : i32
    return %c0_i32, %c0_i32_0 : i32, i32
  }
  func.func @transform_16(%arg0: i32) -> (i32, i32) {
    %c0_i32 = arith.constant 0 : i32
    %c0_i32_0 = arith.constant 0 : i32
    %c0_i32_1 = arith.constant 0 : i32
    return %c0_i32, %c0_i32_0 : i32, i32
  }
  func.func @transform_17(%arg0: i32) -> (i32, i32) {
    %c0_i32 = arith.constant 0 : i32
    %c0_i32_0 = arith.constant 0 : i32
    %c0_i32_1 = arith.constant 0 : i32
    return %c0_i32, %c0_i32_0 : i32, i32
  }
  func.func @transform_18(%arg0: i32) -> (i32, i32) {
    %c0_i32 = arith.constant 0 : i32
    %c0_i32_0 = arith.constant 0 : i32
    %c0_i32_1 = arith.constant 0 : i32
    return %c0_i32, %c0_i32_0 : i32, i32
  }
  func.func @transform_19(%arg0: i32) -> (i32, i32) {
    %c0_i32 = arith.constant 0 : i32
    %c0_i32_0 = arith.constant 0 : i32
    %c0_i32_1 = arith.constant 0 : i32
    return %c0_i32, %c0_i32_0 : i32, i32
  }
  func.func @transform_20(%arg0: i32) -> (i32, i32) {
    %c0_i32 = arith.constant 0 : i32
    %c0_i32_0 = arith.constant 0 : i32
    %c0_i32_1 = arith.constant 0 : i32
    return %c0_i32, %c0_i32_0 : i32, i32
  }
  func.func @transform_21(%arg0: i32) -> (i32, i32) {
    %c0_i32 = arith.constant 0 : i32
    %c0_i32_0 = arith.constant 0 : i32
    %c0_i32_1 = arith.constant 0 : i32
    return %c0_i32, %c0_i32_0 : i32, i32
  }
  func.func @transform_22(%arg0: i32) -> (i32, i32) {
    %c0_i32 = arith.constant 0 : i32
    %c0_i32_0 = arith.constant 0 : i32
    return %arg0, %c0_i32 : i32, i32
  }
  func.func @transform_23(%arg0: i32) -> (i32, i32) {
    %c0_i32 = arith.constant 0 : i32
    %c0_i32_0 = arith.constant 0 : i32
    return %arg0, %c0_i32 : i32, i32
  }
  func.func @transform_24(%arg0: i32) -> (i32, i32) {
    %c0_i32 = arith.constant 0 : i32
    %c0_i32_0 = arith.constant 0 : i32
    return %arg0, %c0_i32 : i32, i32
  }
}

</mosaic_0001>

<llo_original>
// kernel: tpu_custom_call.1
$region0: #{tpu_custom_call.1}
  #allocation0 [shape = 'u32[]', space=smem, size = 0x4, offset = 0x4, fixed_abs, tag = 'smem constant byte address 0x4 - core index']
  #allocation1 [shape = 'u32[72,128]{1,0:T(1,128)}', space=vmem, size = 0x9000, scoped, tag = 'internal scratch']
  %s0 = inlined_call_operand.hbm [shape: f32[256,128], index: 0, kind: input, shape index: {}]
  %s1 = inlined_call_operand.hbm [shape: f32[256,128], index: 1, kind: input, shape index: {}]
  %s2 = inlined_call_operand.hbm [shape: f32[128,128], index: 2, kind: input, shape index: {}]
  %s3 = inlined_call_operand.vmem [shape: f32[1,128], index: 3, kind: input, shape index: {}]
  %s4 = inlined_call_operand.hbm [shape: f32[1,128], index: 4, kind: input, shape index: {}]
  %s5 = inlined_call_operand.vmem [shape: f32[1,128], index: 5, kind: input, shape index: {}]
  %s6 = inlined_call_operand.hbm [shape: f32[128,128], index: 6, kind: input, shape index: {}]
  %s7 = inlined_call_operand.vmem [shape: f32[1,128], index: 7, kind: input, shape index: {}]
  %s8 = inlined_call_operand.vmem [shape: f32[1,128], index: 8, kind: input, shape index: {}]
  %s9 = inlined_call_operand.vmem [shape: f32[1,128], index: 9, kind: input, shape index: {}]
  %s10 = inlined_call_operand.hbm [shape: f32[128,256], index: 10, kind: input, shape index: {}]
  %s11 = inlined_call_operand.vmem [shape: f32[1,256], index: 11, kind: input, shape index: {}]
  %s12 = inlined_call_operand.hbm [shape: f32[128,128], index: 12, kind: input, shape index: {}]
  %s13 = inlined_call_operand.vmem [shape: f32[1,128], index: 13, kind: input, shape index: {}]
  %s14 = inlined_call_operand.vmem [shape: f32[1,128], index: 14, kind: input, shape index: {}]
  %s15 = inlined_call_operand.vmem [shape: f32[1,128], index: 15, kind: input, shape index: {}]
  %s16 = inlined_call_operand.hbm [shape: f32[128,128], index: 16, kind: input, shape index: {}]
  %s17 = inlined_call_operand.vmem [shape: f32[1,128], index: 17, kind: input, shape index: {}]
  %s18 = inlined_call_operand.vmem [shape: f32[1,128], index: 18, kind: input, shape index: {}]
  %s19 = inlined_call_operand.vmem [shape: f32[1,128], index: 19, kind: input, shape index: {}]
  %s20 = inlined_call_operand.hbm [shape: f32[128,128], index: 20, kind: input, shape index: {}]
  %s21 = inlined_call_operand.vmem [shape: f32[1,128], index: 21, kind: input, shape index: {}]
  %s22 = inlined_call_operand.hbm [shape: f32[256,128], index: 22, kind: output, shape index: {0}]
  %s23 = inlined_call_operand.hbm [shape: f32[256,128], index: 23, kind: output, shape index: {1}]
  %s24 = inlined_call_operand.hbm [shape: f32[256,128], index: 24, kind: output, shape index: {2}]
  %25 = xla_tuple %s22, %s23, %s24
  %s26 = sld [smem:[#allocation0]]
  $region173: #{tpu_custom_call.1} parent=0
    _
  %s28 = ssub.s32 1, %s26
  %s29 = scalar_select 0, %s28, %s26
  $region1: #{tpu_custom_call.1} parent=0
    #allocation2 [shape = 'u8[131072]{0}', space=vmem, size = 0x20000, scoped, tag = 'input window, operand 0']
    #allocation3 [shape = 's32[2]{0}', space=sflag, size = 0x8, scoped, tag = 'scoped memory for tpu_custom_call.1']
    #allocation4 [shape = 's32[2]{0}', space=sflag, size = 0x8, scoped, tag = 'scoped memory for tpu_custom_call.1']
    #allocation5 [shape = 'u8[131072]{0}', space=vmem, size = 0x20000, scoped, tag = 'input window, operand 1']
    #allocation6 [shape = 's32[2]{0}', space=sflag, size = 0x8, scoped, tag = 'scoped memory for tpu_custom_call.1']
    #allocation7 [shape = 'u8[65536]{0}', space=vmem, size = 0x10000, scoped, tag = 'input window, operand 2, single buffered']
    #allocation8 [shape = 'u8[512]{0}', space=vmem, size = 0x400, scoped, tag = 'input window, operand 4, single buffered']
    #allocation9 [shape = 's32[1]{0}', space=sflag, size = 0x4, scoped, tag = 'scoped memory for tpu_custom_call.1']
    #allocation10 [shape = 'u8[65536]{0}', space=vmem, size = 0x10000, scoped, tag = 'input window, operand 6, single buffered']
    #allocation11 [shape = 'u8[131072]{0}', space=vmem, size = 0x20000, scoped, tag = 'input window, operand 10, single buffered']
    #allocation12 [shape = 's32[1]{0}', space=sflag, size = 0x4, scoped, tag = 'scoped memory for tpu_custom_call.1']
    #allocation13 [shape = 'u8[65536]{0}', space=vmem, size = 0x10000, scoped, tag = 'input window, operand 12, single buffered']
    #allocation14 [shape = 'u8[65536]{0}', space=vmem, size = 0x10000, scoped, tag = 'input window, operand 16, single buffered']
    #allocation15 [shape = 's32[1]{0}', space=sflag, size = 0x4, scoped, tag = 'scoped memory for tpu_custom_call.1']
    #allocation16 [shape = 'u8[65536]{0}', space=vmem, size = 0x10000, scoped, tag = 'input window, operand 20, single buffered']
    #allocation17 [shape = 'u8[131072]{0}', space=vmem, size = 0x20000, scoped, tag = 'output window, operand 0']
    #allocation18 [shape = 'u8[131072]{0}', space=vmem, size = 0x20000, scoped, tag = 'output window, operand 1']
    #allocation19 [shape = 's32[2]{0}', space=sflag, size = 0x8, scoped, tag = 'scoped memory for tpu_custom_call.1']
    #allocation20 [shape = 'u8[131072]{0}', space=vmem, size = 0x20000, scoped, tag = 'output window, operand 2']
    %30 = vsyncpa [#allocation3], 0
    %s31 = scalar_lea.sflag [#allocation3], 1
    %32 = vsyncpa %s31, 0
    %33 = vsyncpa [#allocation6], 0
    %s34 = scalar_lea.sflag [#allocation6], 1
    %35 = vsyncpa %s34, 0
    %36 = vsyncpa [#allocation9], 0
    %37 = vsyncpa [#allocation12], 0
    %38 = vsyncpa [#allocation15], 0
    %39 = vsyncpa [#allocation4], 0
    %s40 = scalar_lea.sflag [#allocation4], 1
    %41 = vsyncpa %s40, 0
    %42 = vsyncpa [#allocation19], 0
    %s43 = scalar_lea.sflag [#allocation19], 1
    %44 = vsyncpa %s43, 0
    loop: start=0, step=1, limit=4
    $region2: #{tpu_custom_call.1} parent=1 // loop_pre_header
      _
    $region3: #{tpu_custom_call.1} parent=1 // loop_header
      %s46 = sphi 0, %s50
      %p47 = scmp.ge.s32.totalorder %s46, 4
      %s56 = sphi 0, %s58
      %s59 = sphi 0, %s56
      %s60 = sphi 0, %s59
      %s76 = sphi 0, %s60
      %s82 = sphi 0, %s84
      %s85 = sphi 0, %s82
      %s86 = sphi 0, %s85
      %s102 = sphi 0, %s86
      %s106 = sphi 0, %s106
      %s108 = sphi 0, %s106
      %s109 = sphi 0, %s108
      %s123 = sphi 0, %s109
      %s127 = sphi 0, %s127
      %s129 = sphi 0, %s127
      %s130 = sphi 0, %s129
      %s144 = sphi 0, %s130
      %s148 = sphi 0, %s148
      %s150 = sphi 0, %s148
      %s151 = sphi 0, %s150
      %s165 = sphi 0, %s151
      %s169 = sphi 0, %s169
      %s171 = sphi 0, %s169
      %s172 = sphi 0, %s171
      %s186 = sphi 0, %s172
      %s190 = sphi 0, %s190
      %s192 = sphi 0, %s190
      %s193 = sphi 0, %s192
      %s207 = sphi 0, %s193
      %s211 = sphi 0, %s211
      %s213 = sphi 0, %s211
      %s214 = sphi 0, %s213
      %s228 = sphi 0, %s214
      %s232 = sphi 0, %s232
      %s234 = sphi 0, %s232
      %s235 = sphi 0, %s234
      %s249 = sphi 0, %s235
      %s253 = sphi 0, %s253
      %s255 = sphi 0, %s253
      %s256 = sphi 0, %s255
      %s270 = sphi 0, %s256
      %s274 = sphi 0, %s274
      %s276 = sphi 0, %s274
      %s277 = sphi 0, %s276
      %s291 = sphi 0, %s277
      %s295 = sphi 0, %s295
      %s297 = sphi 0, %s295
      %s298 = sphi 0, %s297
      %s312 = sphi 0, %s298
      %s316 = sphi 0, %s316
      %s318 = sphi 0, %s316
      %s319 = sphi 0, %s318
      %s333 = sphi 0, %s319
      %s337 = sphi 0, %s337
      %s339 = sphi 0, %s337
      %s340 = sphi 0, %s339
      %s354 = sphi 0, %s340
      %s358 = sphi 0, %s358
      %s360 = sphi 0, %s358
      %s361 = sphi 0, %s360
      %s375 = sphi 0, %s361
      %s379 = sphi 0, %s379
      %s381 = sphi 0, %s379
      %s382 = sphi 0, %s381
      %s396 = sphi 0, %s382
      %s400 = sphi 0, %s400
      %s402 = sphi 0, %s400
      %s403 = sphi 0, %s402
      %s417 = sphi 0, %s403
      %s421 = sphi 0, %s421
      %s423 = sphi 0, %s421
      %s424 = sphi 0, %s423
      %s438 = sphi 0, %s424
      %s442 = sphi 0, %s442
      %s444 = sphi 0, %s442
      %s445 = sphi 0, %s444
      %s459 = sphi 0, %s445
      %s463 = sphi 0, %s463
      %s465 = sphi 0, %s463
      %s466 = sphi 0, %s465
      %s480 = sphi 0, %s466
      %s484 = sphi 0, %s484
      %s486 = sphi 0, %s484
      %s487 = sphi 0, %s486
      %s501 = sphi 0, %s487
      %s505 = sphi 0, %s505
      %s507 = sphi 0, %s505
      %s508 = sphi 0, %s507
      %s522 = sphi 0, %s508
      %s528 = sphi 0, %s530
      %s531 = sphi 0, %s528
      %s532 = sphi 0, %s531
      %s548 = sphi 0, %s532
      %s554 = sphi 0, %s556
      %s557 = sphi 0, %s554
      %s558 = sphi 0, %s557
      %s574 = sphi 0, %s558
      %s580 = sphi 0, %s582
      %s583 = sphi 0, %s580
      %s584 = sphi 0, %s583
      %s600 = sphi 0, %s584
    $region4: #{tpu_custom_call.1} parent=1 // loop_header_branch
      %49 = sbr.rel (%p47) target = $region8
    $region5: #{tpu_custom_call.1} parent=1 // loop_body
      %s51 = ssub.s32 %s46, 1
      %s52 = ssub.s32 %s46, 2
      %s53 = sadd.s32 %s46, 1
      %s54 = ssub.s32 %s46, %s53
      %p55 = scmp.eq.s32.totalorder %s54, 0
      %s57 = sadd.s32 %s56, 1
      %s58 = scalar_select %p55, %s56, %s57
      %p61 = pneg %p55
      %p62 = scmp.eq.s32.totalorder %s46, 1
      %p63 = por %p61, %p62
      %p64 = scmp.ne.s32.totalorder %s56, %s59
      %p65 = scmp.eq.s32.totalorder %s46, 0
      %p66 = por %p64, %p65
      %p67 = scmp.ne.s32.totalorder %s56, %s59
      %p68 = scmp.eq.s32.totalorder %s51, 1
      %p69 = por %p67, %p68
      %p70 = scmp.ne.s32.totalorder %s59, %s60
      %p71 = scmp.eq.s32.totalorder %s51, 0
      %p72 = por %p70, %p71
      %p73 = scmp.ne.s32.totalorder %s59, %s60
      %p74 = scmp.eq.s32.totalorder %s52, 1
      %p75 = por %p73, %p74
      %p77 = scmp.ne.s32.totalorder %s60, %s76
      %p78 = scmp.eq.s32.totalorder %s52, 0
      %p79 = por %p77, %p78
      %s80 = ssub.s32 %s46, %s53
      %p81 = scmp.eq.s32.totalorder %s80, 0
      %s83 = sadd.s32 %s82, 1
      %s84 = scalar_select %p81, %s82, %s83
      %p87 = pneg %p81
      %p88 = scmp.eq.s32.totalorder %s46, 1
      %p89 = por %p87, %p88
      %p90 = scmp.ne.s32.totalorder %s82, %s85
      %p91 = scmp.eq.s32.totalorder %s46, 0
      %p92 = por %p90, %p91
      %p93 = scmp.ne.s32.totalorder %s82, %s85
      %p94 = scmp.eq.s32.totalorder %s51, 1
      %p95 = por %p93, %p94
      %p96 = scmp.ne.s32.totalorder %s85, %s86
      %p97 = scmp.eq.s32.totalorder %s51, 0
      %p98 = por %p96, %p97
      %p99 = scmp.ne.s32.totalorder %s85, %s86
      %p100 = scmp.eq.s32.totalorder %s52, 1
      %p101 = por %p99, %p100
      %p103 = scmp.ne.s32.totalorder %s86, %s102
      %p104 = scmp.eq.s32.totalorder %s52, 0
      %p105 = por %p103, %p104
      %s107 = sadd.s32 %s106, 1
      %p110 = scmp.eq.s32.totalorder %s46, 1
      %p111 = scmp.ne.s32.totalorder %s106, %s108
      %p112 = scmp.eq.s32.totalorder %s46, 0
      %p113 = por %p111, %p112
      %p114 = scmp.ne.s32.totalorder %s106, %s108
      %p115 = scmp.eq.s32.totalorder %s51, 1
      %p116 = por %p114, %p115
      %p117 = scmp.ne.s32.totalorder %s108, %s109
      %p118 = scmp.eq.s32.totalorder %s51, 0
      %p119 = por %p117, %p118
      %p120 = scmp.ne.s32.totalorder %s108, %s109
      %p121 = scmp.eq.s32.totalorder %s52, 1
      %p122 = por %p120, %p121
      %p124 = scmp.ne.s32.totalorder %s109, %s123
      %p125 = scmp.eq.s32.totalorder %s52, 0
      %p126 = por %p124, %p125
      %s128 = sadd.s32 %s127, 1
      %p131 = scmp.eq.s32.totalorder %s46, 1
      %p132 = scmp.ne.s32.totalorder %s127, %s129
      %p133 = scmp.eq.s32.totalorder %s46, 0
      %p134 = por %p132, %p133
      %p135 = scmp.ne.s32.totalorder %s127, %s129
      %p136 = scmp.eq.s32.totalorder %s51, 1
      %p137 = por %p135, %p136
      %p138 = scmp.ne.s32.totalorder %s129, %s130
      %p139 = scmp.eq.s32.totalorder %s51, 0
      %p140 = por %p138, %p139
      %p141 = scmp.ne.s32.totalorder %s129, %s130
      %p142 = scmp.eq.s32.totalorder %s52, 1
      %p143 = por %p141, %p142
      %p145 = scmp.ne.s32.totalorder %s130, %s144
      %p146 = scmp.eq.s32.totalorder %s52, 0
      %p147 = por %p145, %p146
      %s149 = sadd.s32 %s148, 1
      %p152 = scmp.eq.s32.totalorder %s46, 1
      %p153 = scmp.ne.s32.totalorder %s148, %s150
      %p154 = scmp.eq.s32.totalorder %s46, 0
      %p155 = por %p153, %p154
      %p156 = scmp.ne.s32.totalorder %s148, %s150
      %p157 = scmp.eq.s32.totalorder %s51, 1
      %p158 = por %p156, %p157
      %p159 = scmp.ne.s32.totalorder %s150, %s151
      %p160 = scmp.eq.s32.totalorder %s51, 0
      %p161 = por %p159, %p160
      %p162 = scmp.ne.s32.totalorder %s150, %s151
      %p163 = scmp.eq.s32.totalorder %s52, 1
      %p164 = por %p162, %p163
      %p166 = scmp.ne.s32.totalorder %s151, %s165
      %p167 = scmp.eq.s32.totalorder %s52, 0
      %p168 = por %p166, %p167
      %s170 = sadd.s32 %s169, 1
      %p173 = scmp.eq.s32.totalorder %s46, 1
      %p174 = scmp.ne.s32.totalorder %s169, %s171
      %p175 = scmp.eq.s32.totalorder %s46, 0
      %p176 = por %p174, %p175
      %p177 = scmp.ne.s32.totalorder %s169, %s171
      %p178 = scmp.eq.s32.totalorder %s51, 1
      %p179 = por %p177, %p178
      %p180 = scmp.ne.s32.totalorder %s171, %s172
      %p181 = scmp.eq.s32.totalorder %s51, 0
      %p182 = por %p180, %p181
      %p183 = scmp.ne.s32.totalorder %s171, %s172
      %p184 = scmp.eq.s32.totalorder %s52, 1
      %p185 = por %p183, %p184
      %p187 = scmp.ne.s32.totalorder %s172, %s186
      %p188 = scmp.eq.s32.totalorder %s52, 0
      %p189 = por %p187, %p188
      %s191 = sadd.s32 %s190, 1
      %p194 = scmp.eq.s32.totalorder %s46, 1
      %p195 = scmp.ne.s32.totalorder %s190, %s192
      %p196 = scmp.eq.s32.totalorder %s46, 0
      %p197 = por %p195, %p196
      %p198 = scmp.ne.s32.totalorder %s190, %s192
      %p199 = scmp.eq.s32.totalorder %s51, 1
      %p200 = por %p198, %p199
      %p201 = scmp.ne.s32.totalorder %s192, %s193
      %p202 = scmp.eq.s32.totalorder %s51, 0
      %p203 = por %p201, %p202
      %p204 = scmp.ne.s32.totalorder %s192, %s193
      %p205 = scmp.eq.s32.totalorder %s52, 1
      %p206 = por %p204, %p205
      %p208 = scmp.ne.s32.totalorder %s193, %s207
      %p209 = scmp.eq.s32.totalorder %s52, 0
      %p210 = por %p208, %p209
      %s212 = sadd.s32 %s211, 1
      %p215 = scmp.eq.s32.totalorder %s46, 1
      %p216 = scmp.ne.s32.totalorder %s211, %s213
      %p217 = scmp.eq.s32.totalorder %s46, 0
      %p218 = por %p216, %p217
      %p219 = scmp.ne.s32.totalorder %s211, %s213
      %p220 = scmp.eq.s32.totalorder %s51, 1
      %p221 = por %p219, %p220
      %p222 = scmp.ne.s32.totalorder %s213, %s214
      %p223 = scmp.eq.s32.totalorder %s51, 0
      %p224 = por %p222, %p223
      %p225 = scmp.ne.s32.totalorder %s213, %s214
      %p226 = scmp.eq.s32.totalorder %s52, 1
      %p227 = por %p225, %p226
      %p229 = scmp.ne.s32.totalorder %s214, %s228
      %p230 = scmp.eq.s32.totalorder %s52, 0
      %p231 = por %p229, %p230
      %s233 = sadd.s32 %s232, 1
      %p236 = scmp.eq.s32.totalorder %s46, 1
      %p237 = scmp.ne.s32.totalorder %s232, %s234
      %p238 = scmp.eq.s32.totalorder %s46, 0
      %p239 = por %p237, %p238
      %p240 = scmp.ne.s32.totalorder %s232, %s234
      %p241 = scmp.eq.s32.totalorder %s51, 1
      %p242 = por %p240, %p241
      %p243 = scmp.ne.s32.totalorder %s234, %s235
      %p244 = scmp.eq.s32.totalorder %s51, 0
      %p245 = por %p243, %p244
      %p246 = scmp.ne.s32.totalorder %s234, %s235
      %p247 = scmp.eq.s32.totalorder %s52, 1
      %p248 = por %p246, %p247
      %p250 = scmp.ne.s32.totalorder %s235, %s249
      %p251 = scmp.eq.s32.totalorder %s52, 0
      %p252 = por %p250, %p251
      %s254 = sadd.s32 %s253, 1
      %p257 = scmp.eq.s32.totalorder %s46, 1
      %p258 = scmp.ne.s32.totalorder %s253, %s255
      %p259 = scmp.eq.s32.totalorder %s46, 0
      %p260 = por %p258, %p259
      %p261 = scmp.ne.s32.totalorder %s253, %s255
      %p262 = scmp.eq.s32.totalorder %s51, 1
      %p263 = por %p261, %p262
      %p264 = scmp.ne.s32.totalorder %s255, %s256
      %p265 = scmp.eq.s32.totalorder %s51, 0
      %p266 = por %p264, %p265
      %p267 = scmp.ne.s32.totalorder %s255, %s256
      %p268 = scmp.eq.s32.totalorder %s52, 1
      %p269 = por %p267, %p268
      %p271 = scmp.ne.s32.totalorder %s256, %s270
      %p272 = scmp.eq.s32.totalorder %s52, 0
      %p273 = por %p271, %p272
      %s275 = sadd.s32 %s274, 1
      %p278 = scmp.eq.s32.totalorder %s46, 1
      %p279 = scmp.ne.s32.totalorder %s274, %s276
      %p280 = scmp.eq.s32.totalorder %s46, 0
      %p281 = por %p279, %p280
      %p282 = scmp.ne.s32.totalorder %s274, %s276
      %p283 = scmp.eq.s32.totalorder %s51, 1
      %p284 = por %p282, %p283
      %p285 = scmp.ne.s32.totalorder %s276, %s277
      %p286 = scmp.eq.s32.totalorder %s51, 0
      %p287 = por %p285, %p286
      %p288 = scmp.ne.s32.totalorder %s276, %s277
      %p289 = scmp.eq.s32.totalorder %s52, 1
      %p290 = por %p288, %p289
      %p292 = scmp.ne.s32.totalorder %s277, %s291
      %p293 = scmp.eq.s32.totalorder %s52, 0
      %p294 = por %p292, %p293
      %s296 = sadd.s32 %s295, 1
      %p299 = scmp.eq.s32.totalorder %s46, 1
      %p300 = scmp.ne.s32.totalorder %s295, %s297
      %p301 = scmp.eq.s32.totalorder %s46, 0
      %p302 = por %p300, %p301
      %p303 = scmp.ne.s32.totalorder %s295, %s297
      %p304 = scmp.eq.s32.totalorder %s51, 1
      %p305 = por %p303, %p304
      %p306 = scmp.ne.s32.totalorder %s297, %s298
      %p307 = scmp.eq.s32.totalorder %s51, 0
      %p308 = por %p306, %p307
      %p309 = scmp.ne.s32.totalorder %s297, %s298
      %p310 = scmp.eq.s32.totalorder %s52, 1
      %p311 = por %p309, %p310
      %p313 = scmp.ne.s32.totalorder %s298, %s312
      %p314 = scmp.eq.s32.totalorder %s52, 0
      %p315 = por %p313, %p314
      %s317 = sadd.s32 %s316, 1
      %p320 = scmp.eq.s32.totalorder %s46, 1
      %p321 = scmp.ne.s32.totalorder %s316, %s318
      %p322 = scmp.eq.s32.totalorder %s46, 0
      %p323 = por %p321, %p322
      %p324 = scmp.ne.s32.totalorder %s316, %s318
      %p325 = scmp.eq.s32.totalorder %s51, 1
      %p326 = por %p324, %p325
      %p327 = scmp.ne.s32.totalorder %s318, %s319
      %p328 = scmp.eq.s32.totalorder %s51, 0
      %p329 = por %p327, %p328
      %p330 = scmp.ne.s32.totalorder %s318, %s319
      %p331 = scmp.eq.s32.totalorder %s52, 1
      %p332 = por %p330, %p331
      %p334 = scmp.ne.s32.totalorder %s319, %s333
      %p335 = scmp.eq.s32.totalorder %s52, 0
      %p336 = por %p334, %p335
      %s338 = sadd.s32 %s337, 1
      %p341 = scmp.eq.s32.totalorder %s46, 1
      %p342 = scmp.ne.s32.totalorder %s337, %s339
      %p343 = scmp.eq.s32.totalorder %s46, 0
      %p344 = por %p342, %p343
      %p345 = scmp.ne.s32.totalorder %s337, %s339
      %p346 = scmp.eq.s32.totalorder %s51, 1
      %p347 = por %p345, %p346
      %p348 = scmp.ne.s32.totalorder %s339, %s340
      %p349 = scmp.eq.s32.totalorder %s51, 0
      %p350 = por %p348, %p349
      %p351 = scmp.ne.s32.totalorder %s339, %s340
      %p352 = scmp.eq.s32.totalorder %s52, 1
      %p353 = por %p351, %p352
      %p355 = scmp.ne.s32.totalorder %s340, %s354
      %p356 = scmp.eq.s32.totalorder %s52, 0
      %p357 = por %p355, %p356
      %s359 = sadd.s32 %s358, 1
      %p362 = scmp.eq.s32.totalorder %s46, 1
      %p363 = scmp.ne.s32.totalorder %s358, %s360
      %p364 = scmp.eq.s32.totalorder %s46, 0
      %p365 = por %p363, %p364
      %p366 = scmp.ne.s32.totalorder %s358, %s360
      %p367 = scmp.eq.s32.totalorder %s51, 1
      %p368 = por %p366, %p367
      %p369 = scmp.ne.s32.totalorder %s360, %s361
      %p370 = scmp.eq.s32.totalorder %s51, 0
      %p371 = por %p369, %p370
      %p372 = scmp.ne.s32.totalorder %s360, %s361
      %p373 = scmp.eq.s32.totalorder %s52, 1
      %p374 = por %p372, %p373
      %p376 = scmp.ne.s32.totalorder %s361, %s375
      %p377 = scmp.eq.s32.totalorder %s52, 0
      %p378 = por %p376, %p377
      %s380 = sadd.s32 %s379, 1
      %p383 = scmp.eq.s32.totalorder %s46, 1
      %p384 = scmp.ne.s32.totalorder %s379, %s381
      %p385 = scmp.eq.s32.totalorder %s46, 0
      %p386 = por %p384, %p385
      %p387 = scmp.ne.s32.totalorder %s379, %s381
      %p388 = scmp.eq.s32.totalorder %s51, 1
      %p389 = por %p387, %p388
      %p390 = scmp.ne.s32.totalorder %s381, %s382
      %p391 = scmp.eq.s32.totalorder %s51, 0
      %p392 = por %p390, %p391
      %p393 = scmp.ne.s32.totalorder %s381, %s382
      %p394 = scmp.eq.s32.totalorder %s52, 1
      %p395 = por %p393, %p394
      %p397 = scmp.ne.s32.totalorder %s382, %s396
      %p398 = scmp.eq.s32.totalorder %s52, 0
      %p399 = por %p397, %p398
      %s401 = sadd.s32 %s400, 1
      %p404 = scmp.eq.s32.totalorder %s46, 1
      %p405 = scmp.ne.s32.totalorder %s400, %s402
      %p406 = scmp.eq.s32.totalorder %s46, 0
      %p407 = por %p405, %p406
      %p408 = scmp.ne.s32.totalorder %s400, %s402
      %p409 = scmp.eq.s32.totalorder %s51, 1
      %p410 = por %p408, %p409
      %p411 = scmp.ne.s32.totalorder %s402, %s403
      %p412 = scmp.eq.s32.totalorder %s51, 0
      %p413 = por %p411, %p412
      %p414 = scmp.ne.s32.totalorder %s402, %s403
      %p415 = scmp.eq.s32.totalorder %s52, 1
      %p416 = por %p414, %p415
      %p418 = scmp.ne.s32.totalorder %s403, %s417
      %p419 = scmp.eq.s32.totalorder %s52, 0
      %p420 = por %p418, %p419
      %s422 = sadd.s32 %s421, 1
      %p425 = scmp.eq.s32.totalorder %s46, 1
      %p426 = scmp.ne.s32.totalorder %s421, %s423
      %p427 = scmp.eq.s32.totalorder %s46, 0
      %p428 = por %p426, %p427
      %p429 = scmp.ne.s32.totalorder %s421, %s423
      %p430 = scmp.eq.s32.totalorder %s51, 1
      %p431 = por %p429, %p430
      %p432 = scmp.ne.s32.totalorder %s423, %s424
      %p433 = scmp.eq.s32.totalorder %s51, 0
      %p434 = por %p432, %p433
      %p435 = scmp.ne.s32.totalorder %s423, %s424
      %p436 = scmp.eq.s32.totalorder %s52, 1
      %p437 = por %p435, %p436
      %p439 = scmp.ne.s32.totalorder %s424, %s438
      %p440 = scmp.eq.s32.totalorder %s52, 0
      %p441 = por %p439, %p440
      %s443 = sadd.s32 %s442, 1
      %p446 = scmp.eq.s32.totalorder %s46, 1
      %p447 = scmp.ne.s32.totalorder %s442, %s444
      %p448 = scmp.eq.s32.totalorder %s46, 0
      %p449 = por %p447, %p448
      %p450 = scmp.ne.s32.totalorder %s442, %s444
      %p451 = scmp.eq.s32.totalorder %s51, 1
      %p452 = por %p450, %p451
      %p453 = scmp.ne.s32.totalorder %s444, %s445
      %p454 = scmp.eq.s32.totalorder %s51, 0
      %p455 = por %p453, %p454
      %p456 = scmp.ne.s32.totalorder %s444, %s445
      %p457 = scmp.eq.s32.totalorder %s52, 1
      %p458 = por %p456, %p457
      %p460 = scmp.ne.s32.totalorder %s445, %s459
      %p461 = scmp.eq.s32.totalorder %s52, 0
      %p462 = por %p460, %p461
      %s464 = sadd.s32 %s463, 1
      %p467 = scmp.eq.s32.totalorder %s46, 1
      %p468 = scmp.ne.s32.totalorder %s463, %s465
      %p469 = scmp.eq.s32.totalorder %s46, 0
      %p470 = por %p468, %p469
      %p471 = scmp.ne.s32.totalorder %s463, %s465
      %p472 = scmp.eq.s32.totalorder %s51, 1
      %p473 = por %p471, %p472
      %p474 = scmp.ne.s32.totalorder %s465, %s466
      %p475 = scmp.eq.s32.totalorder %s51, 0
      %p476 = por %p474, %p475
      %p477 = scmp.ne.s32.totalorder %s465, %s466
      %p478 = scmp.eq.s32.totalorder %s52, 1
      %p479 = por %p477, %p478
      %p481 = scmp.ne.s32.totalorder %s466, %s480
      %p482 = scmp.eq.s32.totalorder %s52, 0
      %p483 = por %p481, %p482
      %s485 = sadd.s32 %s484, 1
      %p488 = scmp.eq.s32.totalorder %s46, 1
      %p489 = scmp.ne.s32.totalorder %s484, %s486
      %p490 = scmp.eq.s32.totalorder %s46, 0
      %p491 = por %p489, %p490
      %p492 = scmp.ne.s32.totalorder %s484, %s486
      %p493 = scmp.eq.s32.totalorder %s51, 1
      %p494 = por %p492, %p493
      %p495 = scmp.ne.s32.totalorder %s486, %s487
      %p496 = scmp.eq.s32.totalorder %s51, 0
      %p497 = por %p495, %p496
      %p498 = scmp.ne.s32.totalorder %s486, %s487
      %p499 = scmp.eq.s32.totalorder %s52, 1
      %p500 = por %p498, %p499
      %p502 = scmp.ne.s32.totalorder %s487, %s501
      %p503 = scmp.eq.s32.totalorder %s52, 0
      %p504 = por %p502, %p503
      %s506 = sadd.s32 %s505, 1
      %p509 = scmp.eq.s32.totalorder %s46, 1
      %p510 = scmp.ne.s32.totalorder %s505, %s507
      %p511 = scmp.eq.s32.totalorder %s46, 0
      %p512 = por %p510, %p511
      %p513 = scmp.ne.s32.totalorder %s505, %s507
      %p514 = scmp.eq.s32.totalorder %s51, 1
      %p515 = por %p513, %p514
      %p516 = scmp.ne.s32.totalorder %s507, %s508
      %p517 = scmp.eq.s32.totalorder %s51, 0
      %p518 = por %p516, %p517
      %p519 = scmp.ne.s32.totalorder %s507, %s508
      %p520 = scmp.eq.s32.totalorder %s52, 1
      %p521 = por %p519, %p520
      %p523 = scmp.ne.s32.totalorder %s508, %s522
      %p524 = scmp.eq.s32.totalorder %s52, 0
      %p525 = por %p523, %p524
      %s526 = ssub.s32 %s46, %s53
      %p527 = scmp.eq.s32.totalorder %s526, 0
      %s529 = sadd.s32 %s528, 1
      %s530 = scalar_select %p527, %s528, %s529
      %p533 = pneg %p527
      %p534 = scmp.eq.s32.totalorder %s46, 1
      %p535 = por %p533, %p534
      %p536 = scmp.ne.s32.totalorder %s528, %s531
      %p537 = scmp.eq.s32.totalorder %s46, 0
      %p538 = por %p536, %p537
      %p539 = scmp.ne.s32.totalorder %s528, %s531
      %p540 = scmp.eq.s32.totalorder %s51, 1
      %p541 = por %p539, %p540
      %p542 = scmp.ne.s32.totalorder %s531, %s532
      %p543 = scmp.eq.s32.totalorder %s51, 0
      %p544 = por %p542, %p543
      %p545 = scmp.ne.s32.totalorder %s531, %s532
      %p546 = scmp.eq.s32.totalorder %s52, 1
      %p547 = por %p545, %p546
      %p549 = scmp.ne.s32.totalorder %s532, %s548
      %p550 = scmp.eq.s32.totalorder %s52, 0
      %p551 = por %p549, %p550
      %s552 = ssub.s32 %s46, %s53
      %p553 = scmp.eq.s32.totalorder %s552, 0
      %s555 = sadd.s32 %s554, 1
      %s556 = scalar_select %p553, %s554, %s555
      %p559 = pneg %p553
      %p560 = scmp.eq.s32.totalorder %s46, 1
      %p561 = por %p559, %p560
      %p562 = scmp.ne.s32.totalorder %s554, %s557
      %p563 = scmp.eq.s32.totalorder %s46, 0
      %p564 = por %p562, %p563
      %p565 = scmp.ne.s32.totalorder %s554, %s557
      %p566 = scmp.eq.s32.totalorder %s51, 1
      %p567 = por %p565, %p566
      %p568 = scmp.ne.s32.totalorder %s557, %s558
      %p569 = scmp.eq.s32.totalorder %s51, 0
      %p570 = por %p568, %p569
      %p571 = scmp.ne.s32.totalorder %s557, %s558
      %p572 = scmp.eq.s32.totalorder %s52, 1
      %p573 = por %p571, %p572
      %p575 = scmp.ne.s32.totalorder %s558, %s574
      %p576 = scmp.eq.s32.totalorder %s52, 0
      %p577 = por %p575, %p576
      %s578 = ssub.s32 %s46, %s53
      %p579 = scmp.eq.s32.totalorder %s578, 0
      %s581 = sadd.s32 %s580, 1
      %s582 = scalar_select %p579, %s580, %s581
      %p585 = pneg %p579
      %p586 = scmp.eq.s32.totalorder %s46, 1
      %p587 = por %p585, %p586
      %p588 = scmp.ne.s32.totalorder %s580, %s583
      %p589 = scmp.eq.s32.totalorder %s46, 0
      %p590 = por %p588, %p589
      %p591 = scmp.ne.s32.totalorder %s580, %s583
      %p592 = scmp.eq.s32.totalorder %s51, 1
      %p593 = por %p591, %p592
      %p594 = scmp.ne.s32.totalorder %s583, %s584
      %p595 = scmp.eq.s32.totalorder %s51, 0
      %p596 = por %p594, %p595
      %p597 = scmp.ne.s32.totalorder %s583, %s584
      %p598 = scmp.eq.s32.totalorder %s52, 1
      %p599 = por %p597, %p598
      %p601 = scmp.ne.s32.totalorder %s584, %s600
      %p602 = scmp.eq.s32.totalorder %s52, 0
      %p603 = por %p601, %p602
      %p604 = scmp.le.s32.totalorder 1, %s46
      %p605 = scmp.lt.s32.totalorder %s46, 3
      %p606 = pnand %p604, %p605
      %p607 = pneg %p606
      // Predicated region
      $region9: #{tpu_custom_call.1} parent=5 // pred_check
        _
      $region10: #{tpu_custom_call.1} parent=5 // pred_check_branch
        %609 = sbr.rel (%p606) target = $region12
      $region11: #{tpu_custom_call.1} parent=5 // pred_region
        %s610 = ssub.s32 %s46, 1
        // Predicated region
        $region13: #{tpu_custom_call.1} parent=11 // pred_check
          %p611 = pneg %p119
        $region14: #{tpu_custom_call.1} parent=11 // pred_check_branch
          %613 = sbr.rel (%p611) target = $region16
        $region15: #{tpu_custom_call.1} parent=11 // pred_region
          %615 = vsyncadd [#allocation6], 0
          %s616 = sshll.u32 %s2, 4
          %s617 = int_to_ptr.hbm [resolvable:$true] %s616
          %s618 = sshll.u32 [#allocation7], 4
          %s619 = int_to_ptr.vmem [resolvable:$true] %s618
          %624 = dma.hbm_to_vmem [thread:$0]  %s617, 2048, %s619, [#allocation6], 128, 128, 8
        $region16: #{tpu_custom_call.1} parent=11 // pred_fallthru
          _
        // Predicated region
        $region17: #{tpu_custom_call.1} parent=11 // pred_check
          %p625 = pneg %p140
        $region18: #{tpu_custom_call.1} parent=11 // pred_check_branch
          %627 = sbr.rel (%p625) target = $region20
        $region19: #{tpu_custom_call.1} parent=11 // pred_region
          _
        $region20: #{tpu_custom_call.1} parent=11 // pred_fallthru
          _
        // Predicated region
        $region21: #{tpu_custom_call.1} parent=11 // pred_check
          %p628 = pneg %p161
        $region22: #{tpu_custom_call.1} parent=11 // pred_check_branch
          %630 = sbr.rel (%p628) target = $region24
        $region23: #{tpu_custom_call.1} parent=11 // pred_region
          %632 = vsyncadd [#allocation9], 0
          %s634 = sshll.u32 %s4, 4
          %s635 = int_to_ptr.hbm [resolvable:$true] %s634
          %s636 = sshll.u32 [#allocation8], 4
          %s637 = int_to_ptr.vmem [resolvable:$true] %s636
          %639 = dma.hbm_to_vmem [thread:$0]  %s635, 16, %s637, [#allocation9]
        $region24: #{tpu_custom_call.1} parent=11 // pred_fallthru
          _
        // Predicated region
        $region25: #{tpu_custom_call.1} parent=11 // pred_check
          %p640 = pneg %p182
        $region26: #{tpu_custom_call.1} parent=11 // pred_check_branch
          %642 = sbr.rel (%p640) target = $region28
        $region27: #{tpu_custom_call.1} parent=11 // pred_region
          _
        $region28: #{tpu_custom_call.1} parent=11 // pred_fallthru
          _
        // Predicated region
        $region29: #{tpu_custom_call.1} parent=11 // pred_check
          %p643 = pneg %p203
        $region30: #{tpu_custom_call.1} parent=11 // pred_check_branch
          %645 = sbr.rel (%p643) target = $region32
        $region31: #{tpu_custom_call.1} parent=11 // pred_region
          %647 = vsyncadd [#allocation9], 0
          %s648 = sshll.u32 %s6, 4
          %s649 = int_to_ptr.hbm [resolvable:$true] %s648
          %s650 = sshll.u32 [#allocation10], 4
          %s651 = int_to_ptr.vmem [resolvable:$true] %s650
          %656 = dma.hbm_to_vmem [thread:$0]  %s649, 2048, %s651, [#allocation9], 128, 128, 8
        $region32: #{tpu_custom_call.1} parent=11 // pred_fallthru
          _
        // Predicated region
        $region33: #{tpu_custom_call.1} parent=11 // pred_check
          %p657 = pneg %p224
        $region34: #{tpu_custom_call.1} parent=11 // pred_check_branch
          %659 = sbr.rel (%p657) target = $region36
        $region35: #{tpu_custom_call.1} parent=11 // pred_region
          _
        $region36: #{tpu_custom_call.1} parent=11 // pred_fallthru
          _
        // Predicated region
        $region37: #{tpu_custom_call.1} parent=11 // pred_check
          %p660 = pneg %p245
        $region38: #{tpu_custom_call.1} parent=11 // pred_check_branch
          %662 = sbr.rel (%p660) target = $region40
        $region39: #{tpu_custom_call.1} parent=11 // pred_region
          _
        $region40: #{tpu_custom_call.1} parent=11 // pred_fallthru
          _
        // Predicated region
        $region41: #{tpu_custom_call.1} parent=11 // pred_check
          %p663 = pneg %p266
        $region42: #{tpu_custom_call.1} parent=11 // pred_check_branch
          %665 = sbr.rel (%p663) target = $region44
        $region43: #{tpu_custom_call.1} parent=11 // pred_region
          _
        $region44: #{tpu_custom_call.1} parent=11 // pred_fallthru
          _
        // Predicated region
        $region45: #{tpu_custom_call.1} parent=11 // pred_check
          %p666 = pneg %p287
        $region46: #{tpu_custom_call.1} parent=11 // pred_check_branch
          %668 = sbr.rel (%p666) target = $region48
        $region47: #{tpu_custom_call.1} parent=11 // pred_region
          %670 = vsyncadd [#allocation12], 0
          %s671 = sshll.u32 %s10, 4
          %s672 = int_to_ptr.hbm [resolvable:$true] %s671
          %s673 = sshll.u32 [#allocation11], 4
          %s674 = int_to_ptr.vmem [resolvable:$true] %s673
          %679 = dma.hbm_to_vmem [thread:$0]  %s672, 4096, %s674, [#allocation12], 256, 256, 16
        $region48: #{tpu_custom_call.1} parent=11 // pred_fallthru
          _
        // Predicated region
        $region49: #{tpu_custom_call.1} parent=11 // pred_check
          %p680 = pneg %p308
        $region50: #{tpu_custom_call.1} parent=11 // pred_check_branch
          %682 = sbr.rel (%p680) target = $region52
        $region51: #{tpu_custom_call.1} parent=11 // pred_region
          _
        $region52: #{tpu_custom_call.1} parent=11 // pred_fallthru
          _
        // Predicated region
        $region53: #{tpu_custom_call.1} parent=11 // pred_check
          %p683 = pneg %p329
        $region54: #{tpu_custom_call.1} parent=11 // pred_check_branch
          %685 = sbr.rel (%p683) target = $region56
        $region55: #{tpu_custom_call.1} parent=11 // pred_region
          %687 = vsyncadd [#allocation12], 0
          %s688 = sshll.u32 %s12, 4
          %s689 = int_to_ptr.hbm [resolvable:$true] %s688
          %s690 = sshll.u32 [#allocation13], 4
          %s691 = int_to_ptr.vmem [resolvable:$true] %s690
          %696 = dma.hbm_to_vmem [thread:$0]  %s689, 2048, %s691, [#allocation12], 128, 128, 8
        $region56: #{tpu_custom_call.1} parent=11 // pred_fallthru
          _
        // Predicated region
        $region57: #{tpu_custom_call.1} parent=11 // pred_check
          %p697 = pneg %p350
        $region58: #{tpu_custom_call.1} parent=11 // pred_check_branch
          %699 = sbr.rel (%p697) target = $region60
        $region59: #{tpu_custom_call.1} parent=11 // pred_region
          _
        $region60: #{tpu_custom_call.1} parent=11 // pred_fallthru
          _
        // Predicated region
        $region61: #{tpu_custom_call.1} parent=11 // pred_check
          %p700 = pneg %p371
        $region62: #{tpu_custom_call.1} parent=11 // pred_check_branch
          %702 = sbr.rel (%p700) target = $region64
        $region63: #{tpu_custom_call.1} parent=11 // pred_region
          _
        $region64: #{tpu_custom_call.1} parent=11 // pred_fallthru
          _
        // Predicated region
        $region65: #{tpu_custom_call.1} parent=11 // pred_check
          %p703 = pneg %p392
        $region66: #{tpu_custom_call.1} parent=11 // pred_check_branch
          %705 = sbr.rel (%p703) target = $region68
        $region67: #{tpu_custom_call.1} parent=11 // pred_region
          _
        $region68: #{tpu_custom_call.1} parent=11 // pred_fallthru
          _
        // Predicated region
        $region69: #{tpu_custom_call.1} parent=11 // pred_check
          %p706 = pneg %p413
        $region70: #{tpu_custom_call.1} parent=11 // pred_check_branch
          %708 = sbr.rel (%p706) target = $region72
        $region71: #{tpu_custom_call.1} parent=11 // pred_region
          %710 = vsyncadd [#allocation15], 0
          %s711 = sshll.u32 %s16, 4
          %s712 = int_to_ptr.hbm [resolvable:$true] %s711
          %s713 = sshll.u32 [#allocation14], 4
          %s714 = int_to_ptr.vmem [resolvable:$true] %s713
          %719 = dma.hbm_to_vmem [thread:$0]  %s712, 2048, %s714, [#allocation15], 128, 128, 8
        $region72: #{tpu_custom_call.1} parent=11 // pred_fallthru
          _
        // Predicated region
        $region73: #{tpu_custom_call.1} parent=11 // pred_check
          %p720 = pneg %p434
        $region74: #{tpu_custom_call.1} parent=11 // pred_check_branch
          %722 = sbr.rel (%p720) target = $region76
        $region75: #{tpu_custom_call.1} parent=11 // pred_region
          _
        $region76: #{tpu_custom_call.1} parent=11 // pred_fallthru
          _
        // Predicated region
        $region77: #{tpu_custom_call.1} parent=11 // pred_check
          %p723 = pneg %p455
        $region78: #{tpu_custom_call.1} parent=11 // pred_check_branch
          %725 = sbr.rel (%p723) target = $region80
        $region79: #{tpu_custom_call.1} parent=11 // pred_region
          _
        $region80: #{tpu_custom_call.1} parent=11 // pred_fallthru
          _
        // Predicated region
        $region81: #{tpu_custom_call.1} parent=11 // pred_check
          %p726 = pneg %p476
        $region82: #{tpu_custom_call.1} parent=11 // pred_check_branch
          %728 = sbr.rel (%p726) target = $region84
        $region83: #{tpu_custom_call.1} parent=11 // pred_region
          _
        $region84: #{tpu_custom_call.1} parent=11 // pred_fallthru
          _
        // Predicated region
        $region85: #{tpu_custom_call.1} parent=11 // pred_check
          %p729 = pneg %p497
        $region86: #{tpu_custom_call.1} parent=11 // pred_check_branch
          %731 = sbr.rel (%p729) target = $region88
        $region87: #{tpu_custom_call.1} parent=11 // pred_region
          %733 = vsyncadd [#allocation15], 0
          %s734 = sshll.u32 %s20, 4
          %s735 = int_to_ptr.hbm [resolvable:$true] %s734
          %s736 = sshll.u32 [#allocation16], 4
          %s737 = int_to_ptr.vmem [resolvable:$true] %s736
          %742 = dma.hbm_to_vmem [thread:$0]  %s735, 2048, %s737, [#allocation15], 128, 128, 8
        $region88: #{tpu_custom_call.1} parent=11 // pred_fallthru
          _
        // Predicated region
        $region89: #{tpu_custom_call.1} parent=11 // pred_check
          %p743 = pneg %p518
        $region90: #{tpu_custom_call.1} parent=11 // pred_check_branch
          %745 = sbr.rel (%p743) target = $region92
        $region91: #{tpu_custom_call.1} parent=11 // pred_region
          _
        $region92: #{tpu_custom_call.1} parent=11 // pred_fallthru
          _
      $region12: #{tpu_custom_call.1} parent=5 // pred_fallthru
        _
      %p746 = scmp.lt.s32.totalorder %s46, 2
      // Predicated region
      $region93: #{tpu_custom_call.1} parent=5 // pred_check
        %p747 = pneg %p746
      $region94: #{tpu_custom_call.1} parent=5 // pred_check_branch
        %749 = sbr.rel (%p747) target = $region96
      $region95: #{tpu_custom_call.1} parent=5 // pred_region
        // Predicated region
        $region97: #{tpu_custom_call.1} parent=95 // pred_check
          %p750 = pneg %p66
        $region98: #{tpu_custom_call.1} parent=95 // pred_check_branch
          %752 = sbr.rel (%p750) target = $region100
        $region99: #{tpu_custom_call.1} parent=95 // pred_region
          %s753 = sand.u32 %s56, 1
          %s754 = scalar_lea.sflag [#allocation3], %s753
          %s755 = sand.u32 %s56, 1
          %s756 = smul.addr %s755, 128
          %s757 = scalar_lea.vmem [#allocation2], %s756
          %s758 = smul.u32 16, %s46
          %760 = vsyncadd %s754, 0
          %s761 = smul.addr %s758, 8
          %s762 = scalar_lea.hbm %s0, %s761
          %s763 = sshll.u32 %s762, 4
          %s764 = int_to_ptr.hbm [resolvable:$true] %s763
          %s765 = sshll.u32 %s757, 4
          %s766 = int_to_ptr.vmem [resolvable:$true] %s765
          %771 = dma.hbm_to_vmem [thread:$0]  %s764, 2048, %s766, %s754, 128, 128, 8
        $region100: #{tpu_custom_call.1} parent=95 // pred_fallthru
          _
        // Predicated region
        $region101: #{tpu_custom_call.1} parent=95 // pred_check
          %p772 = pneg %p92
        $region102: #{tpu_custom_call.1} parent=95 // pred_check_branch
          %774 = sbr.rel (%p772) target = $region104
        $region103: #{tpu_custom_call.1} parent=95 // pred_region
          %s775 = sand.u32 %s46, 1
          %s776 = scalar_lea.sflag [#allocation6], %s775
          %s777 = sand.u32 %s82, 1
          %s778 = smul.addr %s777, 128
          %s779 = scalar_lea.vmem [#allocation5], %s778
          %s780 = smul.u32 16, %s46
          %782 = vsyncadd %s776, 0
          %s783 = smul.addr %s780, 8
          %s784 = scalar_lea.hbm %s1, %s783
          %s785 = sshll.u32 %s784, 4
          %s786 = int_to_ptr.hbm [resolvable:$true] %s785
          %s787 = sshll.u32 %s779, 4
          %s788 = int_to_ptr.vmem [resolvable:$true] %s787
          %793 = dma.hbm_to_vmem [thread:$0]  %s786, 2048, %s788, %s776, 128, 128, 8
        $region104: #{tpu_custom_call.1} parent=95 // pred_fallthru
          _
      $region96: #{tpu_custom_call.1} parent=5 // pred_fallthru
        _
      %p794 = scmp.le.s32.totalorder 1, %s46
      %p795 = scmp.lt.s32.totalorder %s46, 3
      %p796 = pnand %p794, %p795
      %p797 = pneg %p796
      // Predicated region
      $region105: #{tpu_custom_call.1} parent=5 // pred_check
        _
      $region106: #{tpu_custom_call.1} parent=5 // pred_check_branch
        %799 = sbr.rel (%p796) target = $region108
      $region107: #{tpu_custom_call.1} parent=5 // pred_region
        %s800 = ssub.s32 %s46, 1
        %s801 = sand.u32 %s59, 1
        %s802 = scalar_lea.sflag [#allocation3], %s801
        %s803 = sand.u32 %s59, 1
        %s804 = smul.addr %s803, 128
        %s805 = scalar_lea.vmem [#allocation2], %s804
        // Predicated region
        $region109: #{tpu_custom_call.1} parent=107 // pred_check
          %p806 = pneg %p72
        $region110: #{tpu_custom_call.1} parent=107 // pred_check_branch
          %808 = sbr.rel (%p806) target = $region112
        $region111: #{tpu_custom_call.1} parent=107 // pred_region
          %810 = dma.done %s802, 2048
        $region112: #{tpu_custom_call.1} parent=107 // pred_fallthru
          _
        %s811 = sand.u32 %s51, 1
        %s812 = scalar_lea.sflag [#allocation6], %s811
        %s813 = sand.u32 %s85, 1
        %s814 = smul.addr %s813, 128
        %s815 = scalar_lea.vmem [#allocation5], %s814
        // Predicated region
        $region113: #{tpu_custom_call.1} parent=107 // pred_check
          %p816 = pneg %p98
        $region114: #{tpu_custom_call.1} parent=107 // pred_check_branch
          %818 = sbr.rel (%p816) target = $region116
        $region115: #{tpu_custom_call.1} parent=107 // pred_region
          %820 = dma.done %s812, 2048
        $region116: #{tpu_custom_call.1} parent=107 // pred_fallthru
          _
        // Predicated region
        $region117: #{tpu_custom_call.1} parent=107 // pred_check
          %p821 = pneg %p119
        $region118: #{tpu_custom_call.1} parent=107 // pred_check_branch
          %823 = sbr.rel (%p821) target = $region120
        $region119: #{tpu_custom_call.1} parent=107 // pred_region
          %825 = dma.done [#allocation6], 2048
        $region120: #{tpu_custom_call.1} parent=107 // pred_fallthru
          _
        // Predicated region
        $region121: #{tpu_custom_call.1} parent=107 // pred_check
          %p826 = pneg %p161
        $region122: #{tpu_custom_call.1} parent=107 // pred_check_branch
          %828 = sbr.rel (%p826) target = $region124
        $region123: #{tpu_custom_call.1} parent=107 // pred_region
          %830 = dma.done [#allocation9], 16
        $region124: #{tpu_custom_call.1} parent=107 // pred_fallthru
          _
        // Predicated region
        $region125: #{tpu_custom_call.1} parent=107 // pred_check
          %p831 = pneg %p203
        $region126: #{tpu_custom_call.1} parent=107 // pred_check_branch
          %833 = sbr.rel (%p831) target = $region128
        $region127: #{tpu_custom_call.1} parent=107 // pred_region
          %835 = dma.done [#allocation9], 2048
        $region128: #{tpu_custom_call.1} parent=107 // pred_fallthru
          _
        // Predicated region
        $region129: #{tpu_custom_call.1} parent=107 // pred_check
          %p836 = pneg %p287
        $region130: #{tpu_custom_call.1} parent=107 // pred_check_branch
          %838 = sbr.rel (%p836) target = $region132
        $region131: #{tpu_custom_call.1} parent=107 // pred_region
          %840 = dma.done [#allocation12], 4096
        $region132: #{tpu_custom_call.1} parent=107 // pred_fallthru
          _
        // Predicated region
        $region133: #{tpu_custom_call.1} parent=107 // pred_check
          %p841 = pneg %p329
        $region134: #{tpu_custom_call.1} parent=107 // pred_check_branch
          %843 = sbr.rel (%p841) target = $region136
        $region135: #{tpu_custom_call.1} parent=107 // pred_region
          %845 = dma.done [#allocation12], 2048
        $region136: #{tpu_custom_call.1} parent=107 // pred_fallthru
          _
        // Predicated region
        $region137: #{tpu_custom_call.1} parent=107 // pred_check
          %p846 = pneg %p413
        $region138: #{tpu_custom_call.1} parent=107 // pred_check_branch
          %848 = sbr.rel (%p846) target = $region140
        $region139: #{tpu_custom_call.1} parent=107 // pred_region
          %850 = dma.done [#allocation15], 2048
        $region140: #{tpu_custom_call.1} parent=107 // pred_fallthru
          _
        // Predicated region
        $region141: #{tpu_custom_call.1} parent=107 // pred_check
          %p851 = pneg %p497
        $region142: #{tpu_custom_call.1} parent=107 // pred_check_branch
          %853 = sbr.rel (%p851) target = $region144
        $region143: #{tpu_custom_call.1} parent=107 // pred_region
          %855 = dma.done [#allocation15], 2048
        $region144: #{tpu_custom_call.1} parent=107 // pred_fallthru
          _
        %s856 = sand.u32 %s59, 1
        %s857 = scalar_lea.sflag [#allocation3], %s856
        %s858 = sand.u32 %s59, 1
        %s859 = smul.addr %s858, 128
        %s860 = scalar_lea.vmem [#allocation2], %s859
        %p861 = pneg %p72
        %p862 = pneg %p69
        %s863 = sand.u32 %s51, 1
        %s864 = scalar_lea.sflag [#allocation6], %s863
        %s865 = sand.u32 %s85, 1
        %s866 = smul.addr %s865, 128
        %s867 = scalar_lea.vmem [#allocation5], %s866
        %p868 = pneg %p98
        %p869 = pneg %p95
        %p870 = pneg %p119
        %p871 = pneg %p116
        %p872 = pneg %p140
        %p873 = pneg %p137
        %p874 = pneg %p161
        %p875 = pneg %p158
        %p876 = pneg %p182
        %p877 = pneg %p179
        %p878 = pneg %p203
        %p879 = pneg %p200
        %p880 = pneg %p224
        %p881 = pneg %p221
        %p882 = pneg %p245
        %p883 = pneg %p242
        %p884 = pneg %p266
        %p885 = pneg %p263
        %p886 = pneg %p287
        %p887 = pneg %p284
        %p888 = pneg %p308
        %p889 = pneg %p305
        %p890 = pneg %p329
        %p891 = pneg %p326
        %p892 = pneg %p350
        %p893 = pneg %p347
        %p894 = pneg %p371
        %p895 = pneg %p368
        %p896 = pneg %p392
        %p897 = pneg %p389
        %p898 = pneg %p413
        %p899 = pneg %p410
        %p900 = pneg %p434
        %p901 = pneg %p431
        %p902 = pneg %p455
        %p903 = pneg %p452
        %p904 = pneg %p476
        %p905 = pneg %p473
        %p906 = pneg %p497
        %p907 = pneg %p494
        %p908 = pneg %p518
        %p909 = pneg %p515
        %p910 = pneg %p544
        %p911 = pneg %p541
        %s912 = sand.u32 %s531, 1
        %s913 = scalar_lea.sflag [#allocation4], %s912
        %s914 = sand.u32 %s531, 1
        %s915 = smul.addr %s914, 128
        %s916 = scalar_lea.vmem [#allocation17], %s915
        %p917 = pneg %p570
        %p918 = pneg %p567
        %s919 = sand.u32 %s51, 1
        %s920 = scalar_lea.sflag [#allocation19], %s919
        %s921 = sand.u32 %s557, 1
        %s922 = smul.addr %s921, 128
        %s923 = scalar_lea.vmem [#allocation18], %s922
        %p924 = pneg %p596
        %p925 = pneg %p593
        %s926 = sand.u32 %s51, 1
        %s927 = scalar_lea.sflag [#allocation19], %s926
        %s928 = sand.u32 %s583, 1
        %s929 = smul.addr %s928, 128
        %s930 = scalar_lea.vmem [#allocation20], %s929
        %s931 = smul.u32 16, %s51
        %s932 = smul.u32 16, %s51
        %s933 = smul.u32 16, %s51
        %s934 = smul.u32 16, %s51
        %s935 = smul.u32 16, %s51
        %v936 = vld [vmem:[%s805] sm:$0xff]
        %v937 = vld [vmem:[%s805 + $0x8] sm:$0xff]
        %v938 = vld [vmem:[%s805 + $0x10] sm:$0xff]
        %v939 = vld [vmem:[%s805 + $0x18] sm:$0xff]
        %v940 = vld [vmem:[%s805 + $0x20] sm:$0xff]
        %v941 = vld [vmem:[%s805 + $0x28] sm:$0xff]
        %v942 = vld [vmem:[%s805 + $0x30] sm:$0xff]
        %v943 = vld [vmem:[%s805 + $0x38] sm:$0xff]
        %v944 = vld [vmem:[%s805 + $0x40] sm:$0xff]
        %v945 = vld [vmem:[%s805 + $0x48] sm:$0xff]
        %v946 = vld [vmem:[%s805 + $0x50] sm:$0xff]
        %v947 = vld [vmem:[%s805 + $0x58] sm:$0xff]
        %v948 = vld [vmem:[%s805 + $0x60] sm:$0xff]
        %v949 = vld [vmem:[%s805 + $0x68] sm:$0xff]
        %v950 = vld [vmem:[%s805 + $0x70] sm:$0xff]
        %v951 = vld [vmem:[%s805 + $0x78] sm:$0xff]
        %v952 = vld [vmem:[#allocation7] sm:$0xff]
        %v953 = vld [vmem:[#allocation7 + $0x8] sm:$0xff]
        %v954 = vld [vmem:[#allocation7 + $0x10] sm:$0xff]
        %v955 = vld [vmem:[#allocation7 + $0x18] sm:$0xff]
        %v956 = vld [vmem:[#allocation7 + $0x20] sm:$0xff]
        %v957 = vld [vmem:[#allocation7 + $0x28] sm:$0xff]
        %v958 = vld [vmem:[#allocation7 + $0x30] sm:$0xff]
        %v959 = vld [vmem:[#allocation7 + $0x38] sm:$0xff]
        %v960 = vld [vmem:[#allocation7 + $0x40] sm:$0xff]
        %v961 = vld [vmem:[#allocation7 + $0x48] sm:$0xff]
        %v962 = vld [vmem:[#allocation7 + $0x50] sm:$0xff]
        %v963 = vld [vmem:[#allocation7 + $0x58] sm:$0xff]
        %v964 = vld [vmem:[#allocation7 + $0x60] sm:$0xff]
        %v965 = vld [vmem:[#allocation7 + $0x68] sm:$0xff]
        %v966 = vld [vmem:[#allocation7 + $0x70] sm:$0xff]
        %v967 = vld [vmem:[#allocation7 + $0x78] sm:$0xff]
        %v968 = vld [vmem:[%s3] sm:$0x1]
        %v970 = vperm.slane %v968, 0
        %972 = vmatpush.msra.mxu0 %v967
        %973 = vmatpush.msra.mxu0 %v966
        %974 = vmatpush.msra.mxu0 %v965
        %975 = vmatpush.msra.mxu0 %v964
        %976 = vmatpush.msra.mxu0 %v963
        %977 = vmatpush.msra.mxu0 %v962
        %978 = vmatpush.msra.mxu0 %v961
        %979 = vmatpush.msra.mxu0 %v960
        %980 = vmatpush.msra.mxu0 %v959
        %981 = vmatpush.msra.mxu0 %v958
        %982 = vmatpush.msra.mxu0 %v957
        %983 = vmatpush.msra.mxu0 %v956
        %984 = vmatpush.msra.mxu0 %v955
        %985 = vmatpush.msra.mxu0 %v954
        %986 = vmatpush.msra.mxu0 %v953
        %987 = vmatpush.msra.mxu0 %v952
        %988 = vmatmul.f32.gmra.mxu0 %v936
        %v989 = vpop.f32.mrf.mxu0
        %v990 = vadd.f32 %v970, %v989
        %991 = vmatmul.f32.gmra.mxu0 %v937
        %v992 = vpop.f32.mrf.mxu0
        %v993 = vadd.f32 %v970, %v992
        %994 = vmatmul.f32.gmra.mxu0 %v938
        %v995 = vpop.f32.mrf.mxu0
        %v996 = vadd.f32 %v970, %v995
        %997 = vmatmul.f32.gmra.mxu0 %v939
        %v998 = vpop.f32.mrf.mxu0
        %v999 = vadd.f32 %v970, %v998
        %1000 = vmatmul.f32.gmra.mxu0 %v940
        %v1001 = vpop.f32.mrf.mxu0
        %v1002 = vadd.f32 %v970, %v1001
        %1003 = vmatmul.f32.gmra.mxu0 %v941
        %v1004 = vpop.f32.mrf.mxu0
        %v1005 = vadd.f32 %v970, %v1004
        %1006 = vmatmul.f32.gmra.mxu0 %v942
        %v1007 = vpop.f32.mrf.mxu0
        %v1008 = vadd.f32 %v970, %v1007
        %1009 = vmatmul.f32.gmra.mxu0 %v943
        %v1010 = vpop.f32.mrf.mxu0
        %v1011 = vadd.f32 %v970, %v1010
        %1012 = vmatmul.f32.gmra.mxu0 %v944
        %v1013 = vpop.f32.mrf.mxu0
        %v1014 = vadd.f32 %v970, %v1013
        %1015 = vmatmul.f32.gmra.mxu0 %v945
        %v1016 = vpop.f32.mrf.mxu0
        %v1017 = vadd.f32 %v970, %v1016
        %1018 = vmatmul.f32.gmra.mxu0 %v946
        %v1019 = vpop.f32.mrf.mxu0
        %v1020 = vadd.f32 %v970, %v1019
        %1021 = vmatmul.f32.gmra.mxu0 %v947
        %v1022 = vpop.f32.mrf.mxu0
        %v1023 = vadd.f32 %v970, %v1022
        %1024 = vmatmul.f32.gmra.mxu0 %v948
        %v1025 = vpop.f32.mrf.mxu0
        %v1026 = vadd.f32 %v970, %v1025
        %1027 = vmatmul.f32.gmra.mxu0 %v949
        %v1028 = vpop.f32.mrf.mxu0
        %v1029 = vadd.f32 %v970, %v1028
        %1030 = vmatmul.f32.gmra.mxu0 %v950
        %v1031 = vpop.f32.mrf.mxu0
        %v1032 = vadd.f32 %v970, %v1031
        %1033 = vmatmul.f32.gmra.mxu0 %v951
        %v1034 = vpop.f32.mrf.mxu0
        %v1035 = vadd.f32 %v970, %v1034
        %1036 = vdwg.mxu0
        %1037 = vadd.xlane.f32.xlu0 %v990
        %v1038 = vpop.xlane.xlu0 %1037
        %1039 = vadd.xlane.f32.xlu0 %v993
        %v1040 = vpop.xlane.xlu0 %1039
        %1041 = vadd.xlane.f32.xlu0 %v996
        %v1042 = vpop.xlane.xlu0 %1041
        %1043 = vadd.xlane.f32.xlu0 %v999
        %v1044 = vpop.xlane.xlu0 %1043
        %1045 = vadd.xlane.f32.xlu0 %v1002
        %v1046 = vpop.xlane.xlu0 %1045
        %1047 = vadd.xlane.f32.xlu0 %v1005
        %v1048 = vpop.xlane.xlu0 %1047
        %1049 = vadd.xlane.f32.xlu0 %v1008
        %v1050 = vpop.xlane.xlu0 %1049
        %1051 = vadd.xlane.f32.xlu0 %v1011
        %v1052 = vpop.xlane.xlu0 %1051
        %1053 = vadd.xlane.f32.xlu0 %v1014
        %v1054 = vpop.xlane.xlu0 %1053
        %1055 = vadd.xlane.f32.xlu0 %v1017
        %v1056 = vpop.xlane.xlu0 %1055
        %1057 = vadd.xlane.f32.xlu0 %v1020
        %v1058 = vpop.xlane.xlu0 %1057
        %1059 = vadd.xlane.f32.xlu0 %v1023
        %v1060 = vpop.xlane.xlu0 %1059
        %1061 = vadd.xlane.f32.xlu0 %v1026
        %v1062 = vpop.xlane.xlu0 %1061
        %1063 = vadd.xlane.f32.xlu0 %v1029
        %v1064 = vpop.xlane.xlu0 %1063
        %1065 = vadd.xlane.f32.xlu0 %v1032
        %v1066 = vpop.xlane.xlu0 %1065
        %1067 = vadd.xlane.f32.xlu0 %v1035
        %v1068 = vpop.xlane.xlu0 %1067
        %v1069 = vmul.f32 %v1038, 0.015625
        %v1070 = vmul.f32 %v1040, 0.015625
        %v1071 = vmul.f32 %v1042, 0.015625
        %v1072 = vmul.f32 %v1044, 0.015625
        %v1073 = vmul.f32 %v1046, 0.015625
        %v1074 = vmul.f32 %v1048, 0.015625
        %v1075 = vmul.f32 %v1050, 0.015625
        %v1076 = vmul.f32 %v1052, 0.015625
        %v1077 = vmul.f32 %v1054, 0.015625
        %v1078 = vmul.f32 %v1056, 0.015625
        %v1079 = vmul.f32 %v1058, 0.015625
        %v1080 = vmul.f32 %v1060, 0.015625
        %v1081 = vmul.f32 %v1062, 0.015625
        %v1082 = vmul.f32 %v1064, 0.015625
        %v1083 = vmul.f32 %v1066, 0.015625
        %v1084 = vmul.f32 %v1068, 0.015625
        %v1085 = vsub.f32 %v990, %v1069
        %v1086 = vsub.f32 %v993, %v1070
        %v1087 = vsub.f32 %v996, %v1071
        %v1088 = vsub.f32 %v999, %v1072
        %v1089 = vsub.f32 %v1002, %v1073
        %v1090 = vsub.f32 %v1005, %v1074
        %v1091 = vsub.f32 %v1008, %v1075
        %v1092 = vsub.f32 %v1011, %v1076
        %v1093 = vsub.f32 %v1014, %v1077
        %v1094 = vsub.f32 %v1017, %v1078
        %v1095 = vsub.f32 %v1020, %v1079
        %v1096 = vsub.f32 %v1023, %v1080
        %v1097 = vsub.f32 %v1026, %v1081
        %v1098 = vsub.f32 %v1029, %v1082
        %v1099 = vsub.f32 %v1032, %v1083
        %v1100 = vsub.f32 %v1035, %v1084
        %v1101 = vlaneseq
        %v1102 = vand.u32 %v1101, 127
        %vm1103 = vcmp.lt.s32.totalorder %v1102, 64
        %v1104 = vsel %vm1103, %v1085, 0.0
        %v1105 = vsel %vm1103, %v1086, 0.0
        %v1106 = vsel %vm1103, %v1087, 0.0
        %v1107 = vsel %vm1103, %v1088, 0.0
        %v1108 = vsel %vm1103, %v1089, 0.0
        %v1109 = vsel %vm1103, %v1090, 0.0
        %v1110 = vsel %vm1103, %v1091, 0.0
        %v1111 = vsel %vm1103, %v1092, 0.0
        %v1112 = vsel %vm1103, %v1093, 0.0
        %v1113 = vsel %vm1103, %v1094, 0.0
        %v1114 = vsel %vm1103, %v1095, 0.0
        %v1115 = vsel %vm1103, %v1096, 0.0
        %v1116 = vsel %vm1103, %v1097, 0.0
        %v1117 = vsel %vm1103, %v1098, 0.0
        %v1118 = vsel %vm1103, %v1099, 0.0
        %v1119 = vsel %vm1103, %v1100, 0.0
        %v1120 = vmul.f32 %v1104, %v1104
        %v1121 = vmul.f32 %v1105, %v1105
        %v1122 = vmul.f32 %v1106, %v1106
        %v1123 = vmul.f32 %v1107, %v1107
        %v1124 = vmul.f32 %v1108, %v1108
        %v1125 = vmul.f32 %v1109, %v1109
        %v1126 = vmul.f32 %v1110, %v1110
        %v1127 = vmul.f32 %v1111, %v1111
        %v1128 = vmul.f32 %v1112, %v1112
        %v1129 = vmul.f32 %v1113, %v1113
        %v1130 = vmul.f32 %v1114, %v1114
        %v1131 = vmul.f32 %v1115, %v1115
        %v1132 = vmul.f32 %v1116, %v1116
        %v1133 = vmul.f32 %v1117, %v1117
        %v1134 = vmul.f32 %v1118, %v1118
        %v1135 = vmul.f32 %v1119, %v1119
        %1136 = vadd.xlane.f32.xlu0 %v1120
        %v1137 = vpop.xlane.xlu0 %1136
        %1138 = vadd.xlane.f32.xlu0 %v1121
        %v1139 = vpop.xlane.xlu0 %1138
        %1140 = vadd.xlane.f32.xlu0 %v1122
        %v1141 = vpop.xlane.xlu0 %1140
        %1142 = vadd.xlane.f32.xlu0 %v1123
        %v1143 = vpop.xlane.xlu0 %1142
        %1144 = vadd.xlane.f32.xlu0 %v1124
        %v1145 = vpop.xlane.xlu0 %1144
        %1146 = vadd.xlane.f32.xlu0 %v1125
        %v1147 = vpop.xlane.xlu0 %1146
        %1148 = vadd.xlane.f32.xlu0 %v1126
        %v1149 = vpop.xlane.xlu0 %1148
        %1150 = vadd.xlane.f32.xlu0 %v1127
        %v1151 = vpop.xlane.xlu0 %1150
        %1152 = vadd.xlane.f32.xlu0 %v1128
        %v1153 = vpop.xlane.xlu0 %1152
        %1154 = vadd.xlane.f32.xlu0 %v1129
        %v1155 = vpop.xlane.xlu0 %1154
        %1156 = vadd.xlane.f32.xlu0 %v1130
        %v1157 = vpop.xlane.xlu0 %1156
        %1158 = vadd.xlane.f32.xlu0 %v1131
        %v1159 = vpop.xlane.xlu0 %1158
        %1160 = vadd.xlane.f32.xlu0 %v1132
        %v1161 = vpop.xlane.xlu0 %1160
        %1162 = vadd.xlane.f32.xlu0 %v1133
        %v1163 = vpop.xlane.xlu0 %1162
        %1164 = vadd.xlane.f32.xlu0 %v1134
        %v1165 = vpop.xlane.xlu0 %1164
        %1166 = vadd.xlane.f32.xlu0 %v1135
        %v1167 = vpop.xlane.xlu0 %1166
        %v1168 = vmul.f32 %v1137, 0.015625
        %v1169 = vmul.f32 %v1139, 0.015625
        %v1170 = vmul.f32 %v1141, 0.015625
        %v1171 = vmul.f32 %v1143, 0.015625
        %v1172 = vmul.f32 %v1145, 0.015625
        %v1173 = vmul.f32 %v1147, 0.015625
        %v1174 = vmul.f32 %v1149, 0.015625
        %v1175 = vmul.f32 %v1151, 0.015625
        %v1176 = vmul.f32 %v1153, 0.015625
        %v1177 = vmul.f32 %v1155, 0.015625
        %v1178 = vmul.f32 %v1157, 0.015625
        %v1179 = vmul.f32 %v1159, 0.015625
        %v1180 = vmul.f32 %v1161, 0.015625
        %v1181 = vmul.f32 %v1163, 0.015625
        %v1182 = vmul.f32 %v1165, 0.015625
        %v1183 = vmul.f32 %v1167, 0.015625
        %v1184 = vadd.f32 %v1168, 1e-05
        %v1185 = vadd.f32 %v1169, 1e-05
        %v1186 = vadd.f32 %v1170, 1e-05
        %v1187 = vadd.f32 %v1171, 1e-05
        %v1188 = vadd.f32 %v1172, 1e-05
        %v1189 = vadd.f32 %v1173, 1e-05
        %v1190 = vadd.f32 %v1174, 1e-05
        %v1191 = vadd.f32 %v1175, 1e-05
        %v1192 = vadd.f32 %v1176, 1e-05
        %v1193 = vadd.f32 %v1177, 1e-05
        %v1194 = vadd.f32 %v1178, 1e-05
        %v1195 = vadd.f32 %v1179, 1e-05
        %v1196 = vadd.f32 %v1180, 1e-05
        %v1197 = vadd.f32 %v1181, 1e-05
        %v1198 = vadd.f32 %v1182, 1e-05
        %v1199 = vadd.f32 %v1183, 1e-05
        %v1200 = vrsqrt.pop %v1184
        %v1201 = vmul.f32 %v1200, %v1184
        %v1202 = vmul.f32 %v1201, %v1200
        %v1203 = vmul.f32 0.5, %v1202
        %v1204 = vsub.f32 1.5, %v1203
        %v1205 = vmul.f32 %v1200, %v1204
        %vm1206 = vweird.f32 %v1184
        %vm1207 = vweird.f32 %v1200
        %vm1208 = vmor %vm1206, %vm1207
        %v1209 = vsel %vm1208, %v1200, %v1205
        %v1210 = vrsqrt.pop %v1185
        %v1211 = vmul.f32 %v1210, %v1185
        %v1212 = vmul.f32 %v1211, %v1210
        %v1213 = vmul.f32 0.5, %v1212
        %v1214 = vsub.f32 1.5, %v1213
        %v1215 = vmul.f32 %v1210, %v1214
        %vm1216 = vweird.f32 %v1185
        %vm1217 = vweird.f32 %v1210
        %vm1218 = vmor %vm1216, %vm1217
        %v1219 = vsel %vm1218, %v1210, %v1215
        %v1220 = vrsqrt.pop %v1186
        %v1221 = vmul.f32 %v1220, %v1186
        %v1222 = vmul.f32 %v1221, %v1220
        %v1223 = vmul.f32 0.5, %v1222
        %v1224 = vsub.f32 1.5, %v1223
        %v1225 = vmul.f32 %v1220, %v1224
        %vm1226 = vweird.f32 %v1186
        %vm1227 = vweird.f32 %v1220
        %vm1228 = vmor %vm1226, %vm1227
        %v1229 = vsel %vm1228, %v1220, %v1225
        %v1230 = vrsqrt.pop %v1187
        %v1231 = vmul.f32 %v1230, %v1187
        %v1232 = vmul.f32 %v1231, %v1230
        %v1233 = vmul.f32 0.5, %v1232
        %v1234 = vsub.f32 1.5, %v1233
        %v1235 = vmul.f32 %v1230, %v1234
        %vm1236 = vweird.f32 %v1187
        %vm1237 = vweird.f32 %v1230
        %vm1238 = vmor %vm1236, %vm1237
        %v1239 = vsel %vm1238, %v1230, %v1235
        %v1240 = vrsqrt.pop %v1188
        %v1241 = vmul.f32 %v1240, %v1188
        %v1242 = vmul.f32 %v1241, %v1240
        %v1243 = vmul.f32 0.5, %v1242
        %v1244 = vsub.f32 1.5, %v1243
        %v1245 = vmul.f32 %v1240, %v1244
        %vm1246 = vweird.f32 %v1188
        %vm1247 = vweird.f32 %v1240
        %vm1248 = vmor %vm1246, %vm1247
        %v1249 = vsel %vm1248, %v1240, %v1245
        %v1250 = vrsqrt.pop %v1189
        %v1251 = vmul.f32 %v1250, %v1189
        %v1252 = vmul.f32 %v1251, %v1250
        %v1253 = vmul.f32 0.5, %v1252
        %v1254 = vsub.f32 1.5, %v1253
        %v1255 = vmul.f32 %v1250, %v1254
        %vm1256 = vweird.f32 %v1189
        %vm1257 = vweird.f32 %v1250
        %vm1258 = vmor %vm1256, %vm1257
        %v1259 = vsel %vm1258, %v1250, %v1255
        %v1260 = vrsqrt.pop %v1190
        %v1261 = vmul.f32 %v1260, %v1190
        %v1262 = vmul.f32 %v1261, %v1260
        %v1263 = vmul.f32 0.5, %v1262
        %v1264 = vsub.f32 1.5, %v1263
        %v1265 = vmul.f32 %v1260, %v1264
        %vm1266 = vweird.f32 %v1190
        %vm1267 = vweird.f32 %v1260
        %vm1268 = vmor %vm1266, %vm1267
        %v1269 = vsel %vm1268, %v1260, %v1265
        %v1270 = vrsqrt.pop %v1191
        %v1271 = vmul.f32 %v1270, %v1191
        %v1272 = vmul.f32 %v1271, %v1270
        %v1273 = vmul.f32 0.5, %v1272
        %v1274 = vsub.f32 1.5, %v1273
        %v1275 = vmul.f32 %v1270, %v1274
        %vm1276 = vweird.f32 %v1191
        %vm1277 = vweird.f32 %v1270
        %vm1278 = vmor %vm1276, %vm1277
        %v1279 = vsel %vm1278, %v1270, %v1275
        %v1280 = vrsqrt.pop %v1192
        %v1281 = vmul.f32 %v1280, %v1192
        %v1282 = vmul.f32 %v1281, %v1280
        %v1283 = vmul.f32 0.5, %v1282
        %v1284 = vsub.f32 1.5, %v1283
        %v1285 = vmul.f32 %v1280, %v1284
        %vm1286 = vweird.f32 %v1192
        %vm1287 = vweird.f32 %v1280
        %vm1288 = vmor %vm1286, %vm1287
        %v1289 = vsel %vm1288, %v1280, %v1285
        %v1290 = vrsqrt.pop %v1193
        %v1291 = vmul.f32 %v1290, %v1193
        %v1292 = vmul.f32 %v1291, %v1290
        %v1293 = vmul.f32 0.5, %v1292
        %v1294 = vsub.f32 1.5, %v1293
        %v1295 = vmul.f32 %v1290, %v1294
        %vm1296 = vweird.f32 %v1193
        %vm1297 = vweird.f32 %v1290
        %vm1298 = vmor %vm1296, %vm1297
        %v1299 = vsel %vm1298, %v1290, %v1295
        %v1300 = vrsqrt.pop %v1194
        %v1301 = vmul.f32 %v1300, %v1194
        %v1302 = vmul.f32 %v1301, %v1300
        %v1303 = vmul.f32 0.5, %v1302
        %v1304 = vsub.f32 1.5, %v1303
        %v1305 = vmul.f32 %v1300, %v1304
        %vm1306 = vweird.f32 %v1194
        %vm1307 = vweird.f32 %v1300
        %vm1308 = vmor %vm1306, %vm1307
        %v1309 = vsel %vm1308, %v1300, %v1305
        %v1310 = vrsqrt.pop %v1195
        %v1311 = vmul.f32 %v1310, %v1195
        %v1312 = vmul.f32 %v1311, %v1310
        %v1313 = vmul.f32 0.5, %v1312
        %v1314 = vsub.f32 1.5, %v1313
        %v1315 = vmul.f32 %v1310, %v1314
        %vm1316 = vweird.f32 %v1195
        %vm1317 = vweird.f32 %v1310
        %vm1318 = vmor %vm1316, %vm1317
        %v1319 = vsel %vm1318, %v1310, %v1315
        %v1320 = vrsqrt.pop %v1196
        %v1321 = vmul.f32 %v1320, %v1196
        %v1322 = vmul.f32 %v1321, %v1320
        %v1323 = vmul.f32 0.5, %v1322
        %v1324 = vsub.f32 1.5, %v1323
        %v1325 = vmul.f32 %v1320, %v1324
        %vm1326 = vweird.f32 %v1196
        %vm1327 = vweird.f32 %v1320
        %vm1328 = vmor %vm1326, %vm1327
        %v1329 = vsel %vm1328, %v1320, %v1325
        %v1330 = vrsqrt.pop %v1197
        %v1331 = vmul.f32 %v1330, %v1197
        %v1332 = vmul.f32 %v1331, %v1330
        %v1333 = vmul.f32 0.5, %v1332
        %v1334 = vsub.f32 1.5, %v1333
        %v1335 = vmul.f32 %v1330, %v1334
        %vm1336 = vweird.f32 %v1197
        %vm1337 = vweird.f32 %v1330
        %vm1338 = vmor %vm1336, %vm1337
        %v1339 = vsel %vm1338, %v1330, %v1335
        %v1340 = vrsqrt.pop %v1198
        %v1341 = vmul.f32 %v1340, %v1198
        %v1342 = vmul.f32 %v1341, %v1340
        %v1343 = vmul.f32 0.5, %v1342
        %v1344 = vsub.f32 1.5, %v1343
        %v1345 = vmul.f32 %v1340, %v1344
        %vm1346 = vweird.f32 %v1198
        %vm1347 = vweird.f32 %v1340
        %vm1348 = vmor %vm1346, %vm1347
        %v1349 = vsel %vm1348, %v1340, %v1345
        %v1350 = vrsqrt.pop %v1199
        %v1351 = vmul.f32 %v1350, %v1199
        %v1352 = vmul.f32 %v1351, %v1350
        %v1353 = vmul.f32 0.5, %v1352
        %v1354 = vsub.f32 1.5, %v1353
        %v1355 = vmul.f32 %v1350, %v1354
        %vm1356 = vweird.f32 %v1199
        %vm1357 = vweird.f32 %v1350
        %vm1358 = vmor %vm1356, %vm1357
        %v1359 = vsel %vm1358, %v1350, %v1355
        %v1360 = vmul.f32 %v1104, %v1209
        %v1361 = vmul.f32 %v1105, %v1219
        %v1362 = vmul.f32 %v1106, %v1229
        %v1363 = vmul.f32 %v1107, %v1239
        %v1364 = vmul.f32 %v1108, %v1249
        %v1365 = vmul.f32 %v1109, %v1259
        %v1366 = vmul.f32 %v1110, %v1269
        %v1367 = vmul.f32 %v1111, %v1279
        %v1368 = vmul.f32 %v1112, %v1289
        %v1369 = vmul.f32 %v1113, %v1299
        %v1370 = vmul.f32 %v1114, %v1309
        %v1371 = vmul.f32 %v1115, %v1319
        %v1372 = vmul.f32 %v1116, %v1329
        %v1373 = vmul.f32 %v1117, %v1339
        %v1374 = vmul.f32 %v1118, %v1349
        %v1375 = vmul.f32 %v1119, %v1359
        %v1376 = vld [vmem:[#allocation8] sm:$0x1]
        %v1378 = vperm.slane %v1376, 0
        %v1380 = vmul.f32 %v1360, %v1378
        %v1381 = vmul.f32 %v1361, %v1378
        %v1382 = vmul.f32 %v1362, %v1378
        %v1383 = vmul.f32 %v1363, %v1378
        %v1384 = vmul.f32 %v1364, %v1378
        %v1385 = vmul.f32 %v1365, %v1378
        %v1386 = vmul.f32 %v1366, %v1378
        %v1387 = vmul.f32 %v1367, %v1378
        %v1388 = vmul.f32 %v1368, %v1378
        %v1389 = vmul.f32 %v1369, %v1378
        %v1390 = vmul.f32 %v1370, %v1378
        %v1391 = vmul.f32 %v1371, %v1378
        %v1392 = vmul.f32 %v1372, %v1378
        %v1393 = vmul.f32 %v1373, %v1378
        %v1394 = vmul.f32 %v1374, %v1378
        %v1395 = vmul.f32 %v1375, %v1378
        %v1396 = vld [vmem:[%s5] sm:$0x1]
        %v1398 = vperm.slane %v1396, 0
        %v1400 = vadd.f32 %v1380, %v1398
        %v1401 = vadd.f32 %v1381, %v1398
        %v1402 = vadd.f32 %v1382, %v1398
        %v1403 = vadd.f32 %v1383, %v1398
        %v1404 = vadd.f32 %v1384, %v1398
        %v1405 = vadd.f32 %v1385, %v1398
        %v1406 = vadd.f32 %v1386, %v1398
        %v1407 = vadd.f32 %v1387, %v1398
        %v1408 = vadd.f32 %v1388, %v1398
        %v1409 = vadd.f32 %v1389, %v1398
        %v1410 = vadd.f32 %v1390, %v1398
        %v1411 = vadd.f32 %v1391, %v1398
        %v1412 = vadd.f32 %v1392, %v1398
        %v1413 = vadd.f32 %v1393, %v1398
        %v1414 = vadd.f32 %v1394, %v1398
        %v1415 = vadd.f32 %v1395, %v1398
        %vm1416 = vcmp.gt.f32.partialorder %v1400, 0.0
        %vm1417 = vcmp.gt.f32.partialorder %v1401, 0.0
        %vm1418 = vcmp.gt.f32.partialorder %v1402, 0.0
        %vm1419 = vcmp.gt.f32.partialorder %v1403, 0.0
        %vm1420 = vcmp.gt.f32.partialorder %v1404, 0.0
        %vm1421 = vcmp.gt.f32.partialorder %v1405, 0.0
        %vm1422 = vcmp.gt.f32.partialorder %v1406, 0.0
        %vm1423 = vcmp.gt.f32.partialorder %v1407, 0.0
        %vm1424 = vcmp.gt.f32.partialorder %v1408, 0.0
        %vm1425 = vcmp.gt.f32.partialorder %v1409, 0.0
        %vm1426 = vcmp.gt.f32.partialorder %v1410, 0.0
        %vm1427 = vcmp.gt.f32.partialorder %v1411, 0.0
        %vm1428 = vcmp.gt.f32.partialorder %v1412, 0.0
        %vm1429 = vcmp.gt.f32.partialorder %v1413, 0.0
        %vm1430 = vcmp.gt.f32.partialorder %v1414, 0.0
        %vm1431 = vcmp.gt.f32.partialorder %v1415, 0.0
        %v1432 = vmul.f32 %v1400, 0.2
        %v1433 = vmul.f32 %v1401, 0.2
        %v1434 = vmul.f32 %v1402, 0.2
        %v1435 = vmul.f32 %v1403, 0.2
        %v1436 = vmul.f32 %v1404, 0.2
        %v1437 = vmul.f32 %v1405, 0.2
        %v1438 = vmul.f32 %v1406, 0.2
        %v1439 = vmul.f32 %v1407, 0.2
        %v1440 = vmul.f32 %v1408, 0.2
        %v1441 = vmul.f32 %v1409, 0.2
        %v1442 = vmul.f32 %v1410, 0.2
        %v1443 = vmul.f32 %v1411, 0.2
        %v1444 = vmul.f32 %v1412, 0.2
        %v1445 = vmul.f32 %v1413, 0.2
        %v1446 = vmul.f32 %v1414, 0.2
        %v1447 = vmul.f32 %v1415, 0.2
        %v1448 = vsel %vm1416, %v1400, %v1432
        %v1449 = vsel %vm1417, %v1401, %v1433
        %v1450 = vsel %vm1418, %v1402, %v1434
        %v1451 = vsel %vm1419, %v1403, %v1435
        %v1452 = vsel %vm1420, %v1404, %v1436
        %v1453 = vsel %vm1421, %v1405, %v1437
        %v1454 = vsel %vm1422, %v1406, %v1438
        %v1455 = vsel %vm1423, %v1407, %v1439
        %v1456 = vsel %vm1424, %v1408, %v1440
        %v1457 = vsel %vm1425, %v1409, %v1441
        %v1458 = vsel %vm1426, %v1410, %v1442
        %v1459 = vsel %vm1427, %v1411, %v1443
        %v1460 = vsel %vm1428, %v1412, %v1444
        %v1461 = vsel %vm1429, %v1413, %v1445
        %v1462 = vsel %vm1430, %v1414, %v1446
        %v1463 = vsel %vm1431, %v1415, %v1447
        %v1464 = vld [vmem:[#allocation10] sm:$0xff]
        %v1465 = vld [vmem:[#allocation10 + $0x8] sm:$0xff]
        %v1466 = vld [vmem:[#allocation10 + $0x10] sm:$0xff]
        %v1467 = vld [vmem:[#allocation10 + $0x18] sm:$0xff]
        %v1468 = vld [vmem:[#allocation10 + $0x20] sm:$0xff]
        %v1469 = vld [vmem:[#allocation10 + $0x28] sm:$0xff]
        %v1470 = vld [vmem:[#allocation10 + $0x30] sm:$0xff]
        %v1471 = vld [vmem:[#allocation10 + $0x38] sm:$0xff]
        %v1472 = vld [vmem:[#allocation10 + $0x40] sm:$0xff]
        %v1473 = vld [vmem:[#allocation10 + $0x48] sm:$0xff]
        %v1474 = vld [vmem:[#allocation10 + $0x50] sm:$0xff]
        %v1475 = vld [vmem:[#allocation10 + $0x58] sm:$0xff]
        %v1476 = vld [vmem:[#allocation10 + $0x60] sm:$0xff]
        %v1477 = vld [vmem:[#allocation10 + $0x68] sm:$0xff]
        %v1478 = vld [vmem:[#allocation10 + $0x70] sm:$0xff]
        %v1479 = vld [vmem:[#allocation10 + $0x78] sm:$0xff]
        %v1480 = vld [vmem:[%s7] sm:$0x1]
        %v1482 = vperm.slane %v1480, 0
        %1484 = vmatpush.msra.mxu0 %v1479
        %1485 = vmatpush.msra.mxu0 %v1478
        %1486 = vmatpush.msra.mxu0 %v1477
        %1487 = vmatpush.msra.mxu0 %v1476
        %1488 = vmatpush.msra.mxu0 %v1475
        %1489 = vmatpush.msra.mxu0 %v1474
        %1490 = vmatpush.msra.mxu0 %v1473
        %1491 = vmatpush.msra.mxu0 %v1472
        %1492 = vmatpush.msra.mxu0 %v1471
        %1493 = vmatpush.msra.mxu0 %v1470
        %1494 = vmatpush.msra.mxu0 %v1469
        %1495 = vmatpush.msra.mxu0 %v1468
        %1496 = vmatpush.msra.mxu0 %v1467
        %1497 = vmatpush.msra.mxu0 %v1466
        %1498 = vmatpush.msra.mxu0 %v1465
        %1499 = vmatpush.msra.mxu0 %v1464
        %1500 = vmatmul.f32.gmra.mxu0 %v1448
        %v1501 = vpop.f32.mrf.mxu0
        %v1502 = vadd.f32 %v1482, %v1501
        %1503 = vmatmul.f32.gmra.mxu0 %v1449
        %v1504 = vpop.f32.mrf.mxu0
        %v1505 = vadd.f32 %v1482, %v1504
        %1506 = vmatmul.f32.gmra.mxu0 %v1450
        %v1507 = vpop.f32.mrf.mxu0
        %v1508 = vadd.f32 %v1482, %v1507
        %1509 = vmatmul.f32.gmra.mxu0 %v1451
        %v1510 = vpop.f32.mrf.mxu0
        %v1511 = vadd.f32 %v1482, %v1510
        %1512 = vmatmul.f32.gmra.mxu0 %v1452
        %v1513 = vpop.f32.mrf.mxu0
        %v1514 = vadd.f32 %v1482, %v1513
        %1515 = vmatmul.f32.gmra.mxu0 %v1453
        %v1516 = vpop.f32.mrf.mxu0
        %v1517 = vadd.f32 %v1482, %v1516
        %1518 = vmatmul.f32.gmra.mxu0 %v1454
        %v1519 = vpop.f32.mrf.mxu0
        %v1520 = vadd.f32 %v1482, %v1519
        %1521 = vmatmul.f32.gmra.mxu0 %v1455
        %v1522 = vpop.f32.mrf.mxu0
        %v1523 = vadd.f32 %v1482, %v1522
        %1524 = vmatmul.f32.gmra.mxu0 %v1456
        %v1525 = vpop.f32.mrf.mxu0
        %v1526 = vadd.f32 %v1482, %v1525
        %1527 = vmatmul.f32.gmra.mxu0 %v1457
        %v1528 = vpop.f32.mrf.mxu0
        %v1529 = vadd.f32 %v1482, %v1528
        %1530 = vmatmul.f32.gmra.mxu0 %v1458
        %v1531 = vpop.f32.mrf.mxu0
        %v1532 = vadd.f32 %v1482, %v1531
        %1533 = vmatmul.f32.gmra.mxu0 %v1459
        %v1534 = vpop.f32.mrf.mxu0
        %v1535 = vadd.f32 %v1482, %v1534
        %1536 = vmatmul.f32.gmra.mxu0 %v1460
        %v1537 = vpop.f32.mrf.mxu0
        %v1538 = vadd.f32 %v1482, %v1537
        %1539 = vmatmul.f32.gmra.mxu0 %v1461
        %v1540 = vpop.f32.mrf.mxu0
        %v1541 = vadd.f32 %v1482, %v1540
        %1542 = vmatmul.f32.gmra.mxu0 %v1462
        %v1543 = vpop.f32.mrf.mxu0
        %v1544 = vadd.f32 %v1482, %v1543
        %1545 = vmatmul.f32.gmra.mxu0 %v1463
        %v1546 = vpop.f32.mrf.mxu0
        %v1547 = vadd.f32 %v1482, %v1546
        %1548 = vdwg.mxu0
        %1549 = vadd.xlane.f32.xlu0 %v1502
        %v1550 = vpop.xlane.xlu0 %1549
        %1551 = vadd.xlane.f32.xlu0 %v1505
        %v1552 = vpop.xlane.xlu0 %1551
        %1553 = vadd.xlane.f32.xlu0 %v1508
        %v1554 = vpop.xlane.xlu0 %1553
        %1555 = vadd.xlane.f32.xlu0 %v1511
        %v1556 = vpop.xlane.xlu0 %1555
        %1557 = vadd.xlane.f32.xlu0 %v1514
        %v1558 = vpop.xlane.xlu0 %1557
        %1559 = vadd.xlane.f32.xlu0 %v1517
        %v1560 = vpop.xlane.xlu0 %1559
        %1561 = vadd.xlane.f32.xlu0 %v1520
        %v1562 = vpop.xlane.xlu0 %1561
        %1563 = vadd.xlane.f32.xlu0 %v1523
        %v1564 = vpop.xlane.xlu0 %1563
        %1565 = vadd.xlane.f32.xlu0 %v1526
        %v1566 = vpop.xlane.xlu0 %1565
        %1567 = vadd.xlane.f32.xlu0 %v1529
        %v1568 = vpop.xlane.xlu0 %1567
        %1569 = vadd.xlane.f32.xlu0 %v1532
        %v1570 = vpop.xlane.xlu0 %1569
        %1571 = vadd.xlane.f32.xlu0 %v1535
        %v1572 = vpop.xlane.xlu0 %1571
        %1573 = vadd.xlane.f32.xlu0 %v1538
        %v1574 = vpop.xlane.xlu0 %1573
        %1575 = vadd.xlane.f32.xlu0 %v1541
        %v1576 = vpop.xlane.xlu0 %1575
        %1577 = vadd.xlane.f32.xlu0 %v1544
        %v1578 = vpop.xlane.xlu0 %1577
        %1579 = vadd.xlane.f32.xlu0 %v1547
        %v1580 = vpop.xlane.xlu0 %1579
        %v1581 = vmul.f32 %v1550, 0.03125
        %v1582 = vmul.f32 %v1552, 0.03125
        %v1583 = vmul.f32 %v1554, 0.03125
        %v1584 = vmul.f32 %v1556, 0.03125
        %v1585 = vmul.f32 %v1558, 0.03125
        %v1586 = vmul.f32 %v1560, 0.03125
        %v1587 = vmul.f32 %v1562, 0.03125
        %v1588 = vmul.f32 %v1564, 0.03125
        %v1589 = vmul.f32 %v1566, 0.03125
        %v1590 = vmul.f32 %v1568, 0.03125
        %v1591 = vmul.f32 %v1570, 0.03125
        %v1592 = vmul.f32 %v1572, 0.03125
        %v1593 = vmul.f32 %v1574, 0.03125
        %v1594 = vmul.f32 %v1576, 0.03125
        %v1595 = vmul.f32 %v1578, 0.03125
        %v1596 = vmul.f32 %v1580, 0.03125
        %v1597 = vsub.f32 %v1502, %v1581
        %v1598 = vsub.f32 %v1505, %v1582
        %v1599 = vsub.f32 %v1508, %v1583
        %v1600 = vsub.f32 %v1511, %v1584
        %v1601 = vsub.f32 %v1514, %v1585
        %v1602 = vsub.f32 %v1517, %v1586
        %v1603 = vsub.f32 %v1520, %v1587
        %v1604 = vsub.f32 %v1523, %v1588
        %v1605 = vsub.f32 %v1526, %v1589
        %v1606 = vsub.f32 %v1529, %v1590
        %v1607 = vsub.f32 %v1532, %v1591
        %v1608 = vsub.f32 %v1535, %v1592
        %v1609 = vsub.f32 %v1538, %v1593
        %v1610 = vsub.f32 %v1541, %v1594
        %v1611 = vsub.f32 %v1544, %v1595
        %v1612 = vsub.f32 %v1547, %v1596
        %vm1613 = vcmp.lt.s32.totalorder %v1102, 32
        %v1614 = vsel %vm1613, %v1597, 0.0
        %v1615 = vsel %vm1613, %v1598, 0.0
        %v1616 = vsel %vm1613, %v1599, 0.0
        %v1617 = vsel %vm1613, %v1600, 0.0
        %v1618 = vsel %vm1613, %v1601, 0.0
        %v1619 = vsel %vm1613, %v1602, 0.0
        %v1620 = vsel %vm1613, %v1603, 0.0
        %v1621 = vsel %vm1613, %v1604, 0.0
        %v1622 = vsel %vm1613, %v1605, 0.0
        %v1623 = vsel %vm1613, %v1606, 0.0
        %v1624 = vsel %vm1613, %v1607, 0.0
        %v1625 = vsel %vm1613, %v1608, 0.0
        %v1626 = vsel %vm1613, %v1609, 0.0
        %v1627 = vsel %vm1613, %v1610, 0.0
        %v1628 = vsel %vm1613, %v1611, 0.0
        %v1629 = vsel %vm1613, %v1612, 0.0
        %v1630 = vmul.f32 %v1614, %v1614
        %v1631 = vmul.f32 %v1615, %v1615
        %v1632 = vmul.f32 %v1616, %v1616
        %v1633 = vmul.f32 %v1617, %v1617
        %v1634 = vmul.f32 %v1618, %v1618
        %v1635 = vmul.f32 %v1619, %v1619
        %v1636 = vmul.f32 %v1620, %v1620
        %v1637 = vmul.f32 %v1621, %v1621
        %v1638 = vmul.f32 %v1622, %v1622
        %v1639 = vmul.f32 %v1623, %v1623
        %v1640 = vmul.f32 %v1624, %v1624
        %v1641 = vmul.f32 %v1625, %v1625
        %v1642 = vmul.f32 %v1626, %v1626
        %v1643 = vmul.f32 %v1627, %v1627
        %v1644 = vmul.f32 %v1628, %v1628
        %v1645 = vmul.f32 %v1629, %v1629
        %1646 = vadd.xlane.f32.xlu0 %v1630
        %v1647 = vpop.xlane.xlu0 %1646
        %1648 = vadd.xlane.f32.xlu0 %v1631
        %v1649 = vpop.xlane.xlu0 %1648
        %1650 = vadd.xlane.f32.xlu0 %v1632
        %v1651 = vpop.xlane.xlu0 %1650
        %1652 = vadd.xlane.f32.xlu0 %v1633
        %v1653 = vpop.xlane.xlu0 %1652
        %1654 = vadd.xlane.f32.xlu0 %v1634
        %v1655 = vpop.xlane.xlu0 %1654
        %1656 = vadd.xlane.f32.xlu0 %v1635
        %v1657 = vpop.xlane.xlu0 %1656
        %1658 = vadd.xlane.f32.xlu0 %v1636
        %v1659 = vpop.xlane.xlu0 %1658
        %1660 = vadd.xlane.f32.xlu0 %v1637
        %v1661 = vpop.xlane.xlu0 %1660
        %1662 = vadd.xlane.f32.xlu0 %v1638
        %v1663 = vpop.xlane.xlu0 %1662
        %1664 = vadd.xlane.f32.xlu0 %v1639
        %v1665 = vpop.xlane.xlu0 %1664
        %1666 = vadd.xlane.f32.xlu0 %v1640
        %v1667 = vpop.xlane.xlu0 %1666
        %1668 = vadd.xlane.f32.xlu0 %v1641
        %v1669 = vpop.xlane.xlu0 %1668
        %1670 = vadd.xlane.f32.xlu0 %v1642
        %v1671 = vpop.xlane.xlu0 %1670
        %1672 = vadd.xlane.f32.xlu0 %v1643
        %v1673 = vpop.xlane.xlu0 %1672
        %1674 = vadd.xlane.f32.xlu0 %v1644
        %v1675 = vpop.xlane.xlu0 %1674
        %1676 = vadd.xlane.f32.xlu0 %v1645
        %v1677 = vpop.xlane.xlu0 %1676
        %v1678 = vmul.f32 %v1647, 0.03125
        %v1679 = vmul.f32 %v1649, 0.03125
        %v1680 = vmul.f32 %v1651, 0.03125
        %v1681 = vmul.f32 %v1653, 0.03125
        %v1682 = vmul.f32 %v1655, 0.03125
        %v1683 = vmul.f32 %v1657, 0.03125
        %v1684 = vmul.f32 %v1659, 0.03125
        %v1685 = vmul.f32 %v1661, 0.03125
        %v1686 = vmul.f32 %v1663, 0.03125
        %v1687 = vmul.f32 %v1665, 0.03125
        %v1688 = vmul.f32 %v1667, 0.03125
        %v1689 = vmul.f32 %v1669, 0.03125
        %v1690 = vmul.f32 %v1671, 0.03125
        %v1691 = vmul.f32 %v1673, 0.03125
        %v1692 = vmul.f32 %v1675, 0.03125
        %v1693 = vmul.f32 %v1677, 0.03125
        %v1694 = vadd.f32 %v1678, 1e-05
        %v1695 = vadd.f32 %v1679, 1e-05
        %v1696 = vadd.f32 %v1680, 1e-05
        %v1697 = vadd.f32 %v1681, 1e-05
        %v1698 = vadd.f32 %v1682, 1e-05
        %v1699 = vadd.f32 %v1683, 1e-05
        %v1700 = vadd.f32 %v1684, 1e-05
        %v1701 = vadd.f32 %v1685, 1e-05
        %v1702 = vadd.f32 %v1686, 1e-05
        %v1703 = vadd.f32 %v1687, 1e-05
        %v1704 = vadd.f32 %v1688, 1e-05
        %v1705 = vadd.f32 %v1689, 1e-05
        %v1706 = vadd.f32 %v1690, 1e-05
        %v1707 = vadd.f32 %v1691, 1e-05
        %v1708 = vadd.f32 %v1692, 1e-05
        %v1709 = vadd.f32 %v1693, 1e-05
        %v1710 = vrsqrt.pop %v1694
        %v1711 = vmul.f32 %v1710, %v1694
        %v1712 = vmul.f32 %v1711, %v1710
        %v1713 = vmul.f32 0.5, %v1712
        %v1714 = vsub.f32 1.5, %v1713
        %v1715 = vmul.f32 %v1710, %v1714
        %vm1716 = vweird.f32 %v1694
        %vm1717 = vweird.f32 %v1710
        %vm1718 = vmor %vm1716, %vm1717
        %v1719 = vsel %vm1718, %v1710, %v1715
        %v1720 = vrsqrt.pop %v1695
        %v1721 = vmul.f32 %v1720, %v1695
        %v1722 = vmul.f32 %v1721, %v1720
        %v1723 = vmul.f32 0.5, %v1722
        %v1724 = vsub.f32 1.5, %v1723
        %v1725 = vmul.f32 %v1720, %v1724
        %vm1726 = vweird.f32 %v1695
        %vm1727 = vweird.f32 %v1720
        %vm1728 = vmor %vm1726, %vm1727
        %v1729 = vsel %vm1728, %v1720, %v1725
        %v1730 = vrsqrt.pop %v1696
        %v1731 = vmul.f32 %v1730, %v1696
        %v1732 = vmul.f32 %v1731, %v1730
        %v1733 = vmul.f32 0.5, %v1732
        %v1734 = vsub.f32 1.5, %v1733
        %v1735 = vmul.f32 %v1730, %v1734
        %vm1736 = vweird.f32 %v1696
        %vm1737 = vweird.f32 %v1730
        %vm1738 = vmor %vm1736, %vm1737
        %v1739 = vsel %vm1738, %v1730, %v1735
        %v1740 = vrsqrt.pop %v1697
        %v1741 = vmul.f32 %v1740, %v1697
        %v1742 = vmul.f32 %v1741, %v1740
        %v1743 = vmul.f32 0.5, %v1742
        %v1744 = vsub.f32 1.5, %v1743
        %v1745 = vmul.f32 %v1740, %v1744
        %vm1746 = vweird.f32 %v1697
        %vm1747 = vweird.f32 %v1740
        %vm1748 = vmor %vm1746, %vm1747
        %v1749 = vsel %vm1748, %v1740, %v1745
        %v1750 = vrsqrt.pop %v1698
        %v1751 = vmul.f32 %v1750, %v1698
        %v1752 = vmul.f32 %v1751, %v1750
        %v1753 = vmul.f32 0.5, %v1752
        %v1754 = vsub.f32 1.5, %v1753
        %v1755 = vmul.f32 %v1750, %v1754
        %vm1756 = vweird.f32 %v1698
        %vm1757 = vweird.f32 %v1750
        %vm1758 = vmor %vm1756, %vm1757
        %v1759 = vsel %vm1758, %v1750, %v1755
        %v1760 = vrsqrt.pop %v1699
        %v1761 = vmul.f32 %v1760, %v1699
        %v1762 = vmul.f32 %v1761, %v1760
        %v1763 = vmul.f32 0.5, %v1762
        %v1764 = vsub.f32 1.5, %v1763
        %v1765 = vmul.f32 %v1760, %v1764
        %vm1766 = vweird.f32 %v1699
        %vm1767 = vweird.f32 %v1760
        %vm1768 = vmor %vm1766, %vm1767
        %v1769 = vsel %vm1768, %v1760, %v1765
        %v1770 = vrsqrt.pop %v1700
        %v1771 = vmul.f32 %v1770, %v1700
        %v1772 = vmul.f32 %v1771, %v1770
        %v1773 = vmul.f32 0.5, %v1772
        %v1774 = vsub.f32 1.5, %v1773
        %v1775 = vmul.f32 %v1770, %v1774
        %vm1776 = vweird.f32 %v1700
        %vm1777 = vweird.f32 %v1770
        %vm1778 = vmor %vm1776, %vm1777
        %v1779 = vsel %vm1778, %v1770, %v1775
        %v1780 = vrsqrt.pop %v1701
        %v1781 = vmul.f32 %v1780, %v1701
        %v1782 = vmul.f32 %v1781, %v1780
        %v1783 = vmul.f32 0.5, %v1782
        %v1784 = vsub.f32 1.5, %v1783
        %v1785 = vmul.f32 %v1780, %v1784
        %vm1786 = vweird.f32 %v1701
        %vm1787 = vweird.f32 %v1780
        %vm1788 = vmor %vm1786, %vm1787
        %v1789 = vsel %vm1788, %v1780, %v1785
        %v1790 = vrsqrt.pop %v1702
        %v1791 = vmul.f32 %v1790, %v1702
        %v1792 = vmul.f32 %v1791, %v1790
        %v1793 = vmul.f32 0.5, %v1792
        %v1794 = vsub.f32 1.5, %v1793
        %v1795 = vmul.f32 %v1790, %v1794
        %vm1796 = vweird.f32 %v1702
        %vm1797 = vweird.f32 %v1790
        %vm1798 = vmor %vm1796, %vm1797
        %v1799 = vsel %vm1798, %v1790, %v1795
        %v1800 = vrsqrt.pop %v1703
        %v1801 = vmul.f32 %v1800, %v1703
        %v1802 = vmul.f32 %v1801, %v1800
        %v1803 = vmul.f32 0.5, %v1802
        %v1804 = vsub.f32 1.5, %v1803
        %v1805 = vmul.f32 %v1800, %v1804
        %vm1806 = vweird.f32 %v1703
        %vm1807 = vweird.f32 %v1800
        %vm1808 = vmor %vm1806, %vm1807
        %v1809 = vsel %vm1808, %v1800, %v1805
        %v1810 = vrsqrt.pop %v1704
        %v1811 = vmul.f32 %v1810, %v1704
        %v1812 = vmul.f32 %v1811, %v1810
        %v1813 = vmul.f32 0.5, %v1812
        %v1814 = vsub.f32 1.5, %v1813
        %v1815 = vmul.f32 %v1810, %v1814
        %vm1816 = vweird.f32 %v1704
        %vm1817 = vweird.f32 %v1810
        %vm1818 = vmor %vm1816, %vm1817
        %v1819 = vsel %vm1818, %v1810, %v1815
        %v1820 = vrsqrt.pop %v1705
        %v1821 = vmul.f32 %v1820, %v1705
        %v1822 = vmul.f32 %v1821, %v1820
        %v1823 = vmul.f32 0.5, %v1822
        %v1824 = vsub.f32 1.5, %v1823
        %v1825 = vmul.f32 %v1820, %v1824
        %vm1826 = vweird.f32 %v1705
        %vm1827 = vweird.f32 %v1820
        %vm1828 = vmor %vm1826, %vm1827
        %v1829 = vsel %vm1828, %v1820, %v1825
        %v1830 = vrsqrt.pop %v1706
        %v1831 = vmul.f32 %v1830, %v1706
        %v1832 = vmul.f32 %v1831, %v1830
        %v1833 = vmul.f32 0.5, %v1832
        %v1834 = vsub.f32 1.5, %v1833
        %v1835 = vmul.f32 %v1830, %v1834
        %vm1836 = vweird.f32 %v1706
        %vm1837 = vweird.f32 %v1830
        %vm1838 = vmor %vm1836, %vm1837
        %v1839 = vsel %vm1838, %v1830, %v1835
        %v1840 = vrsqrt.pop %v1707
        %v1841 = vmul.f32 %v1840, %v1707
        %v1842 = vmul.f32 %v1841, %v1840
        %v1843 = vmul.f32 0.5, %v1842
        %v1844 = vsub.f32 1.5, %v1843
        %v1845 = vmul.f32 %v1840, %v1844
        %vm1846 = vweird.f32 %v1707
        %vm1847 = vweird.f32 %v1840
        %vm1848 = vmor %vm1846, %vm1847
        %v1849 = vsel %vm1848, %v1840, %v1845
        %v1850 = vrsqrt.pop %v1708
        %v1851 = vmul.f32 %v1850, %v1708
        %v1852 = vmul.f32 %v1851, %v1850
        %v1853 = vmul.f32 0.5, %v1852
        %v1854 = vsub.f32 1.5, %v1853
        %v1855 = vmul.f32 %v1850, %v1854
        %vm1856 = vweird.f32 %v1708
        %vm1857 = vweird.f32 %v1850
        %vm1858 = vmor %vm1856, %vm1857
        %v1859 = vsel %vm1858, %v1850, %v1855
        %v1860 = vrsqrt.pop %v1709
        %v1861 = vmul.f32 %v1860, %v1709
        %v1862 = vmul.f32 %v1861, %v1860
        %v1863 = vmul.f32 0.5, %v1862
        %v1864 = vsub.f32 1.5, %v1863
        %v1865 = vmul.f32 %v1860, %v1864
        %vm1866 = vweird.f32 %v1709
        %vm1867 = vweird.f32 %v1860
        %vm1868 = vmor %vm1866, %vm1867
        %v1869 = vsel %vm1868, %v1860, %v1865
        %v1870 = vmul.f32 %v1614, %v1719
        %v1871 = vmul.f32 %v1615, %v1729
        %v1872 = vmul.f32 %v1616, %v1739
        %v1873 = vmul.f32 %v1617, %v1749
        %v1874 = vmul.f32 %v1618, %v1759
        %v1875 = vmul.f32 %v1619, %v1769
        %v1876 = vmul.f32 %v1620, %v1779
        %v1877 = vmul.f32 %v1621, %v1789
        %v1878 = vmul.f32 %v1622, %v1799
        %v1879 = vmul.f32 %v1623, %v1809
        %v1880 = vmul.f32 %v1624, %v1819
        %v1881 = vmul.f32 %v1625, %v1829
        %v1882 = vmul.f32 %v1626, %v1839
        %v1883 = vmul.f32 %v1627, %v1849
        %v1884 = vmul.f32 %v1628, %v1859
        %v1885 = vmul.f32 %v1629, %v1869
        %v1886 = vld [vmem:[%s8] sm:$0x1]
        %v1888 = vperm.slane %v1886, 0
        %v1890 = vmul.f32 %v1870, %v1888
        %v1891 = vmul.f32 %v1871, %v1888
        %v1892 = vmul.f32 %v1872, %v1888
        %v1893 = vmul.f32 %v1873, %v1888
        %v1894 = vmul.f32 %v1874, %v1888
        %v1895 = vmul.f32 %v1875, %v1888
        %v1896 = vmul.f32 %v1876, %v1888
        %v1897 = vmul.f32 %v1877, %v1888
        %v1898 = vmul.f32 %v1878, %v1888
        %v1899 = vmul.f32 %v1879, %v1888
        %v1900 = vmul.f32 %v1880, %v1888
        %v1901 = vmul.f32 %v1881, %v1888
        %v1902 = vmul.f32 %v1882, %v1888
        %v1903 = vmul.f32 %v1883, %v1888
        %v1904 = vmul.f32 %v1884, %v1888
        %v1905 = vmul.f32 %v1885, %v1888
        %v1906 = vld [vmem:[%s9] sm:$0x1]
        %v1908 = vperm.slane %v1906, 0
        %v1910 = vadd.f32 %v1890, %v1908
        %v1911 = vadd.f32 %v1891, %v1908
        %v1912 = vadd.f32 %v1892, %v1908
        %v1913 = vadd.f32 %v1893, %v1908
        %v1914 = vadd.f32 %v1894, %v1908
        %v1915 = vadd.f32 %v1895, %v1908
        %v1916 = vadd.f32 %v1896, %v1908
        %v1917 = vadd.f32 %v1897, %v1908
        %v1918 = vadd.f32 %v1898, %v1908
        %v1919 = vadd.f32 %v1899, %v1908
        %v1920 = vadd.f32 %v1900, %v1908
        %v1921 = vadd.f32 %v1901, %v1908
        %v1922 = vadd.f32 %v1902, %v1908
        %v1923 = vadd.f32 %v1903, %v1908
        %v1924 = vadd.f32 %v1904, %v1908
        %v1925 = vadd.f32 %v1905, %v1908
        %vm1926 = vcmp.gt.f32.partialorder %v1910, 0.0
        %vm1927 = vcmp.gt.f32.partialorder %v1911, 0.0
        %vm1928 = vcmp.gt.f32.partialorder %v1912, 0.0
        %vm1929 = vcmp.gt.f32.partialorder %v1913, 0.0
        %vm1930 = vcmp.gt.f32.partialorder %v1914, 0.0
        %vm1931 = vcmp.gt.f32.partialorder %v1915, 0.0
        %vm1932 = vcmp.gt.f32.partialorder %v1916, 0.0
        %vm1933 = vcmp.gt.f32.partialorder %v1917, 0.0
        %vm1934 = vcmp.gt.f32.partialorder %v1918, 0.0
        %vm1935 = vcmp.gt.f32.partialorder %v1919, 0.0
        %vm1936 = vcmp.gt.f32.partialorder %v1920, 0.0
        %vm1937 = vcmp.gt.f32.partialorder %v1921, 0.0
        %vm1938 = vcmp.gt.f32.partialorder %v1922, 0.0
        %vm1939 = vcmp.gt.f32.partialorder %v1923, 0.0
        %vm1940 = vcmp.gt.f32.partialorder %v1924, 0.0
        %vm1941 = vcmp.gt.f32.partialorder %v1925, 0.0
        %v1942 = vmul.f32 %v1910, 0.2
        %v1943 = vmul.f32 %v1911, 0.2
        %v1944 = vmul.f32 %v1912, 0.2
        %v1945 = vmul.f32 %v1913, 0.2
        %v1946 = vmul.f32 %v1914, 0.2
        %v1947 = vmul.f32 %v1915, 0.2
        %v1948 = vmul.f32 %v1916, 0.2
        %v1949 = vmul.f32 %v1917, 0.2
        %v1950 = vmul.f32 %v1918, 0.2
        %v1951 = vmul.f32 %v1919, 0.2
        %v1952 = vmul.f32 %v1920, 0.2
        %v1953 = vmul.f32 %v1921, 0.2
        %v1954 = vmul.f32 %v1922, 0.2
        %v1955 = vmul.f32 %v1923, 0.2
        %v1956 = vmul.f32 %v1924, 0.2
        %v1957 = vmul.f32 %v1925, 0.2
        %v1958 = vsel %vm1926, %v1910, %v1942
        %v1959 = vsel %vm1927, %v1911, %v1943
        %v1960 = vsel %vm1928, %v1912, %v1944
        %v1961 = vsel %vm1929, %v1913, %v1945
        %v1962 = vsel %vm1930, %v1914, %v1946
        %v1963 = vsel %vm1931, %v1915, %v1947
        %v1964 = vsel %vm1932, %v1916, %v1948
        %v1965 = vsel %vm1933, %v1917, %v1949
        %v1966 = vsel %vm1934, %v1918, %v1950
        %v1967 = vsel %vm1935, %v1919, %v1951
        %v1968 = vsel %vm1936, %v1920, %v1952
        %v1969 = vsel %vm1937, %v1921, %v1953
        %v1970 = vsel %vm1938, %v1922, %v1954
        %v1971 = vsel %vm1939, %v1923, %v1955
        %v1972 = vsel %vm1940, %v1924, %v1956
        %v1973 = vsel %vm1941, %v1925, %v1957
        %v1974 = vld [vmem:[#allocation11] sm:$0xff]
        %v1975 = vld [vmem:[#allocation11 + $0x8] sm:$0xff]
        %v1976 = vld [vmem:[#allocation11 + $0x10] sm:$0xff]
        %v1977 = vld [vmem:[#allocation11 + $0x18] sm:$0xff]
        %v1978 = vld [vmem:[#allocation11 + $0x20] sm:$0xff]
        %v1979 = vld [vmem:[#allocation11 + $0x28] sm:$0xff]
        %v1980 = vld [vmem:[#allocation11 + $0x30] sm:$0xff]
        %v1981 = vld [vmem:[#allocation11 + $0x38] sm:$0xff]
        %v1982 = vld [vmem:[#allocation11 + $0x40] sm:$0xff]
        %v1983 = vld [vmem:[#allocation11 + $0x48] sm:$0xff]
        %v1984 = vld [vmem:[#allocation11 + $0x50] sm:$0xff]
        %v1985 = vld [vmem:[#allocation11 + $0x58] sm:$0xff]
        %v1986 = vld [vmem:[#allocation11 + $0x60] sm:$0xff]
        %v1987 = vld [vmem:[#allocation11 + $0x68] sm:$0xff]
        %v1988 = vld [vmem:[#allocation11 + $0x70] sm:$0xff]
        %v1989 = vld [vmem:[#allocation11 + $0x78] sm:$0xff]
        %v1990 = vld [vmem:[#allocation11 + $0x80] sm:$0xff]
        %v1991 = vld [vmem:[#allocation11 + $0x88] sm:$0xff]
        %v1992 = vld [vmem:[#allocation11 + $0x90] sm:$0xff]
        %v1993 = vld [vmem:[#allocation11 + $0x98] sm:$0xff]
        %v1994 = vld [vmem:[#allocation11 + $0xa0] sm:$0xff]
        %v1995 = vld [vmem:[#allocation11 + $0xa8] sm:$0xff]
        %v1996 = vld [vmem:[#allocation11 + $0xb0] sm:$0xff]
        %v1997 = vld [vmem:[#allocation11 + $0xb8] sm:$0xff]
        %v1998 = vld [vmem:[#allocation11 + $0xc0] sm:$0xff]
        %v1999 = vld [vmem:[#allocation11 + $0xc8] sm:$0xff]
        %v2000 = vld [vmem:[#allocation11 + $0xd0] sm:$0xff]
        %v2001 = vld [vmem:[#allocation11 + $0xd8] sm:$0xff]
        %v2002 = vld [vmem:[#allocation11 + $0xe0] sm:$0xff]
        %v2003 = vld [vmem:[#allocation11 + $0xe8] sm:$0xff]
        %v2004 = vld [vmem:[#allocation11 + $0xf0] sm:$0xff]
        %v2005 = vld [vmem:[#allocation11 + $0xf8] sm:$0xff]
        %v2006 = vld [vmem:[%s11] sm:$0x3]
        %v2008 = vperm.slane %v2006, 0
        %v2009 = vperm.slane %v2006, 1
        %2012 = vmatpush.msra.mxu0 %v2004
        %2013 = vmatpush.msra.mxu0 %v2002
        %2014 = vmatpush.msra.mxu0 %v2000
        %2015 = vmatpush.msra.mxu0 %v1998
        %2016 = vmatpush.msra.mxu0 %v1996
        %2017 = vmatpush.msra.mxu0 %v1994
        %2018 = vmatpush.msra.mxu0 %v1992
        %2019 = vmatpush.msra.mxu0 %v1990
        %2020 = vmatpush.msra.mxu0 %v1988
        %2021 = vmatpush.msra.mxu0 %v1986
        %2022 = vmatpush.msra.mxu0 %v1984
        %2023 = vmatpush.msra.mxu0 %v1982
        %2024 = vmatpush.msra.mxu0 %v1980
        %2025 = vmatpush.msra.mxu0 %v1978
        %2026 = vmatpush.msra.mxu0 %v1976
        %2027 = vmatpush.msra.mxu0 %v1974
        %2028 = vmatmul.f32.gmra.mxu0 %v1958
        %v2029 = vpop.f32.mrf.mxu0
        %v2030 = vadd.f32 %v2008, %v2029
        %2031 = vmatmul.f32.gmra.mxu0 %v1959
        %v2032 = vpop.f32.mrf.mxu0
        %v2033 = vadd.f32 %v2008, %v2032
        %2034 = vmatmul.f32.gmra.mxu0 %v1960
        %v2035 = vpop.f32.mrf.mxu0
        %v2036 = vadd.f32 %v2008, %v2035
        %2037 = vmatmul.f32.gmra.mxu0 %v1961
        %v2038 = vpop.f32.mrf.mxu0
        %v2039 = vadd.f32 %v2008, %v2038
        %2040 = vmatmul.f32.gmra.mxu0 %v1962
        %v2041 = vpop.f32.mrf.mxu0
        %v2042 = vadd.f32 %v2008, %v2041
        %2043 = vmatmul.f32.gmra.mxu0 %v1963
        %v2044 = vpop.f32.mrf.mxu0
        %v2045 = vadd.f32 %v2008, %v2044
        %2046 = vmatmul.f32.gmra.mxu0 %v1964
        %v2047 = vpop.f32.mrf.mxu0
        %v2048 = vadd.f32 %v2008, %v2047
        %2049 = vmatmul.f32.gmra.mxu0 %v1965
        %v2050 = vpop.f32.mrf.mxu0
        %v2051 = vadd.f32 %v2008, %v2050
        %2052 = vmatmul.f32.gmra.mxu0 %v1966
        %v2053 = vpop.f32.mrf.mxu0
        %v2054 = vadd.f32 %v2008, %v2053
        %2055 = vmatmul.f32.gmra.mxu0 %v1967
        %v2056 = vpop.f32.mrf.mxu0
        %v2057 = vadd.f32 %v2008, %v2056
        %2058 = vmatmul.f32.gmra.mxu0 %v1968
        %v2059 = vpop.f32.mrf.mxu0
        %v2060 = vadd.f32 %v2008, %v2059
        %2061 = vmatmul.f32.gmra.mxu0 %v1969
        %v2062 = vpop.f32.mrf.mxu0
        %v2063 = vadd.f32 %v2008, %v2062
        %2064 = vmatmul.f32.gmra.mxu0 %v1970
        %v2065 = vpop.f32.mrf.mxu0
        %v2066 = vadd.f32 %v2008, %v2065
        %2067 = vmatmul.f32.gmra.mxu0 %v1971
        %v2068 = vpop.f32.mrf.mxu0
        %v2069 = vadd.f32 %v2008, %v2068
        %2070 = vmatmul.f32.gmra.mxu0 %v1972
        %v2071 = vpop.f32.mrf.mxu0
        %v2072 = vadd.f32 %v2008, %v2071
        %2073 = vmatmul.f32.gmra.mxu0 %v1973
        %v2074 = vpop.f32.mrf.mxu0
        %v2075 = vadd.f32 %v2008, %v2074
        %2076 = vdwg.mxu0
        %2077 = vmatpush.msra.mxu0 %v2005
        %2078 = vmatpush.msra.mxu0 %v2003
        %2079 = vmatpush.msra.mxu0 %v2001
        %2080 = vmatpush.msra.mxu0 %v1999
        %2081 = vmatpush.msra.mxu0 %v1997
        %2082 = vmatpush.msra.mxu0 %v1995
        %2083 = vmatpush.msra.mxu0 %v1993
        %2084 = vmatpush.msra.mxu0 %v1991
        %2085 = vmatpush.msra.mxu0 %v1989
        %2086 = vmatpush.msra.mxu0 %v1987
        %2087 = vmatpush.msra.mxu0 %v1985
        %2088 = vmatpush.msra.mxu0 %v1983
        %2089 = vmatpush.msra.mxu0 %v1981
        %2090 = vmatpush.msra.mxu0 %v1979
        %2091 = vmatpush.msra.mxu0 %v1977
        %2092 = vmatpush.msra.mxu0 %v1975
        %2093 = vmatmul.f32.gmra.mxu0 %v1958
        %v2094 = vpop.f32.mrf.mxu0
        %v2095 = vadd.f32 %v2009, %v2094
        %2096 = vmatmul.f32.gmra.mxu0 %v1959
        %v2097 = vpop.f32.mrf.mxu0
        %v2098 = vadd.f32 %v2009, %v2097
        %2099 = vmatmul.f32.gmra.mxu0 %v1960
        %v2100 = vpop.f32.mrf.mxu0
        %v2101 = vadd.f32 %v2009, %v2100
        %2102 = vmatmul.f32.gmra.mxu0 %v1961
        %v2103 = vpop.f32.mrf.mxu0
        %v2104 = vadd.f32 %v2009, %v2103
        %2105 = vmatmul.f32.gmra.mxu0 %v1962
        %v2106 = vpop.f32.mrf.mxu0
        %v2107 = vadd.f32 %v2009, %v2106
        %2108 = vmatmul.f32.gmra.mxu0 %v1963
        %v2109 = vpop.f32.mrf.mxu0
        %v2110 = vadd.f32 %v2009, %v2109
        %2111 = vmatmul.f32.gmra.mxu0 %v1964
        %v2112 = vpop.f32.mrf.mxu0
        %v2113 = vadd.f32 %v2009, %v2112
        %2114 = vmatmul.f32.gmra.mxu0 %v1965
        %v2115 = vpop.f32.mrf.mxu0
        %v2116 = vadd.f32 %v2009, %v2115
        %2117 = vmatmul.f32.gmra.mxu0 %v1966
        %v2118 = vpop.f32.mrf.mxu0
        %v2119 = vadd.f32 %v2009, %v2118
        %2120 = vmatmul.f32.gmra.mxu0 %v1967
        %v2121 = vpop.f32.mrf.mxu0
        %v2122 = vadd.f32 %v2009, %v2121
        %2123 = vmatmul.f32.gmra.mxu0 %v1968
        %v2124 = vpop.f32.mrf.mxu0
        %v2125 = vadd.f32 %v2009, %v2124
        %2126 = vmatmul.f32.gmra.mxu0 %v1969
        %v2127 = vpop.f32.mrf.mxu0
        %v2128 = vadd.f32 %v2009, %v2127
        %2129 = vmatmul.f32.gmra.mxu0 %v1970
        %v2130 = vpop.f32.mrf.mxu0
        %v2131 = vadd.f32 %v2009, %v2130
        %2132 = vmatmul.f32.gmra.mxu0 %v1971
        %v2133 = vpop.f32.mrf.mxu0
        %v2134 = vadd.f32 %v2009, %v2133
        %2135 = vmatmul.f32.gmra.mxu0 %v1972
        %v2136 = vpop.f32.mrf.mxu0
        %v2137 = vadd.f32 %v2009, %v2136
        %2138 = vmatmul.f32.gmra.mxu0 %v1973
        %v2139 = vpop.f32.mrf.mxu0
        %v2140 = vadd.f32 %v2009, %v2139
        %2141 = vdwg.mxu0
        %v2142 = vld [vmem:[%s815] sm:$0xff]
        %v2143 = vld [vmem:[%s815 + $0x8] sm:$0xff]
        %v2144 = vld [vmem:[%s815 + $0x10] sm:$0xff]
        %v2145 = vld [vmem:[%s815 + $0x18] sm:$0xff]
        %v2146 = vld [vmem:[%s815 + $0x20] sm:$0xff]
        %v2147 = vld [vmem:[%s815 + $0x28] sm:$0xff]
        %v2148 = vld [vmem:[%s815 + $0x30] sm:$0xff]
        %v2149 = vld [vmem:[%s815 + $0x38] sm:$0xff]
        %v2150 = vld [vmem:[%s815 + $0x40] sm:$0xff]
        %v2151 = vld [vmem:[%s815 + $0x48] sm:$0xff]
        %v2152 = vld [vmem:[%s815 + $0x50] sm:$0xff]
        %v2153 = vld [vmem:[%s815 + $0x58] sm:$0xff]
        %v2154 = vld [vmem:[%s815 + $0x60] sm:$0xff]
        %v2155 = vld [vmem:[%s815 + $0x68] sm:$0xff]
        %v2156 = vld [vmem:[%s815 + $0x70] sm:$0xff]
        %v2157 = vld [vmem:[%s815 + $0x78] sm:$0xff]
        %v2158 = vmul.f32 %v2095, 0.5
        %v2159 = vmul.f32 %v2098, 0.5
        %v2160 = vmul.f32 %v2101, 0.5
        %v2161 = vmul.f32 %v2104, 0.5
        %v2162 = vmul.f32 %v2107, 0.5
        %v2163 = vmul.f32 %v2110, 0.5
        %v2164 = vmul.f32 %v2113, 0.5
        %v2165 = vmul.f32 %v2116, 0.5
        %v2166 = vmul.f32 %v2119, 0.5
        %v2167 = vmul.f32 %v2122, 0.5
        %v2168 = vmul.f32 %v2125, 0.5
        %v2169 = vmul.f32 %v2128, 0.5
        %v2170 = vmul.f32 %v2131, 0.5
        %v2171 = vmul.f32 %v2134, 0.5
        %v2172 = vmul.f32 %v2137, 0.5
        %v2173 = vmul.f32 %v2140, 0.5
        %v2174 = vmul.f32 %v2158, 1.442695
        %v2175 = vpow.pop %v2174
        %v2176 = vmul.f32 %v2159, 1.442695
        %v2177 = vpow.pop %v2176
        %v2178 = vmul.f32 %v2160, 1.442695
        %v2179 = vpow.pop %v2178
        %v2180 = vmul.f32 %v2161, 1.442695
        %v2181 = vpow.pop %v2180
        %v2182 = vmul.f32 %v2162, 1.442695
        %v2183 = vpow.pop %v2182
        %v2184 = vmul.f32 %v2163, 1.442695
        %v2185 = vpow.pop %v2184
        %v2186 = vmul.f32 %v2164, 1.442695
        %v2187 = vpow.pop %v2186
        %v2188 = vmul.f32 %v2165, 1.442695
        %v2189 = vpow.pop %v2188
        %v2190 = vmul.f32 %v2166, 1.442695
        %v2191 = vpow.pop %v2190
        %v2192 = vmul.f32 %v2167, 1.442695
        %v2193 = vpow.pop %v2192
        %v2194 = vmul.f32 %v2168, 1.442695
        %v2195 = vpow.pop %v2194
        %v2196 = vmul.f32 %v2169, 1.442695
        %v2197 = vpow.pop %v2196
        %v2198 = vmul.f32 %v2170, 1.442695
        %v2199 = vpow.pop %v2198
        %v2200 = vmul.f32 %v2171, 1.442695
        %v2201 = vpow.pop %v2200
        %v2202 = vmul.f32 %v2172, 1.442695
        %v2203 = vpow.pop %v2202
        %v2204 = vmul.f32 %v2173, 1.442695
        %v2205 = vpow.pop %v2204
        %v2206 = vmul.f32 %v2142, %v2175
        %v2207 = vmul.f32 %v2143, %v2177
        %v2208 = vmul.f32 %v2144, %v2179
        %v2209 = vmul.f32 %v2145, %v2181
        %v2210 = vmul.f32 %v2146, %v2183
        %v2211 = vmul.f32 %v2147, %v2185
        %v2212 = vmul.f32 %v2148, %v2187
        %v2213 = vmul.f32 %v2149, %v2189
        %v2214 = vmul.f32 %v2150, %v2191
        %v2215 = vmul.f32 %v2151, %v2193
        %v2216 = vmul.f32 %v2152, %v2195
        %v2217 = vmul.f32 %v2153, %v2197
        %v2218 = vmul.f32 %v2154, %v2199
        %v2219 = vmul.f32 %v2155, %v2201
        %v2220 = vmul.f32 %v2156, %v2203
        %v2221 = vmul.f32 %v2157, %v2205
        %v2222 = vadd.f32 %v2030, %v2206
        %v2223 = vadd.f32 %v2033, %v2207
        %v2224 = vadd.f32 %v2036, %v2208
        %v2225 = vadd.f32 %v2039, %v2209
        %v2226 = vadd.f32 %v2042, %v2210
        %v2227 = vadd.f32 %v2045, %v2211
        %v2228 = vadd.f32 %v2048, %v2212
        %v2229 = vadd.f32 %v2051, %v2213
        %v2230 = vadd.f32 %v2054, %v2214
        %v2231 = vadd.f32 %v2057, %v2215
        %v2232 = vadd.f32 %v2060, %v2216
        %v2233 = vadd.f32 %v2063, %v2217
        %v2234 = vadd.f32 %v2066, %v2218
        %v2235 = vadd.f32 %v2069, %v2219
        %v2236 = vadd.f32 %v2072, %v2220
        %v2237 = vadd.f32 %v2075, %v2221
        %v2238 = vld [vmem:[#allocation13] sm:$0xff]
        %v2239 = vld [vmem:[#allocation13 + $0x8] sm:$0xff]
        %v2240 = vld [vmem:[#allocation13 + $0x10] sm:$0xff]
        %v2241 = vld [vmem:[#allocation13 + $0x18] sm:$0xff]
        %v2242 = vld [vmem:[#allocation13 + $0x20] sm:$0xff]
        %v2243 = vld [vmem:[#allocation13 + $0x28] sm:$0xff]
        %v2244 = vld [vmem:[#allocation13 + $0x30] sm:$0xff]
        %v2245 = vld [vmem:[#allocation13 + $0x38] sm:$0xff]
        %v2246 = vld [vmem:[#allocation13 + $0x40] sm:$0xff]
        %v2247 = vld [vmem:[#allocation13 + $0x48] sm:$0xff]
        %v2248 = vld [vmem:[#allocation13 + $0x50] sm:$0xff]
        %v2249 = vld [vmem:[#allocation13 + $0x58] sm:$0xff]
        %v2250 = vld [vmem:[#allocation13 + $0x60] sm:$0xff]
        %v2251 = vld [vmem:[#allocation13 + $0x68] sm:$0xff]
        %v2252 = vld [vmem:[#allocation13 + $0x70] sm:$0xff]
        %v2253 = vld [vmem:[#allocation13 + $0x78] sm:$0xff]
        %v2254 = vld [vmem:[%s13] sm:$0x1]
        %v2256 = vperm.slane %v2254, 0
        %2258 = vmatpush.msra.mxu0 %v2253
        %2259 = vmatpush.msra.mxu0 %v2252
        %2260 = vmatpush.msra.mxu0 %v2251
        %2261 = vmatpush.msra.mxu0 %v2250
        %2262 = vmatpush.msra.mxu0 %v2249
        %2263 = vmatpush.msra.mxu0 %v2248
        %2264 = vmatpush.msra.mxu0 %v2247
        %2265 = vmatpush.msra.mxu0 %v2246
        %2266 = vmatpush.msra.mxu0 %v2245
        %2267 = vmatpush.msra.mxu0 %v2244
        %2268 = vmatpush.msra.mxu0 %v2243
        %2269 = vmatpush.msra.mxu0 %v2242
        %2270 = vmatpush.msra.mxu0 %v2241
        %2271 = vmatpush.msra.mxu0 %v2240
        %2272 = vmatpush.msra.mxu0 %v2239
        %2273 = vmatpush.msra.mxu0 %v2238
        %2274 = vmatmul.f32.gmra.mxu0 %v2222
        %v2275 = vpop.f32.mrf.mxu0
        %v2276 = vadd.f32 %v2256, %v2275
        %2277 = vmatmul.f32.gmra.mxu0 %v2223
        %v2278 = vpop.f32.mrf.mxu0
        %v2279 = vadd.f32 %v2256, %v2278
        %2280 = vmatmul.f32.gmra.mxu0 %v2224
        %v2281 = vpop.f32.mrf.mxu0
        %v2282 = vadd.f32 %v2256, %v2281
        %2283 = vmatmul.f32.gmra.mxu0 %v2225
        %v2284 = vpop.f32.mrf.mxu0
        %v2285 = vadd.f32 %v2256, %v2284
        %2286 = vmatmul.f32.gmra.mxu0 %v2226
        %v2287 = vpop.f32.mrf.mxu0
        %v2288 = vadd.f32 %v2256, %v2287
        %2289 = vmatmul.f32.gmra.mxu0 %v2227
        %v2290 = vpop.f32.mrf.mxu0
        %v2291 = vadd.f32 %v2256, %v2290
        %2292 = vmatmul.f32.gmra.mxu0 %v2228
        %v2293 = vpop.f32.mrf.mxu0
        %v2294 = vadd.f32 %v2256, %v2293
        %2295 = vmatmul.f32.gmra.mxu0 %v2229
        %v2296 = vpop.f32.mrf.mxu0
        %v2297 = vadd.f32 %v2256, %v2296
        %2298 = vmatmul.f32.gmra.mxu0 %v2230
        %v2299 = vpop.f32.mrf.mxu0
        %v2300 = vadd.f32 %v2256, %v2299
        %2301 = vmatmul.f32.gmra.mxu0 %v2231
        %v2302 = vpop.f32.mrf.mxu0
        %v2303 = vadd.f32 %v2256, %v2302
        %2304 = vmatmul.f32.gmra.mxu0 %v2232
        %v2305 = vpop.f32.mrf.mxu0
        %v2306 = vadd.f32 %v2256, %v2305
        %2307 = vmatmul.f32.gmra.mxu0 %v2233
        %v2308 = vpop.f32.mrf.mxu0
        %v2309 = vadd.f32 %v2256, %v2308
        %2310 = vmatmul.f32.gmra.mxu0 %v2234
        %v2311 = vpop.f32.mrf.mxu0
        %v2312 = vadd.f32 %v2256, %v2311
        %2313 = vmatmul.f32.gmra.mxu0 %v2235
        %v2314 = vpop.f32.mrf.mxu0
        %v2315 = vadd.f32 %v2256, %v2314
        %2316 = vmatmul.f32.gmra.mxu0 %v2236
        %v2317 = vpop.f32.mrf.mxu0
        %v2318 = vadd.f32 %v2256, %v2317
        %2319 = vmatmul.f32.gmra.mxu0 %v2237
        %v2320 = vpop.f32.mrf.mxu0
        %v2321 = vadd.f32 %v2256, %v2320
        %2322 = vdwg.mxu0
        %2323 = vadd.xlane.f32.xlu0 %v2276
        %v2324 = vpop.xlane.xlu0 %2323
        %2325 = vadd.xlane.f32.xlu0 %v2279
        %v2326 = vpop.xlane.xlu0 %2325
        %2327 = vadd.xlane.f32.xlu0 %v2282
        %v2328 = vpop.xlane.xlu0 %2327
        %2329 = vadd.xlane.f32.xlu0 %v2285
        %v2330 = vpop.xlane.xlu0 %2329
        %2331 = vadd.xlane.f32.xlu0 %v2288
        %v2332 = vpop.xlane.xlu0 %2331
        %2333 = vadd.xlane.f32.xlu0 %v2291
        %v2334 = vpop.xlane.xlu0 %2333
        %2335 = vadd.xlane.f32.xlu0 %v2294
        %v2336 = vpop.xlane.xlu0 %2335
        %2337 = vadd.xlane.f32.xlu0 %v2297
        %v2338 = vpop.xlane.xlu0 %2337
        %2339 = vadd.xlane.f32.xlu0 %v2300
        %v2340 = vpop.xlane.xlu0 %2339
        %2341 = vadd.xlane.f32.xlu0 %v2303
        %v2342 = vpop.xlane.xlu0 %2341
        %2343 = vadd.xlane.f32.xlu0 %v2306
        %v2344 = vpop.xlane.xlu0 %2343
        %2345 = vadd.xlane.f32.xlu0 %v2309
        %v2346 = vpop.xlane.xlu0 %2345
        %2347 = vadd.xlane.f32.xlu0 %v2312
        %v2348 = vpop.xlane.xlu0 %2347
        %2349 = vadd.xlane.f32.xlu0 %v2315
        %v2350 = vpop.xlane.xlu0 %2349
        %2351 = vadd.xlane.f32.xlu0 %v2318
        %v2352 = vpop.xlane.xlu0 %2351
        %2353 = vadd.xlane.f32.xlu0 %v2321
        %v2354 = vpop.xlane.xlu0 %2353
        %v2355 = vmul.f32 %v2324, 0.03125
        %v2356 = vmul.f32 %v2326, 0.03125
        %v2357 = vmul.f32 %v2328, 0.03125
        %v2358 = vmul.f32 %v2330, 0.03125
        %v2359 = vmul.f32 %v2332, 0.03125
        %v2360 = vmul.f32 %v2334, 0.03125
        %v2361 = vmul.f32 %v2336, 0.03125
        %v2362 = vmul.f32 %v2338, 0.03125
        %v2363 = vmul.f32 %v2340, 0.03125
        %v2364 = vmul.f32 %v2342, 0.03125
        %v2365 = vmul.f32 %v2344, 0.03125
        %v2366 = vmul.f32 %v2346, 0.03125
        %v2367 = vmul.f32 %v2348, 0.03125
        %v2368 = vmul.f32 %v2350, 0.03125
        %v2369 = vmul.f32 %v2352, 0.03125
        %v2370 = vmul.f32 %v2354, 0.03125
        %v2371 = vsub.f32 %v2276, %v2355
        %v2372 = vsub.f32 %v2279, %v2356
        %v2373 = vsub.f32 %v2282, %v2357
        %v2374 = vsub.f32 %v2285, %v2358
        %v2375 = vsub.f32 %v2288, %v2359
        %v2376 = vsub.f32 %v2291, %v2360
        %v2377 = vsub.f32 %v2294, %v2361
        %v2378 = vsub.f32 %v2297, %v2362
        %v2379 = vsub.f32 %v2300, %v2363
        %v2380 = vsub.f32 %v2303, %v2364
        %v2381 = vsub.f32 %v2306, %v2365
        %v2382 = vsub.f32 %v2309, %v2366
        %v2383 = vsub.f32 %v2312, %v2367
        %v2384 = vsub.f32 %v2315, %v2368
        %v2385 = vsub.f32 %v2318, %v2369
        %v2386 = vsub.f32 %v2321, %v2370
        %v2387 = vsel %vm1613, %v2371, 0.0
        %v2388 = vsel %vm1613, %v2372, 0.0
        %v2389 = vsel %vm1613, %v2373, 0.0
        %v2390 = vsel %vm1613, %v2374, 0.0
        %v2391 = vsel %vm1613, %v2375, 0.0
        %v2392 = vsel %vm1613, %v2376, 0.0
        %v2393 = vsel %vm1613, %v2377, 0.0
        %v2394 = vsel %vm1613, %v2378, 0.0
        %v2395 = vsel %vm1613, %v2379, 0.0
        %v2396 = vsel %vm1613, %v2380, 0.0
        %v2397 = vsel %vm1613, %v2381, 0.0
        %v2398 = vsel %vm1613, %v2382, 0.0
        %v2399 = vsel %vm1613, %v2383, 0.0
        %v2400 = vsel %vm1613, %v2384, 0.0
        %v2401 = vsel %vm1613, %v2385, 0.0
        %v2402 = vsel %vm1613, %v2386, 0.0
        %v2403 = vmul.f32 %v2387, %v2387
        %v2404 = vmul.f32 %v2388, %v2388
        %v2405 = vmul.f32 %v2389, %v2389
        %v2406 = vmul.f32 %v2390, %v2390
        %v2407 = vmul.f32 %v2391, %v2391
        %v2408 = vmul.f32 %v2392, %v2392
        %v2409 = vmul.f32 %v2393, %v2393
        %v2410 = vmul.f32 %v2394, %v2394
        %v2411 = vmul.f32 %v2395, %v2395
        %v2412 = vmul.f32 %v2396, %v2396
        %v2413 = vmul.f32 %v2397, %v2397
        %v2414 = vmul.f32 %v2398, %v2398
        %v2415 = vmul.f32 %v2399, %v2399
        %v2416 = vmul.f32 %v2400, %v2400
        %v2417 = vmul.f32 %v2401, %v2401
        %v2418 = vmul.f32 %v2402, %v2402
        %2419 = vadd.xlane.f32.xlu0 %v2403
        %v2420 = vpop.xlane.xlu0 %2419
        %2421 = vadd.xlane.f32.xlu0 %v2404
        %v2422 = vpop.xlane.xlu0 %2421
        %2423 = vadd.xlane.f32.xlu0 %v2405
        %v2424 = vpop.xlane.xlu0 %2423
        %2425 = vadd.xlane.f32.xlu0 %v2406
        %v2426 = vpop.xlane.xlu0 %2425
        %2427 = vadd.xlane.f32.xlu0 %v2407
        %v2428 = vpop.xlane.xlu0 %2427
        %2429 = vadd.xlane.f32.xlu0 %v2408
        %v2430 = vpop.xlane.xlu0 %2429
        %2431 = vadd.xlane.f32.xlu0 %v2409
        %v2432 = vpop.xlane.xlu0 %2431
        %2433 = vadd.xlane.f32.xlu0 %v2410
        %v2434 = vpop.xlane.xlu0 %2433
        %2435 = vadd.xlane.f32.xlu0 %v2411
        %v2436 = vpop.xlane.xlu0 %2435
        %2437 = vadd.xlane.f32.xlu0 %v2412
        %v2438 = vpop.xlane.xlu0 %2437
        %2439 = vadd.xlane.f32.xlu0 %v2413
        %v2440 = vpop.xlane.xlu0 %2439
        %2441 = vadd.xlane.f32.xlu0 %v2414
        %v2442 = vpop.xlane.xlu0 %2441
        %2443 = vadd.xlane.f32.xlu0 %v2415
        %v2444 = vpop.xlane.xlu0 %2443
        %2445 = vadd.xlane.f32.xlu0 %v2416
        %v2446 = vpop.xlane.xlu0 %2445
        %2447 = vadd.xlane.f32.xlu0 %v2417
        %v2448 = vpop.xlane.xlu0 %2447
        %2449 = vadd.xlane.f32.xlu0 %v2418
        %v2450 = vpop.xlane.xlu0 %2449
        %v2451 = vmul.f32 %v2420, 0.03125
        %v2452 = vmul.f32 %v2422, 0.03125
        %v2453 = vmul.f32 %v2424, 0.03125
        %v2454 = vmul.f32 %v2426, 0.03125
        %v2455 = vmul.f32 %v2428, 0.03125
        %v2456 = vmul.f32 %v2430, 0.03125
        %v2457 = vmul.f32 %v2432, 0.03125
        %v2458 = vmul.f32 %v2434, 0.03125
        %v2459 = vmul.f32 %v2436, 0.03125
        %v2460 = vmul.f32 %v2438, 0.03125
        %v2461 = vmul.f32 %v2440, 0.03125
        %v2462 = vmul.f32 %v2442, 0.03125
        %v2463 = vmul.f32 %v2444, 0.03125
        %v2464 = vmul.f32 %v2446, 0.03125
        %v2465 = vmul.f32 %v2448, 0.03125
        %v2466 = vmul.f32 %v2450, 0.03125
        %v2467 = vadd.f32 %v2451, 1e-05
        %v2468 = vadd.f32 %v2452, 1e-05
        %v2469 = vadd.f32 %v2453, 1e-05
        %v2470 = vadd.f32 %v2454, 1e-05
        %v2471 = vadd.f32 %v2455, 1e-05
        %v2472 = vadd.f32 %v2456, 1e-05
        %v2473 = vadd.f32 %v2457, 1e-05
        %v2474 = vadd.f32 %v2458, 1e-05
        %v2475 = vadd.f32 %v2459, 1e-05
        %v2476 = vadd.f32 %v2460, 1e-05
        %v2477 = vadd.f32 %v2461, 1e-05
        %v2478 = vadd.f32 %v2462, 1e-05
        %v2479 = vadd.f32 %v2463, 1e-05
        %v2480 = vadd.f32 %v2464, 1e-05
        %v2481 = vadd.f32 %v2465, 1e-05
        %v2482 = vadd.f32 %v2466, 1e-05
        %v2483 = vrsqrt.pop %v2467
        %v2484 = vmul.f32 %v2483, %v2467
        %v2485 = vmul.f32 %v2484, %v2483
        %v2486 = vmul.f32 0.5, %v2485
        %v2487 = vsub.f32 1.5, %v2486
        %v2488 = vmul.f32 %v2483, %v2487
        %vm2489 = vweird.f32 %v2467
        %vm2490 = vweird.f32 %v2483
        %vm2491 = vmor %vm2489, %vm2490
        %v2492 = vsel %vm2491, %v2483, %v2488
        %v2493 = vrsqrt.pop %v2468
        %v2494 = vmul.f32 %v2493, %v2468
        %v2495 = vmul.f32 %v2494, %v2493
        %v2496 = vmul.f32 0.5, %v2495
        %v2497 = vsub.f32 1.5, %v2496
        %v2498 = vmul.f32 %v2493, %v2497
        %vm2499 = vweird.f32 %v2468
        %vm2500 = vweird.f32 %v2493
        %vm2501 = vmor %vm2499, %vm2500
        %v2502 = vsel %vm2501, %v2493, %v2498
        %v2503 = vrsqrt.pop %v2469
        %v2504 = vmul.f32 %v2503, %v2469
        %v2505 = vmul.f32 %v2504, %v2503
        %v2506 = vmul.f32 0.5, %v2505
        %v2507 = vsub.f32 1.5, %v2506
        %v2508 = vmul.f32 %v2503, %v2507
        %vm2509 = vweird.f32 %v2469
        %vm2510 = vweird.f32 %v2503
        %vm2511 = vmor %vm2509, %vm2510
        %v2512 = vsel %vm2511, %v2503, %v2508
        %v2513 = vrsqrt.pop %v2470
        %v2514 = vmul.f32 %v2513, %v2470
        %v2515 = vmul.f32 %v2514, %v2513
        %v2516 = vmul.f32 0.5, %v2515
        %v2517 = vsub.f32 1.5, %v2516
        %v2518 = vmul.f32 %v2513, %v2517
        %vm2519 = vweird.f32 %v2470
        %vm2520 = vweird.f32 %v2513
        %vm2521 = vmor %vm2519, %vm2520
        %v2522 = vsel %vm2521, %v2513, %v2518
        %v2523 = vrsqrt.pop %v2471
        %v2524 = vmul.f32 %v2523, %v2471
        %v2525 = vmul.f32 %v2524, %v2523
        %v2526 = vmul.f32 0.5, %v2525
        %v2527 = vsub.f32 1.5, %v2526
        %v2528 = vmul.f32 %v2523, %v2527
        %vm2529 = vweird.f32 %v2471
        %vm2530 = vweird.f32 %v2523
        %vm2531 = vmor %vm2529, %vm2530
        %v2532 = vsel %vm2531, %v2523, %v2528
        %v2533 = vrsqrt.pop %v2472
        %v2534 = vmul.f32 %v2533, %v2472
        %v2535 = vmul.f32 %v2534, %v2533
        %v2536 = vmul.f32 0.5, %v2535
        %v2537 = vsub.f32 1.5, %v2536
        %v2538 = vmul.f32 %v2533, %v2537
        %vm2539 = vweird.f32 %v2472
        %vm2540 = vweird.f32 %v2533
        %vm2541 = vmor %vm2539, %vm2540
        %v2542 = vsel %vm2541, %v2533, %v2538
        %v2543 = vrsqrt.pop %v2473
        %v2544 = vmul.f32 %v2543, %v2473
        %v2545 = vmul.f32 %v2544, %v2543
        %v2546 = vmul.f32 0.5, %v2545
        %v2547 = vsub.f32 1.5, %v2546
        %v2548 = vmul.f32 %v2543, %v2547
        %vm2549 = vweird.f32 %v2473
        %vm2550 = vweird.f32 %v2543
        %vm2551 = vmor %vm2549, %vm2550
        %v2552 = vsel %vm2551, %v2543, %v2548
        %v2553 = vrsqrt.pop %v2474
        %v2554 = vmul.f32 %v2553, %v2474
        %v2555 = vmul.f32 %v2554, %v2553
        %v2556 = vmul.f32 0.5, %v2555
        %v2557 = vsub.f32 1.5, %v2556
        %v2558 = vmul.f32 %v2553, %v2557
        %vm2559 = vweird.f32 %v2474
        %vm2560 = vweird.f32 %v2553
        %vm2561 = vmor %vm2559, %vm2560
        %v2562 = vsel %vm2561, %v2553, %v2558
        %v2563 = vrsqrt.pop %v2475
        %v2564 = vmul.f32 %v2563, %v2475
        %v2565 = vmul.f32 %v2564, %v2563
        %v2566 = vmul.f32 0.5, %v2565
        %v2567 = vsub.f32 1.5, %v2566
        %v2568 = vmul.f32 %v2563, %v2567
        %vm2569 = vweird.f32 %v2475
        %vm2570 = vweird.f32 %v2563
        %vm2571 = vmor %vm2569, %vm2570
        %v2572 = vsel %vm2571, %v2563, %v2568
        %v2573 = vrsqrt.pop %v2476
        %v2574 = vmul.f32 %v2573, %v2476
        %v2575 = vmul.f32 %v2574, %v2573
        %v2576 = vmul.f32 0.5, %v2575
        %v2577 = vsub.f32 1.5, %v2576
        %v2578 = vmul.f32 %v2573, %v2577
        %vm2579 = vweird.f32 %v2476
        %vm2580 = vweird.f32 %v2573
        %vm2581 = vmor %vm2579, %vm2580
        %v2582 = vsel %vm2581, %v2573, %v2578
        %v2583 = vrsqrt.pop %v2477
        %v2584 = vmul.f32 %v2583, %v2477
        %v2585 = vmul.f32 %v2584, %v2583
        %v2586 = vmul.f32 0.5, %v2585
        %v2587 = vsub.f32 1.5, %v2586
        %v2588 = vmul.f32 %v2583, %v2587
        %vm2589 = vweird.f32 %v2477
        %vm2590 = vweird.f32 %v2583
        %vm2591 = vmor %vm2589, %vm2590
        %v2592 = vsel %vm2591, %v2583, %v2588
        %v2593 = vrsqrt.pop %v2478
        %v2594 = vmul.f32 %v2593, %v2478
        %v2595 = vmul.f32 %v2594, %v2593
        %v2596 = vmul.f32 0.5, %v2595
        %v2597 = vsub.f32 1.5, %v2596
        %v2598 = vmul.f32 %v2593, %v2597
        %vm2599 = vweird.f32 %v2478
        %vm2600 = vweird.f32 %v2593
        %vm2601 = vmor %vm2599, %vm2600
        %v2602 = vsel %vm2601, %v2593, %v2598
        %v2603 = vrsqrt.pop %v2479
        %v2604 = vmul.f32 %v2603, %v2479
        %v2605 = vmul.f32 %v2604, %v2603
        %v2606 = vmul.f32 0.5, %v2605
        %v2607 = vsub.f32 1.5, %v2606
        %v2608 = vmul.f32 %v2603, %v2607
        %vm2609 = vweird.f32 %v2479
        %vm2610 = vweird.f32 %v2603
        %vm2611 = vmor %vm2609, %vm2610
        %v2612 = vsel %vm2611, %v2603, %v2608
        %v2613 = vrsqrt.pop %v2480
        %v2614 = vmul.f32 %v2613, %v2480
        %v2615 = vmul.f32 %v2614, %v2613
        %v2616 = vmul.f32 0.5, %v2615
        %v2617 = vsub.f32 1.5, %v2616
        %v2618 = vmul.f32 %v2613, %v2617
        %vm2619 = vweird.f32 %v2480
        %vm2620 = vweird.f32 %v2613
        %vm2621 = vmor %vm2619, %vm2620
        %v2622 = vsel %vm2621, %v2613, %v2618
        %v2623 = vrsqrt.pop %v2481
        %v2624 = vmul.f32 %v2623, %v2481
        %v2625 = vmul.f32 %v2624, %v2623
        %v2626 = vmul.f32 0.5, %v2625
        %v2627 = vsub.f32 1.5, %v2626
        %v2628 = vmul.f32 %v2623, %v2627
        %vm2629 = vweird.f32 %v2481
        %vm2630 = vweird.f32 %v2623
        %vm2631 = vmor %vm2629, %vm2630
        %v2632 = vsel %vm2631, %v2623, %v2628
        %v2633 = vrsqrt.pop %v2482
        %v2634 = vmul.f32 %v2633, %v2482
        %v2635 = vmul.f32 %v2634, %v2633
        %v2636 = vmul.f32 0.5, %v2635
        %v2637 = vsub.f32 1.5, %v2636
        %v2638 = vmul.f32 %v2633, %v2637
        %vm2639 = vweird.f32 %v2482
        %vm2640 = vweird.f32 %v2633
        %vm2641 = vmor %vm2639, %vm2640
        %v2642 = vsel %vm2641, %v2633, %v2638
        %v2643 = vmul.f32 %v2387, %v2492
        %v2644 = vmul.f32 %v2388, %v2502
        %v2645 = vmul.f32 %v2389, %v2512
        %v2646 = vmul.f32 %v2390, %v2522
        %v2647 = vmul.f32 %v2391, %v2532
        %v2648 = vmul.f32 %v2392, %v2542
        %v2649 = vmul.f32 %v2393, %v2552
        %v2650 = vmul.f32 %v2394, %v2562
        %v2651 = vmul.f32 %v2395, %v2572
        %v2652 = vmul.f32 %v2396, %v2582
        %v2653 = vmul.f32 %v2397, %v2592
        %v2654 = vmul.f32 %v2398, %v2602
        %v2655 = vmul.f32 %v2399, %v2612
        %v2656 = vmul.f32 %v2400, %v2622
        %v2657 = vmul.f32 %v2401, %v2632
        %v2658 = vmul.f32 %v2402, %v2642
        %v2659 = vld [vmem:[%s14] sm:$0x1]
        %v2661 = vperm.slane %v2659, 0
        %v2663 = vmul.f32 %v2643, %v2661
        %v2664 = vmul.f32 %v2644, %v2661
        %v2665 = vmul.f32 %v2645, %v2661
        %v2666 = vmul.f32 %v2646, %v2661
        %v2667 = vmul.f32 %v2647, %v2661
        %v2668 = vmul.f32 %v2648, %v2661
        %v2669 = vmul.f32 %v2649, %v2661
        %v2670 = vmul.f32 %v2650, %v2661
        %v2671 = vmul.f32 %v2651, %v2661
        %v2672 = vmul.f32 %v2652, %v2661
        %v2673 = vmul.f32 %v2653, %v2661
        %v2674 = vmul.f32 %v2654, %v2661
        %v2675 = vmul.f32 %v2655, %v2661
        %v2676 = vmul.f32 %v2656, %v2661
        %v2677 = vmul.f32 %v2657, %v2661
        %v2678 = vmul.f32 %v2658, %v2661
        %v2679 = vld [vmem:[%s15] sm:$0x1]
        %v2681 = vperm.slane %v2679, 0
        %v2683 = vadd.f32 %v2663, %v2681
        %v2684 = vadd.f32 %v2664, %v2681
        %v2685 = vadd.f32 %v2665, %v2681
        %v2686 = vadd.f32 %v2666, %v2681
        %v2687 = vadd.f32 %v2667, %v2681
        %v2688 = vadd.f32 %v2668, %v2681
        %v2689 = vadd.f32 %v2669, %v2681
        %v2690 = vadd.f32 %v2670, %v2681
        %v2691 = vadd.f32 %v2671, %v2681
        %v2692 = vadd.f32 %v2672, %v2681
        %v2693 = vadd.f32 %v2673, %v2681
        %v2694 = vadd.f32 %v2674, %v2681
        %v2695 = vadd.f32 %v2675, %v2681
        %v2696 = vadd.f32 %v2676, %v2681
        %v2697 = vadd.f32 %v2677, %v2681
        %v2698 = vadd.f32 %v2678, %v2681
        %vm2699 = vcmp.gt.f32.partialorder %v2683, 0.0
        %vm2700 = vcmp.gt.f32.partialorder %v2684, 0.0
        %vm2701 = vcmp.gt.f32.partialorder %v2685, 0.0
        %vm2702 = vcmp.gt.f32.partialorder %v2686, 0.0
        %vm2703 = vcmp.gt.f32.partialorder %v2687, 0.0
        %vm2704 = vcmp.gt.f32.partialorder %v2688, 0.0
        %vm2705 = vcmp.gt.f32.partialorder %v2689, 0.0
        %vm2706 = vcmp.gt.f32.partialorder %v2690, 0.0
        %vm2707 = vcmp.gt.f32.partialorder %v2691, 0.0
        %vm2708 = vcmp.gt.f32.partialorder %v2692, 0.0
        %vm2709 = vcmp.gt.f32.partialorder %v2693, 0.0
        %vm2710 = vcmp.gt.f32.partialorder %v2694, 0.0
        %vm2711 = vcmp.gt.f32.partialorder %v2695, 0.0
        %vm2712 = vcmp.gt.f32.partialorder %v2696, 0.0
        %vm2713 = vcmp.gt.f32.partialorder %v2697, 0.0
        %vm2714 = vcmp.gt.f32.partialorder %v2698, 0.0
        %v2715 = vmul.f32 %v2683, 0.2
        %v2716 = vmul.f32 %v2684, 0.2
        %v2717 = vmul.f32 %v2685, 0.2
        %v2718 = vmul.f32 %v2686, 0.2
        %v2719 = vmul.f32 %v2687, 0.2
        %v2720 = vmul.f32 %v2688, 0.2
        %v2721 = vmul.f32 %v2689, 0.2
        %v2722 = vmul.f32 %v2690, 0.2
        %v2723 = vmul.f32 %v2691, 0.2
        %v2724 = vmul.f32 %v2692, 0.2
        %v2725 = vmul.f32 %v2693, 0.2
        %v2726 = vmul.f32 %v2694, 0.2
        %v2727 = vmul.f32 %v2695, 0.2
        %v2728 = vmul.f32 %v2696, 0.2
        %v2729 = vmul.f32 %v2697, 0.2
        %v2730 = vmul.f32 %v2698, 0.2
        %v2731 = vsel %vm2699, %v2683, %v2715
        %v2732 = vsel %vm2700, %v2684, %v2716
        %v2733 = vsel %vm2701, %v2685, %v2717
        %v2734 = vsel %vm2702, %v2686, %v2718
        %v2735 = vsel %vm2703, %v2687, %v2719
        %v2736 = vsel %vm2704, %v2688, %v2720
        %v2737 = vsel %vm2705, %v2689, %v2721
        %v2738 = vsel %vm2706, %v2690, %v2722
        %v2739 = vsel %vm2707, %v2691, %v2723
        %v2740 = vsel %vm2708, %v2692, %v2724
        %v2741 = vsel %vm2709, %v2693, %v2725
        %v2742 = vsel %vm2710, %v2694, %v2726
        %v2743 = vsel %vm2711, %v2695, %v2727
        %v2744 = vsel %vm2712, %v2696, %v2728
        %v2745 = vsel %vm2713, %v2697, %v2729
        %v2746 = vsel %vm2714, %v2698, %v2730
        %v2747 = vld [vmem:[#allocation14] sm:$0xff]
        %v2748 = vld [vmem:[#allocation14 + $0x8] sm:$0xff]
        %v2749 = vld [vmem:[#allocation14 + $0x10] sm:$0xff]
        %v2750 = vld [vmem:[#allocation14 + $0x18] sm:$0xff]
        %v2751 = vld [vmem:[#allocation14 + $0x20] sm:$0xff]
        %v2752 = vld [vmem:[#allocation14 + $0x28] sm:$0xff]
        %v2753 = vld [vmem:[#allocation14 + $0x30] sm:$0xff]
        %v2754 = vld [vmem:[#allocation14 + $0x38] sm:$0xff]
        %v2755 = vld [vmem:[#allocation14 + $0x40] sm:$0xff]
        %v2756 = vld [vmem:[#allocation14 + $0x48] sm:$0xff]
        %v2757 = vld [vmem:[#allocation14 + $0x50] sm:$0xff]
        %v2758 = vld [vmem:[#allocation14 + $0x58] sm:$0xff]
        %v2759 = vld [vmem:[#allocation14 + $0x60] sm:$0xff]
        %v2760 = vld [vmem:[#allocation14 + $0x68] sm:$0xff]
        %v2761 = vld [vmem:[#allocation14 + $0x70] sm:$0xff]
        %v2762 = vld [vmem:[#allocation14 + $0x78] sm:$0xff]
        %v2763 = vld [vmem:[%s17] sm:$0x1]
        %v2765 = vperm.slane %v2763, 0
        %2767 = vmatpush.msra.mxu0 %v2762
        %2768 = vmatpush.msra.mxu0 %v2761
        %2769 = vmatpush.msra.mxu0 %v2760
        %2770 = vmatpush.msra.mxu0 %v2759
        %2771 = vmatpush.msra.mxu0 %v2758
        %2772 = vmatpush.msra.mxu0 %v2757
        %2773 = vmatpush.msra.mxu0 %v2756
        %2774 = vmatpush.msra.mxu0 %v2755
        %2775 = vmatpush.msra.mxu0 %v2754
        %2776 = vmatpush.msra.mxu0 %v2753
        %2777 = vmatpush.msra.mxu0 %v2752
        %2778 = vmatpush.msra.mxu0 %v2751
        %2779 = vmatpush.msra.mxu0 %v2750
        %2780 = vmatpush.msra.mxu0 %v2749
        %2781 = vmatpush.msra.mxu0 %v2748
        %2782 = vmatpush.msra.mxu0 %v2747
        %2783 = vmatmul.f32.gmra.mxu0 %v2731
        %v2784 = vpop.f32.mrf.mxu0
        %v2785 = vadd.f32 %v2765, %v2784
        %2786 = vmatmul.f32.gmra.mxu0 %v2732
        %v2787 = vpop.f32.mrf.mxu0
        %v2788 = vadd.f32 %v2765, %v2787
        %2789 = vmatmul.f32.gmra.mxu0 %v2733
        %v2790 = vpop.f32.mrf.mxu0
        %v2791 = vadd.f32 %v2765, %v2790
        %2792 = vmatmul.f32.gmra.mxu0 %v2734
        %v2793 = vpop.f32.mrf.mxu0
        %v2794 = vadd.f32 %v2765, %v2793
        %2795 = vmatmul.f32.gmra.mxu0 %v2735
        %v2796 = vpop.f32.mrf.mxu0
        %v2797 = vadd.f32 %v2765, %v2796
        %2798 = vmatmul.f32.gmra.mxu0 %v2736
        %v2799 = vpop.f32.mrf.mxu0
        %v2800 = vadd.f32 %v2765, %v2799
        %2801 = vmatmul.f32.gmra.mxu0 %v2737
        %v2802 = vpop.f32.mrf.mxu0
        %v2803 = vadd.f32 %v2765, %v2802
        %2804 = vmatmul.f32.gmra.mxu0 %v2738
        %v2805 = vpop.f32.mrf.mxu0
        %v2806 = vadd.f32 %v2765, %v2805
        %2807 = vmatmul.f32.gmra.mxu0 %v2739
        %v2808 = vpop.f32.mrf.mxu0
        %v2809 = vadd.f32 %v2765, %v2808
        %2810 = vmatmul.f32.gmra.mxu0 %v2740
        %v2811 = vpop.f32.mrf.mxu0
        %v2812 = vadd.f32 %v2765, %v2811
        %2813 = vmatmul.f32.gmra.mxu0 %v2741
        %v2814 = vpop.f32.mrf.mxu0
        %v2815 = vadd.f32 %v2765, %v2814
        %2816 = vmatmul.f32.gmra.mxu0 %v2742
        %v2817 = vpop.f32.mrf.mxu0
        %v2818 = vadd.f32 %v2765, %v2817
        %2819 = vmatmul.f32.gmra.mxu0 %v2743
        %v2820 = vpop.f32.mrf.mxu0
        %v2821 = vadd.f32 %v2765, %v2820
        %2822 = vmatmul.f32.gmra.mxu0 %v2744
        %v2823 = vpop.f32.mrf.mxu0
        %v2824 = vadd.f32 %v2765, %v2823
        %2825 = vmatmul.f32.gmra.mxu0 %v2745
        %v2826 = vpop.f32.mrf.mxu0
        %v2827 = vadd.f32 %v2765, %v2826
        %2828 = vmatmul.f32.gmra.mxu0 %v2746
        %v2829 = vpop.f32.mrf.mxu0
        %v2830 = vadd.f32 %v2765, %v2829
        %2831 = vdwg.mxu0
        %2832 = vadd.xlane.f32.xlu0 %v2785
        %v2833 = vpop.xlane.xlu0 %2832
        %2834 = vadd.xlane.f32.xlu0 %v2788
        %v2835 = vpop.xlane.xlu0 %2834
        %2836 = vadd.xlane.f32.xlu0 %v2791
        %v2837 = vpop.xlane.xlu0 %2836
        %2838 = vadd.xlane.f32.xlu0 %v2794
        %v2839 = vpop.xlane.xlu0 %2838
        %2840 = vadd.xlane.f32.xlu0 %v2797
        %v2841 = vpop.xlane.xlu0 %2840
        %2842 = vadd.xlane.f32.xlu0 %v2800
        %v2843 = vpop.xlane.xlu0 %2842
        %2844 = vadd.xlane.f32.xlu0 %v2803
        %v2845 = vpop.xlane.xlu0 %2844
        %2846 = vadd.xlane.f32.xlu0 %v2806
        %v2847 = vpop.xlane.xlu0 %2846
        %2848 = vadd.xlane.f32.xlu0 %v2809
        %v2849 = vpop.xlane.xlu0 %2848
        %2850 = vadd.xlane.f32.xlu0 %v2812
        %v2851 = vpop.xlane.xlu0 %2850
        %2852 = vadd.xlane.f32.xlu0 %v2815
        %v2853 = vpop.xlane.xlu0 %2852
        %2854 = vadd.xlane.f32.xlu0 %v2818
        %v2855 = vpop.xlane.xlu0 %2854
        %2856 = vadd.xlane.f32.xlu0 %v2821
        %v2857 = vpop.xlane.xlu0 %2856
        %2858 = vadd.xlane.f32.xlu0 %v2824
        %v2859 = vpop.xlane.xlu0 %2858
        %2860 = vadd.xlane.f32.xlu0 %v2827
        %v2861 = vpop.xlane.xlu0 %2860
        %2862 = vadd.xlane.f32.xlu0 %v2830
        %v2863 = vpop.xlane.xlu0 %2862
        %v2864 = vmul.f32 %v2833, 0.015625
        %v2865 = vmul.f32 %v2835, 0.015625
        %v2866 = vmul.f32 %v2837, 0.015625
        %v2867 = vmul.f32 %v2839, 0.015625
        %v2868 = vmul.f32 %v2841, 0.015625
        %v2869 = vmul.f32 %v2843, 0.015625
        %v2870 = vmul.f32 %v2845, 0.015625
        %v2871 = vmul.f32 %v2847, 0.015625
        %v2872 = vmul.f32 %v2849, 0.015625
        %v2873 = vmul.f32 %v2851, 0.015625
        %v2874 = vmul.f32 %v2853, 0.015625
        %v2875 = vmul.f32 %v2855, 0.015625
        %v2876 = vmul.f32 %v2857, 0.015625
        %v2877 = vmul.f32 %v2859, 0.015625
        %v2878 = vmul.f32 %v2861, 0.015625
        %v2879 = vmul.f32 %v2863, 0.015625
        %v2880 = vsub.f32 %v2785, %v2864
        %v2881 = vsub.f32 %v2788, %v2865
        %v2882 = vsub.f32 %v2791, %v2866
        %v2883 = vsub.f32 %v2794, %v2867
        %v2884 = vsub.f32 %v2797, %v2868
        %v2885 = vsub.f32 %v2800, %v2869
        %v2886 = vsub.f32 %v2803, %v2870
        %v2887 = vsub.f32 %v2806, %v2871
        %v2888 = vsub.f32 %v2809, %v2872
        %v2889 = vsub.f32 %v2812, %v2873
        %v2890 = vsub.f32 %v2815, %v2874
        %v2891 = vsub.f32 %v2818, %v2875
        %v2892 = vsub.f32 %v2821, %v2876
        %v2893 = vsub.f32 %v2824, %v2877
        %v2894 = vsub.f32 %v2827, %v2878
        %v2895 = vsub.f32 %v2830, %v2879
        %v2896 = vsel %vm1103, %v2880, 0.0
        %v2897 = vsel %vm1103, %v2881, 0.0
        %v2898 = vsel %vm1103, %v2882, 0.0
        %v2899 = vsel %vm1103, %v2883, 0.0
        %v2900 = vsel %vm1103, %v2884, 0.0
        %v2901 = vsel %vm1103, %v2885, 0.0
        %v2902 = vsel %vm1103, %v2886, 0.0
        %v2903 = vsel %vm1103, %v2887, 0.0
        %v2904 = vsel %vm1103, %v2888, 0.0
        %v2905 = vsel %vm1103, %v2889, 0.0
        %v2906 = vsel %vm1103, %v2890, 0.0
        %v2907 = vsel %vm1103, %v2891, 0.0
        %v2908 = vsel %vm1103, %v2892, 0.0
        %v2909 = vsel %vm1103, %v2893, 0.0
        %v2910 = vsel %vm1103, %v2894, 0.0
        %v2911 = vsel %vm1103, %v2895, 0.0
        %v2912 = vmul.f32 %v2896, %v2896
        %v2913 = vmul.f32 %v2897, %v2897
        %v2914 = vmul.f32 %v2898, %v2898
        %v2915 = vmul.f32 %v2899, %v2899
        %v2916 = vmul.f32 %v2900, %v2900
        %v2917 = vmul.f32 %v2901, %v2901
        %v2918 = vmul.f32 %v2902, %v2902
        %v2919 = vmul.f32 %v2903, %v2903
        %v2920 = vmul.f32 %v2904, %v2904
        %v2921 = vmul.f32 %v2905, %v2905
        %v2922 = vmul.f32 %v2906, %v2906
        %v2923 = vmul.f32 %v2907, %v2907
        %v2924 = vmul.f32 %v2908, %v2908
        %v2925 = vmul.f32 %v2909, %v2909
        %v2926 = vmul.f32 %v2910, %v2910
        %v2927 = vmul.f32 %v2911, %v2911
        %2928 = vadd.xlane.f32.xlu0 %v2912
        %v2929 = vpop.xlane.xlu0 %2928
        %2930 = vadd.xlane.f32.xlu0 %v2913
        %v2931 = vpop.xlane.xlu0 %2930
        %2932 = vadd.xlane.f32.xlu0 %v2914
        %v2933 = vpop.xlane.xlu0 %2932
        %2934 = vadd.xlane.f32.xlu0 %v2915
        %v2935 = vpop.xlane.xlu0 %2934
        %2936 = vadd.xlane.f32.xlu0 %v2916
        %v2937 = vpop.xlane.xlu0 %2936
        %2938 = vadd.xlane.f32.xlu0 %v2917
        %v2939 = vpop.xlane.xlu0 %2938
        %2940 = vadd.xlane.f32.xlu0 %v2918
        %v2941 = vpop.xlane.xlu0 %2940
        %2942 = vadd.xlane.f32.xlu0 %v2919
        %v2943 = vpop.xlane.xlu0 %2942
        %2944 = vadd.xlane.f32.xlu0 %v2920
        %v2945 = vpop.xlane.xlu0 %2944
        %2946 = vadd.xlane.f32.xlu0 %v2921
        %v2947 = vpop.xlane.xlu0 %2946
        %2948 = vadd.xlane.f32.xlu0 %v2922
        %v2949 = vpop.xlane.xlu0 %2948
        %2950 = vadd.xlane.f32.xlu0 %v2923
        %v2951 = vpop.xlane.xlu0 %2950
        %2952 = vadd.xlane.f32.xlu0 %v2924
        %v2953 = vpop.xlane.xlu0 %2952
        %2954 = vadd.xlane.f32.xlu0 %v2925
        %v2955 = vpop.xlane.xlu0 %2954
        %2956 = vadd.xlane.f32.xlu0 %v2926
        %v2957 = vpop.xlane.xlu0 %2956
        %2958 = vadd.xlane.f32.xlu0 %v2927
        %v2959 = vpop.xlane.xlu0 %2958
        %v2960 = vmul.f32 %v2929, 0.015625
        %v2961 = vmul.f32 %v2931, 0.015625
        %v2962 = vmul.f32 %v2933, 0.015625
        %v2963 = vmul.f32 %v2935, 0.015625
        %v2964 = vmul.f32 %v2937, 0.015625
        %v2965 = vmul.f32 %v2939, 0.015625
        %v2966 = vmul.f32 %v2941, 0.015625
        %v2967 = vmul.f32 %v2943, 0.015625
        %v2968 = vmul.f32 %v2945, 0.015625
        %v2969 = vmul.f32 %v2947, 0.015625
        %v2970 = vmul.f32 %v2949, 0.015625
        %v2971 = vmul.f32 %v2951, 0.015625
        %v2972 = vmul.f32 %v2953, 0.015625
        %v2973 = vmul.f32 %v2955, 0.015625
        %v2974 = vmul.f32 %v2957, 0.015625
        %v2975 = vmul.f32 %v2959, 0.015625
        %v2976 = vadd.f32 %v2960, 1e-05
        %v2977 = vadd.f32 %v2961, 1e-05
        %v2978 = vadd.f32 %v2962, 1e-05
        %v2979 = vadd.f32 %v2963, 1e-05
        %v2980 = vadd.f32 %v2964, 1e-05
        %v2981 = vadd.f32 %v2965, 1e-05
        %v2982 = vadd.f32 %v2966, 1e-05
        %v2983 = vadd.f32 %v2967, 1e-05
        %v2984 = vadd.f32 %v2968, 1e-05
        %v2985 = vadd.f32 %v2969, 1e-05
        %v2986 = vadd.f32 %v2970, 1e-05
        %v2987 = vadd.f32 %v2971, 1e-05
        %v2988 = vadd.f32 %v2972, 1e-05
        %v2989 = vadd.f32 %v2973, 1e-05
        %v2990 = vadd.f32 %v2974, 1e-05
        %v2991 = vadd.f32 %v2975, 1e-05
        %v2992 = vrsqrt.pop %v2976
        %v2993 = vmul.f32 %v2992, %v2976
        %v2994 = vmul.f32 %v2993, %v2992
        %v2995 = vmul.f32 0.5, %v2994
        %v2996 = vsub.f32 1.5, %v2995
        %v2997 = vmul.f32 %v2992, %v2996
        %vm2998 = vweird.f32 %v2976
        %vm2999 = vweird.f32 %v2992
        %vm3000 = vmor %vm2998, %vm2999
        %v3001 = vsel %vm3000, %v2992, %v2997
        %v3002 = vrsqrt.pop %v2977
        %v3003 = vmul.f32 %v3002, %v2977
        %v3004 = vmul.f32 %v3003, %v3002
        %v3005 = vmul.f32 0.5, %v3004
        %v3006 = vsub.f32 1.5, %v3005
        %v3007 = vmul.f32 %v3002, %v3006
        %vm3008 = vweird.f32 %v2977
        %vm3009 = vweird.f32 %v3002
        %vm3010 = vmor %vm3008, %vm3009
        %v3011 = vsel %vm3010, %v3002, %v3007
        %v3012 = vrsqrt.pop %v2978
        %v3013 = vmul.f32 %v3012, %v2978
        %v3014 = vmul.f32 %v3013, %v3012
        %v3015 = vmul.f32 0.5, %v3014
        %v3016 = vsub.f32 1.5, %v3015
        %v3017 = vmul.f32 %v3012, %v3016
        %vm3018 = vweird.f32 %v2978
        %vm3019 = vweird.f32 %v3012
        %vm3020 = vmor %vm3018, %vm3019
        %v3021 = vsel %vm3020, %v3012, %v3017
        %v3022 = vrsqrt.pop %v2979
        %v3023 = vmul.f32 %v3022, %v2979
        %v3024 = vmul.f32 %v3023, %v3022
        %v3025 = vmul.f32 0.5, %v3024
        %v3026 = vsub.f32 1.5, %v3025
        %v3027 = vmul.f32 %v3022, %v3026
        %vm3028 = vweird.f32 %v2979
        %vm3029 = vweird.f32 %v3022
        %vm3030 = vmor %vm3028, %vm3029
        %v3031 = vsel %vm3030, %v3022, %v3027
        %v3032 = vrsqrt.pop %v2980
        %v3033 = vmul.f32 %v3032, %v2980
        %v3034 = vmul.f32 %v3033, %v3032
        %v3035 = vmul.f32 0.5, %v3034
        %v3036 = vsub.f32 1.5, %v3035
        %v3037 = vmul.f32 %v3032, %v3036
        %vm3038 = vweird.f32 %v2980
        %vm3039 = vweird.f32 %v3032
        %vm3040 = vmor %vm3038, %vm3039
        %v3041 = vsel %vm3040, %v3032, %v3037
        %v3042 = vrsqrt.pop %v2981
        %v3043 = vmul.f32 %v3042, %v2981
        %v3044 = vmul.f32 %v3043, %v3042
        %v3045 = vmul.f32 0.5, %v3044
        %v3046 = vsub.f32 1.5, %v3045
        %v3047 = vmul.f32 %v3042, %v3046
        %vm3048 = vweird.f32 %v2981
        %vm3049 = vweird.f32 %v3042
        %vm3050 = vmor %vm3048, %vm3049
        %v3051 = vsel %vm3050, %v3042, %v3047
        %v3052 = vrsqrt.pop %v2982
        %v3053 = vmul.f32 %v3052, %v2982
        %v3054 = vmul.f32 %v3053, %v3052
        %v3055 = vmul.f32 0.5, %v3054
        %v3056 = vsub.f32 1.5, %v3055
        %v3057 = vmul.f32 %v3052, %v3056
        %vm3058 = vweird.f32 %v2982
        %vm3059 = vweird.f32 %v3052
        %vm3060 = vmor %vm3058, %vm3059
        %v3061 = vsel %vm3060, %v3052, %v3057
        %v3062 = vrsqrt.pop %v2983
        %v3063 = vmul.f32 %v3062, %v2983
        %v3064 = vmul.f32 %v3063, %v3062
        %v3065 = vmul.f32 0.5, %v3064
        %v3066 = vsub.f32 1.5, %v3065
        %v3067 = vmul.f32 %v3062, %v3066
        %vm3068 = vweird.f32 %v2983
        %vm3069 = vweird.f32 %v3062
        %vm3070 = vmor %vm3068, %vm3069
        %v3071 = vsel %vm3070, %v3062, %v3067
        %v3072 = vrsqrt.pop %v2984
        %v3073 = vmul.f32 %v3072, %v2984
        %v3074 = vmul.f32 %v3073, %v3072
        %v3075 = vmul.f32 0.5, %v3074
        %v3076 = vsub.f32 1.5, %v3075
        %v3077 = vmul.f32 %v3072, %v3076
        %vm3078 = vweird.f32 %v2984
        %vm3079 = vweird.f32 %v3072
        %vm3080 = vmor %vm3078, %vm3079
        %v3081 = vsel %vm3080, %v3072, %v3077
        %v3082 = vrsqrt.pop %v2985
        %v3083 = vmul.f32 %v3082, %v2985
        %v3084 = vmul.f32 %v3083, %v3082
        %v3085 = vmul.f32 0.5, %v3084
        %v3086 = vsub.f32 1.5, %v3085
        %v3087 = vmul.f32 %v3082, %v3086
        %vm3088 = vweird.f32 %v2985
        %vm3089 = vweird.f32 %v3082
        %vm3090 = vmor %vm3088, %vm3089
        %v3091 = vsel %vm3090, %v3082, %v3087
        %v3092 = vrsqrt.pop %v2986
        %v3093 = vmul.f32 %v3092, %v2986
        %v3094 = vmul.f32 %v3093, %v3092
        %v3095 = vmul.f32 0.5, %v3094
        %v3096 = vsub.f32 1.5, %v3095
        %v3097 = vmul.f32 %v3092, %v3096
        %vm3098 = vweird.f32 %v2986
        %vm3099 = vweird.f32 %v3092
        %vm3100 = vmor %vm3098, %vm3099
        %v3101 = vsel %vm3100, %v3092, %v3097
        %v3102 = vrsqrt.pop %v2987
        %v3103 = vmul.f32 %v3102, %v2987
        %v3104 = vmul.f32 %v3103, %v3102
        %v3105 = vmul.f32 0.5, %v3104
        %v3106 = vsub.f32 1.5, %v3105
        %v3107 = vmul.f32 %v3102, %v3106
        %vm3108 = vweird.f32 %v2987
        %vm3109 = vweird.f32 %v3102
        %vm3110 = vmor %vm3108, %vm3109
        %v3111 = vsel %vm3110, %v3102, %v3107
        %v3112 = vrsqrt.pop %v2988
        %v3113 = vmul.f32 %v3112, %v2988
        %v3114 = vmul.f32 %v3113, %v3112
        %v3115 = vmul.f32 0.5, %v3114
        %v3116 = vsub.f32 1.5, %v3115
        %v3117 = vmul.f32 %v3112, %v3116
        %vm3118 = vweird.f32 %v2988
        %vm3119 = vweird.f32 %v3112
        %vm3120 = vmor %vm3118, %vm3119
        %v3121 = vsel %vm3120, %v3112, %v3117
        %v3122 = vrsqrt.pop %v2989
        %v3123 = vmul.f32 %v3122, %v2989
        %v3124 = vmul.f32 %v3123, %v3122
        %v3125 = vmul.f32 0.5, %v3124
        %v3126 = vsub.f32 1.5, %v3125
        %v3127 = vmul.f32 %v3122, %v3126
        %vm3128 = vweird.f32 %v2989
        %vm3129 = vweird.f32 %v3122
        %vm3130 = vmor %vm3128, %vm3129
        %v3131 = vsel %vm3130, %v3122, %v3127
        %v3132 = vrsqrt.pop %v2990
        %v3133 = vmul.f32 %v3132, %v2990
        %v3134 = vmul.f32 %v3133, %v3132
        %v3135 = vmul.f32 0.5, %v3134
        %v3136 = vsub.f32 1.5, %v3135
        %v3137 = vmul.f32 %v3132, %v3136
        %vm3138 = vweird.f32 %v2990
        %vm3139 = vweird.f32 %v3132
        %vm3140 = vmor %vm3138, %vm3139
        %v3141 = vsel %vm3140, %v3132, %v3137
        %v3142 = vrsqrt.pop %v2991
        %v3143 = vmul.f32 %v3142, %v2991
        %v3144 = vmul.f32 %v3143, %v3142
        %v3145 = vmul.f32 0.5, %v3144
        %v3146 = vsub.f32 1.5, %v3145
        %v3147 = vmul.f32 %v3142, %v3146
        %vm3148 = vweird.f32 %v2991
        %vm3149 = vweird.f32 %v3142
        %vm3150 = vmor %vm3148, %vm3149
        %v3151 = vsel %vm3150, %v3142, %v3147
        %v3152 = vmul.f32 %v2896, %v3001
        %v3153 = vmul.f32 %v2897, %v3011
        %v3154 = vmul.f32 %v2898, %v3021
        %v3155 = vmul.f32 %v2899, %v3031
        %v3156 = vmul.f32 %v2900, %v3041
        %v3157 = vmul.f32 %v2901, %v3051
        %v3158 = vmul.f32 %v2902, %v3061
        %v3159 = vmul.f32 %v2903, %v3071
        %v3160 = vmul.f32 %v2904, %v3081
        %v3161 = vmul.f32 %v2905, %v3091
        %v3162 = vmul.f32 %v2906, %v3101
        %v3163 = vmul.f32 %v2907, %v3111
        %v3164 = vmul.f32 %v2908, %v3121
        %v3165 = vmul.f32 %v2909, %v3131
        %v3166 = vmul.f32 %v2910, %v3141
        %v3167 = vmul.f32 %v2911, %v3151
        %v3168 = vld [vmem:[%s18] sm:$0x1]
        %v3170 = vperm.slane %v3168, 0
        %v3172 = vmul.f32 %v3152, %v3170
        %v3173 = vmul.f32 %v3153, %v3170
        %v3174 = vmul.f32 %v3154, %v3170
        %v3175 = vmul.f32 %v3155, %v3170
        %v3176 = vmul.f32 %v3156, %v3170
        %v3177 = vmul.f32 %v3157, %v3170
        %v3178 = vmul.f32 %v3158, %v3170
        %v3179 = vmul.f32 %v3159, %v3170
        %v3180 = vmul.f32 %v3160, %v3170
        %v3181 = vmul.f32 %v3161, %v3170
        %v3182 = vmul.f32 %v3162, %v3170
        %v3183 = vmul.f32 %v3163, %v3170
        %v3184 = vmul.f32 %v3164, %v3170
        %v3185 = vmul.f32 %v3165, %v3170
        %v3186 = vmul.f32 %v3166, %v3170
        %v3187 = vmul.f32 %v3167, %v3170
        %v3188 = vld [vmem:[%s19] sm:$0x1]
        %v3190 = vperm.slane %v3188, 0
        %v3192 = vadd.f32 %v3172, %v3190
        %v3193 = vadd.f32 %v3173, %v3190
        %v3194 = vadd.f32 %v3174, %v3190
        %v3195 = vadd.f32 %v3175, %v3190
        %v3196 = vadd.f32 %v3176, %v3190
        %v3197 = vadd.f32 %v3177, %v3190
        %v3198 = vadd.f32 %v3178, %v3190
        %v3199 = vadd.f32 %v3179, %v3190
        %v3200 = vadd.f32 %v3180, %v3190
        %v3201 = vadd.f32 %v3181, %v3190
        %v3202 = vadd.f32 %v3182, %v3190
        %v3203 = vadd.f32 %v3183, %v3190
        %v3204 = vadd.f32 %v3184, %v3190
        %v3205 = vadd.f32 %v3185, %v3190
        %v3206 = vadd.f32 %v3186, %v3190
        %v3207 = vadd.f32 %v3187, %v3190
        %vm3208 = vcmp.gt.f32.partialorder %v3192, 0.0
        %vm3209 = vcmp.gt.f32.partialorder %v3193, 0.0
        %vm3210 = vcmp.gt.f32.partialorder %v3194, 0.0
        %vm3211 = vcmp.gt.f32.partialorder %v3195, 0.0
        %vm3212 = vcmp.gt.f32.partialorder %v3196, 0.0
        %vm3213 = vcmp.gt.f32.partialorder %v3197, 0.0
        %vm3214 = vcmp.gt.f32.partialorder %v3198, 0.0
        %vm3215 = vcmp.gt.f32.partialorder %v3199, 0.0
        %vm3216 = vcmp.gt.f32.partialorder %v3200, 0.0
        %vm3217 = vcmp.gt.f32.partialorder %v3201, 0.0
        %vm3218 = vcmp.gt.f32.partialorder %v3202, 0.0
        %vm3219 = vcmp.gt.f32.partialorder %v3203, 0.0
        %vm3220 = vcmp.gt.f32.partialorder %v3204, 0.0
        %vm3221 = vcmp.gt.f32.partialorder %v3205, 0.0
        %vm3222 = vcmp.gt.f32.partialorder %v3206, 0.0
        %vm3223 = vcmp.gt.f32.partialorder %v3207, 0.0
        %v3224 = vmul.f32 %v3192, 0.2
        %v3225 = vmul.f32 %v3193, 0.2
        %v3226 = vmul.f32 %v3194, 0.2
        %v3227 = vmul.f32 %v3195, 0.2
        %v3228 = vmul.f32 %v3196, 0.2
        %v3229 = vmul.f32 %v3197, 0.2
        %v3230 = vmul.f32 %v3198, 0.2
        %v3231 = vmul.f32 %v3199, 0.2
        %v3232 = vmul.f32 %v3200, 0.2
        %v3233 = vmul.f32 %v3201, 0.2
        %v3234 = vmul.f32 %v3202, 0.2
        %v3235 = vmul.f32 %v3203, 0.2
        %v3236 = vmul.f32 %v3204, 0.2
        %v3237 = vmul.f32 %v3205, 0.2
        %v3238 = vmul.f32 %v3206, 0.2
        %v3239 = vmul.f32 %v3207, 0.2
        %v3240 = vsel %vm3208, %v3192, %v3224
        %v3241 = vsel %vm3209, %v3193, %v3225
        %v3242 = vsel %vm3210, %v3194, %v3226
        %v3243 = vsel %vm3211, %v3195, %v3227
        %v3244 = vsel %vm3212, %v3196, %v3228
        %v3245 = vsel %vm3213, %v3197, %v3229
        %v3246 = vsel %vm3214, %v3198, %v3230
        %v3247 = vsel %vm3215, %v3199, %v3231
        %v3248 = vsel %vm3216, %v3200, %v3232
        %v3249 = vsel %vm3217, %v3201, %v3233
        %v3250 = vsel %vm3218, %v3202, %v3234
        %v3251 = vsel %vm3219, %v3203, %v3235
        %v3252 = vsel %vm3220, %v3204, %v3236
        %v3253 = vsel %vm3221, %v3205, %v3237
        %v3254 = vsel %vm3222, %v3206, %v3238
        %v3255 = vsel %vm3223, %v3207, %v3239
        %v3256 = vld [vmem:[#allocation16] sm:$0xff]
        %v3257 = vld [vmem:[#allocation16 + $0x8] sm:$0xff]
        %v3258 = vld [vmem:[#allocation16 + $0x10] sm:$0xff]
        %v3259 = vld [vmem:[#allocation16 + $0x18] sm:$0xff]
        %v3260 = vld [vmem:[#allocation16 + $0x20] sm:$0xff]
        %v3261 = vld [vmem:[#allocation16 + $0x28] sm:$0xff]
        %v3262 = vld [vmem:[#allocation16 + $0x30] sm:$0xff]
        %v3263 = vld [vmem:[#allocation16 + $0x38] sm:$0xff]
        %v3264 = vld [vmem:[#allocation16 + $0x40] sm:$0xff]
        %v3265 = vld [vmem:[#allocation16 + $0x48] sm:$0xff]
        %v3266 = vld [vmem:[#allocation16 + $0x50] sm:$0xff]
        %v3267 = vld [vmem:[#allocation16 + $0x58] sm:$0xff]
        %v3268 = vld [vmem:[#allocation16 + $0x60] sm:$0xff]
        %v3269 = vld [vmem:[#allocation16 + $0x68] sm:$0xff]
        %v3270 = vld [vmem:[#allocation16 + $0x70] sm:$0xff]
        %v3271 = vld [vmem:[#allocation16 + $0x78] sm:$0xff]
        %v3272 = vld [vmem:[%s21] sm:$0x1]
        %v3274 = vperm.slane %v3272, 0
        %3276 = vmatpush.msra.mxu0 %v3271
        %3277 = vmatpush.msra.mxu0 %v3270
        %3278 = vmatpush.msra.mxu0 %v3269
        %3279 = vmatpush.msra.mxu0 %v3268
        %3280 = vmatpush.msra.mxu0 %v3267
        %3281 = vmatpush.msra.mxu0 %v3266
        %3282 = vmatpush.msra.mxu0 %v3265
        %3283 = vmatpush.msra.mxu0 %v3264
        %3284 = vmatpush.msra.mxu0 %v3263
        %3285 = vmatpush.msra.mxu0 %v3262
        %3286 = vmatpush.msra.mxu0 %v3261
        %3287 = vmatpush.msra.mxu0 %v3260
        %3288 = vmatpush.msra.mxu0 %v3259
        %3289 = vmatpush.msra.mxu0 %v3258
        %3290 = vmatpush.msra.mxu0 %v3257
        %3291 = vmatpush.msra.mxu0 %v3256
        %3292 = vmatmul.f32.gmra.mxu0 %v3240
        %v3293 = vpop.f32.mrf.mxu0
        %v3294 = vadd.f32 %v3274, %v3293
        %3295 = vmatmul.f32.gmra.mxu0 %v3241
        %v3296 = vpop.f32.mrf.mxu0
        %v3297 = vadd.f32 %v3274, %v3296
        %3298 = vmatmul.f32.gmra.mxu0 %v3242
        %v3299 = vpop.f32.mrf.mxu0
        %v3300 = vadd.f32 %v3274, %v3299
        %3301 = vmatmul.f32.gmra.mxu0 %v3243
        %v3302 = vpop.f32.mrf.mxu0
        %v3303 = vadd.f32 %v3274, %v3302
        %3304 = vmatmul.f32.gmra.mxu0 %v3244
        %v3305 = vpop.f32.mrf.mxu0
        %v3306 = vadd.f32 %v3274, %v3305
        %3307 = vmatmul.f32.gmra.mxu0 %v3245
        %v3308 = vpop.f32.mrf.mxu0
        %v3309 = vadd.f32 %v3274, %v3308
        %3310 = vmatmul.f32.gmra.mxu0 %v3246
        %v3311 = vpop.f32.mrf.mxu0
        %v3312 = vadd.f32 %v3274, %v3311
        %3313 = vmatmul.f32.gmra.mxu0 %v3247
        %v3314 = vpop.f32.mrf.mxu0
        %v3315 = vadd.f32 %v3274, %v3314
        %3316 = vmatmul.f32.gmra.mxu0 %v3248
        %v3317 = vpop.f32.mrf.mxu0
        %v3318 = vadd.f32 %v3274, %v3317
        %3319 = vmatmul.f32.gmra.mxu0 %v3249
        %v3320 = vpop.f32.mrf.mxu0
        %v3321 = vadd.f32 %v3274, %v3320
        %3322 = vmatmul.f32.gmra.mxu0 %v3250
        %v3323 = vpop.f32.mrf.mxu0
        %v3324 = vadd.f32 %v3274, %v3323
        %3325 = vmatmul.f32.gmra.mxu0 %v3251
        %v3326 = vpop.f32.mrf.mxu0
        %v3327 = vadd.f32 %v3274, %v3326
        %3328 = vmatmul.f32.gmra.mxu0 %v3252
        %v3329 = vpop.f32.mrf.mxu0
        %v3330 = vadd.f32 %v3274, %v3329
        %3331 = vmatmul.f32.gmra.mxu0 %v3253
        %v3332 = vpop.f32.mrf.mxu0
        %v3333 = vadd.f32 %v3274, %v3332
        %3334 = vmatmul.f32.gmra.mxu0 %v3254
        %v3335 = vpop.f32.mrf.mxu0
        %v3336 = vadd.f32 %v3274, %v3335
        %3337 = vmatmul.f32.gmra.mxu0 %v3255
        %v3338 = vpop.f32.mrf.mxu0
        %v3339 = vadd.f32 %v3274, %v3338
        %3340 = vdwg.mxu0
        %3341 = vst [vmem:[%s916] sm:$0xff] %v3294
        %3342 = vst [vmem:[%s916 + $0x8] sm:$0xff] %v3297
        %3343 = vst [vmem:[%s916 + $0x10] sm:$0xff] %v3300
        %3344 = vst [vmem:[%s916 + $0x18] sm:$0xff] %v3303
        %3345 = vst [vmem:[%s916 + $0x20] sm:$0xff] %v3306
        %3346 = vst [vmem:[%s916 + $0x28] sm:$0xff] %v3309
        %3347 = vst [vmem:[%s916 + $0x30] sm:$0xff] %v3312
        %3348 = vst [vmem:[%s916 + $0x38] sm:$0xff] %v3315
        %3349 = vst [vmem:[%s916 + $0x40] sm:$0xff] %v3318
        %3350 = vst [vmem:[%s916 + $0x48] sm:$0xff] %v3321
        %3351 = vst [vmem:[%s916 + $0x50] sm:$0xff] %v3324
        %3352 = vst [vmem:[%s916 + $0x58] sm:$0xff] %v3327
        %3353 = vst [vmem:[%s916 + $0x60] sm:$0xff] %v3330
        %3354 = vst [vmem:[%s916 + $0x68] sm:$0xff] %v3333
        %3355 = vst [vmem:[%s916 + $0x70] sm:$0xff] %v3336
        %3356 = vst [vmem:[%s916 + $0x78] sm:$0xff] %v3339
        %3357 = vst [vmem:[%s923] sm:$0xff] %v2030
        %3358 = vst [vmem:[%s923 + $0x8] sm:$0xff] %v2033
        %3359 = vst [vmem:[%s923 + $0x10] sm:$0xff] %v2036
        %3360 = vst [vmem:[%s923 + $0x18] sm:$0xff] %v2039
        %3361 = vst [vmem:[%s923 + $0x20] sm:$0xff] %v2042
        %3362 = vst [vmem:[%s923 + $0x28] sm:$0xff] %v2045
        %3363 = vst [vmem:[%s923 + $0x30] sm:$0xff] %v2048
        %3364 = vst [vmem:[%s923 + $0x38] sm:$0xff] %v2051
        %3365 = vst [vmem:[%s923 + $0x40] sm:$0xff] %v2054
        %3366 = vst [vmem:[%s923 + $0x48] sm:$0xff] %v2057
        %3367 = vst [vmem:[%s923 + $0x50] sm:$0xff] %v2060
        %3368 = vst [vmem:[%s923 + $0x58] sm:$0xff] %v2063
        %3369 = vst [vmem:[%s923 + $0x60] sm:$0xff] %v2066
        %3370 = vst [vmem:[%s923 + $0x68] sm:$0xff] %v2069
        %3371 = vst [vmem:[%s923 + $0x70] sm:$0xff] %v2072
        %3372 = vst [vmem:[%s923 + $0x78] sm:$0xff] %v2075
        %3373 = vst [vmem:[%s930] sm:$0xff] %v2095
        %3374 = vst [vmem:[%s930 + $0x8] sm:$0xff] %v2098
        %3375 = vst [vmem:[%s930 + $0x10] sm:$0xff] %v2101
        %3376 = vst [vmem:[%s930 + $0x18] sm:$0xff] %v2104
        %3377 = vst [vmem:[%s930 + $0x20] sm:$0xff] %v2107
        %3378 = vst [vmem:[%s930 + $0x28] sm:$0xff] %v2110
        %3379 = vst [vmem:[%s930 + $0x30] sm:$0xff] %v2113
        %3380 = vst [vmem:[%s930 + $0x38] sm:$0xff] %v2116
        %3381 = vst [vmem:[%s930 + $0x40] sm:$0xff] %v2119
        %3382 = vst [vmem:[%s930 + $0x48] sm:$0xff] %v2122
        %3383 = vst [vmem:[%s930 + $0x50] sm:$0xff] %v2125
        %3384 = vst [vmem:[%s930 + $0x58] sm:$0xff] %v2128
        %3385 = vst [vmem:[%s930 + $0x60] sm:$0xff] %v2131
        %3386 = vst [vmem:[%s930 + $0x68] sm:$0xff] %v2134
        %3387 = vst [vmem:[%s930 + $0x70] sm:$0xff] %v2137
        %3388 = vst [vmem:[%s930 + $0x78] sm:$0xff] %v2140
        %s3389 = sand.u32 %s531, 1
        %s3390 = scalar_lea.sflag [#allocation4], %s3389
        %s3391 = sand.u32 %s531, 1
        %s3392 = smul.addr %s3391, 128
        %s3393 = scalar_lea.vmem [#allocation17], %s3392
        %s3394 = sand.u32 %s51, 1
        %s3395 = scalar_lea.sflag [#allocation19], %s3394
        %s3396 = sand.u32 %s557, 1
        %s3397 = smul.addr %s3396, 128
        %s3398 = scalar_lea.vmem [#allocation18], %s3397
        %s3399 = sand.u32 %s51, 1
        %s3400 = scalar_lea.sflag [#allocation19], %s3399
        %s3401 = sand.u32 %s583, 1
        %s3402 = smul.addr %s3401, 128
        %s3403 = scalar_lea.vmem [#allocation20], %s3402
        // Predicated region
        $region145: #{tpu_custom_call.1} parent=107 // pred_check
          %p3404 = pneg %p541
        $region146: #{tpu_custom_call.1} parent=107 // pred_check_branch
          %3406 = sbr.rel (%p3404) target = $region148
        $region147: #{tpu_custom_call.1} parent=107 // pred_region
          %s3407 = smul.u32 16, %s51
          %3409 = vsyncadd %s3390, 0
          %s3410 = smul.addr %s3407, 8
          %s3411 = scalar_lea.hbm %s22, %s3410
          %s3412 = sshll.u32 %s3393, 4
          %s3413 = int_to_ptr.vmem [resolvable:$true] %s3412
          %s3414 = sshll.u32 %s3411, 4
          %s3415 = int_to_ptr.hbm [resolvable:$true] %s3414
          %3420 = dma.vmem_to_hbm [thread:$0]  %s3413, 2048, %s3415, %s3390, 128, 128, 8
        $region148: #{tpu_custom_call.1} parent=107 // pred_fallthru
          _
        // Predicated region
        $region149: #{tpu_custom_call.1} parent=107 // pred_check
          %p3421 = pneg %p567
        $region150: #{tpu_custom_call.1} parent=107 // pred_check_branch
          %3423 = sbr.rel (%p3421) target = $region152
        $region151: #{tpu_custom_call.1} parent=107 // pred_region
          %s3424 = smul.u32 16, %s51
          %3426 = vsyncadd %s3395, 0
          %s3427 = smul.addr %s3424, 8
          %s3428 = scalar_lea.hbm %s23, %s3427
          %s3429 = sshll.u32 %s3398, 4
          %s3430 = int_to_ptr.vmem [resolvable:$true] %s3429
          %s3431 = sshll.u32 %s3428, 4
          %s3432 = int_to_ptr.hbm [resolvable:$true] %s3431
          %3437 = dma.vmem_to_hbm [thread:$0]  %s3430, 2048, %s3432, %s3395, 128, 128, 8
        $region152: #{tpu_custom_call.1} parent=107 // pred_fallthru
          _
        // Predicated region
        $region153: #{tpu_custom_call.1} parent=107 // pred_check
          %p3438 = pneg %p593
        $region154: #{tpu_custom_call.1} parent=107 // pred_check_branch
          %3440 = sbr.rel (%p3438) target = $region156
        $region155: #{tpu_custom_call.1} parent=107 // pred_region
          %s3441 = smul.u32 16, %s51
          %3443 = vsyncadd %s3400, 0
          %s3444 = smul.addr %s3441, 8
          %s3445 = scalar_lea.hbm %s24, %s3444
          %s3446 = sshll.u32 %s3403, 4
          %s3447 = int_to_ptr.vmem [resolvable:$true] %s3446
          %s3448 = sshll.u32 %s3445, 4
          %s3449 = int_to_ptr.hbm [resolvable:$true] %s3448
          %3454 = dma.vmem_to_hbm [thread:$0]  %s3447, 2048, %s3449, %s3400, 128, 128, 8
        $region156: #{tpu_custom_call.1} parent=107 // pred_fallthru
          _
      $region108: #{tpu_custom_call.1} parent=5 // pred_fallthru
        _
      %p3455 = scmp.le.s32.totalorder 2, %s46
      // Predicated region
      $region157: #{tpu_custom_call.1} parent=5 // pred_check
        %p3456 = pneg %p3455
      $region158: #{tpu_custom_call.1} parent=5 // pred_check_branch
        %3458 = sbr.rel (%p3456) target = $region160
      $region159: #{tpu_custom_call.1} parent=5 // pred_region
        %s3459 = ssub.s32 %s46, 2
        // Predicated region
        $region161: #{tpu_custom_call.1} parent=159 // pred_check
          %p3460 = pneg %p547
        $region162: #{tpu_custom_call.1} parent=159 // pred_check_branch
          %3462 = sbr.rel (%p3460) target = $region164
        $region163: #{tpu_custom_call.1} parent=159 // pred_region
          %s3463 = sand.u32 %s532, 1
          %s3464 = scalar_lea.sflag [#allocation4], %s3463
          %s3465 = sand.u32 %s532, 1
          %s3466 = smul.addr %s3465, 128
          %s3467 = scalar_lea.vmem [#allocation17], %s3466
          %3469 = dma.done %s3464, 2048
        $region164: #{tpu_custom_call.1} parent=159 // pred_fallthru
          _
        // Predicated region
        $region165: #{tpu_custom_call.1} parent=159 // pred_check
          %p3470 = pneg %p573
        $region166: #{tpu_custom_call.1} parent=159 // pred_check_branch
          %3472 = sbr.rel (%p3470) target = $region168
        $region167: #{tpu_custom_call.1} parent=159 // pred_region
          %s3473 = sand.u32 %s52, 1
          %s3474 = scalar_lea.sflag [#allocation19], %s3473
          %s3475 = sand.u32 %s558, 1
          %s3476 = smul.addr %s3475, 128
          %s3477 = scalar_lea.vmem [#allocation18], %s3476
          %3479 = dma.done %s3474, 2048
        $region168: #{tpu_custom_call.1} parent=159 // pred_fallthru
          _
        // Predicated region
        $region169: #{tpu_custom_call.1} parent=159 // pred_check
          %p3480 = pneg %p599
        $region170: #{tpu_custom_call.1} parent=159 // pred_check_branch
          %3482 = sbr.rel (%p3480) target = $region172
        $region171: #{tpu_custom_call.1} parent=159 // pred_region
          %s3483 = sand.u32 %s52, 1
          %s3484 = scalar_lea.sflag [#allocation19], %s3483
          %s3485 = sand.u32 %s584, 1
          %s3486 = smul.addr %s3485, 128
          %s3487 = scalar_lea.vmem [#allocation20], %s3486
          %3489 = dma.done %s3484, 2048
        $region172: #{tpu_custom_call.1} parent=159 // pred_fallthru
          _
      $region160: #{tpu_custom_call.1} parent=5 // pred_fallthru
        _
    $region6: #{tpu_custom_call.1} parent=1 // loop_footer
      %s50 = sadd.s32 1, %s46
    $region7: #{tpu_custom_call.1} parent=1 // loop_footer_branch
      %45 = sbr.rel target = $region3
    $region8: #{tpu_custom_call.1} parent=1 // loop_exit
      _
    %3490 = vsyncpa [#allocation3], 1
    %s3491 = scalar_lea.sflag [#allocation3], 1
    %3492 = vsyncpa %s3491, 1
    %3493 = vsyncpa [#allocation6], 1
    %s3494 = scalar_lea.sflag [#allocation6], 1
    %3495 = vsyncpa %s3494, 1
    %3496 = vsyncpa [#allocation9], 1
    %3497 = vsyncpa [#allocation12], 1
    %3498 = vsyncpa [#allocation15], 1
    %3499 = vsyncpa [#allocation4], 1
    %s3500 = scalar_lea.sflag [#allocation4], 1
    %3501 = vsyncpa %s3500, 1
    %3502 = vsyncpa [#allocation19], 1
    %s3503 = scalar_lea.sflag [#allocation19], 1
    %3504 = vsyncpa %s3503, 1

</llo_original>
